<compile_context>
chip_gen: v5e
topology: v5e:2x2
jax: 0.10.0
libtpu: 0.0.40
codegen_flags: <defaults>
</compile_context>

<pallas_src>
import functools

import jax
import jax.numpy as jnp
import numpy as np
from jax import lax
from jax.experimental import pallas as pl
from jax.experimental.pallas import tpu as pltpu

EPS = 1e-5


def _round_up(v, m):
    return ((v + m - 1) // m) * m


def _pad2d(a, r, c):
    return jnp.pad(a.astype(jnp.float32), ((0, r - a.shape[0]), (0, c - a.shape[1])))


def _pick_block_h(H, W, max_rows):
    """Largest divisor BH of H with BH*W <= max_rows and BH*W % 8 == 0."""
    divisors = [d for d in range(1, H + 1) if H % d == 0]
    ok = [d for d in divisors if (d * W) % 8 == 0]
    cand = [d for d in ok if d * W <= max_rows]
    if cand:
        return max(cand)
    if ok:
        return min(ok)
    return H


def residual_kernel(x_ref, s1_ref, t1_ref, w1_ref, t2_ref, w2_ref,
                    t3_ref, w3_ref, bout_ref, *rest,
                    H, W, BH, P, need_skip):
    """One (image, row-block) step of the Residual forward.

    x_ref   : (H*W + 2P, Cp_in)  halo-padded image, channels-last, resident per n
    out_ref : (BH*W, Cp_out)     this row block of the output
    patch_ref (scratch): (BH*W, 9*Pmid) bf16 im2col buffer
    """
    if need_skip:
        wsk_ref, out_ref, patch_ref = rest
    else:
        out_ref, patch_ref = rest

    rows = BH * W                      # output rows in this block
    ext = rows + 2 * P                 # rows incl. +-1 image-row halo margin
    Pmid = w1_ref.shape[1]

    hb = pl.program_id(1)
    start = hb * rows                  # flat start row (in the padded image)
    if rows % 8 == 0:                  # P is always a multiple of 8
        start_ds = pl.multiple_of(start, 8)
        center_ds = pl.multiple_of(start + P, 8)
    else:
        start_ds = start
        center_ds = start + P

    # ---- extended window (block rows + halo) ------------------------------
    x_ext = x_ref[pl.ds(start_ds, ext), :]                     # (ext, Cp_in) f32

    # bn1 -> relu -> conv1 (1x1, bn2 scale folded into w1) -> +shift -> relu
    a_ext = jnp.maximum(x_ext * s1_ref[...] + t1_ref[...], 0.0)
    t_ext = jnp.dot(a_ext.astype(jnp.bfloat16), w1_ref[...],
                    preferred_element_type=jnp.float32)
    t_ext = jnp.maximum(t_ext + t2_ref[...], 0.0)              # (ext, Pmid)

    # zero the halo rows that lie outside this image: they are the zero
    # padding of conv2's input (bn1/conv1 of padded-zero x is NOT zero).
    e = lax.broadcasted_iota(jnp.int32, (ext, 1), 0)
    g = e + start                                  # flat row in padded image
    in_image = (g >= P) & (g < P + H * W)
    t_ext = jnp.where(in_image, t_ext, 0.0)

    # ---- conv2: 3x3 / pad 1 as im2col + one large-K MXU matmul -------------
    j = lax.broadcasted_iota(jnp.int32, (rows, 1), 0)
    w_local = j % W
    vc_left = w_local > 0                          # valid when reading col w-1
    vc_right = w_local < (W - 1)                   # valid when reading col w+1

    for ky in range(3):
        for kx in range(3):
            off = P + (ky - 1) * W + (kx - 1)      # static, always in-bounds
            win = t_ext[off:off + rows, :]
            if kx == 0:
                win = jnp.where(vc_left, win, 0.0)
            elif kx == 2:
                win = jnp.where(vc_right, win, 0.0)
            k = ky * 3 + kx
            patch_ref[:, k * Pmid:(k + 1) * Pmid] = win.astype(jnp.bfloat16)

    acc = jnp.dot(patch_ref[...], w2_ref[...],
                  preferred_element_type=jnp.float32)          # (rows, Pmid)

    # bn3 shift (scale folded into w2, b2 folded into shift) -> relu -> conv3
    t3 = jnp.maximum(acc + t3_ref[...], 0.0)
    out = jnp.dot(t3.astype(jnp.bfloat16), w3_ref[...],
                  preferred_element_type=jnp.float32) + bout_ref[...]

    # ---- skip branch --------------------------------------------------------
    x_c = x_ref[pl.ds(center_ds, rows), :]                     # central rows
    if need_skip:
        res = jnp.dot(x_c.astype(jnp.bfloat16), wsk_ref[...],
                      preferred_element_type=jnp.float32)      # bsk folded in bout
    else:
        res = x_c                                              # identity skip

    out_ref[...] = out + res


def make_params(key, inp_dim, out_dim):
    """Deterministic synthetic parameters matching nn.Module shapes (OIHW convs)."""
    mid = out_dim // 2
    keys = iter(jax.random.split(key, 24))

    def rnd(shape, scale=0.2):
        return scale * jax.random.normal(next(keys), shape, dtype=jnp.float32)

    def bn_params(c):
        gamma = 1.0 + rnd((c,), 0.1)
        beta = rnd((c,), 0.1)
        mean = rnd((c,), 0.1)
        var = 0.5 + jax.random.uniform(next(keys), (c,), dtype=jnp.float32)
        return gamma, beta, mean, var

    p = {}
    p['bn1'] = bn_params(inp_dim)
    p['bn2'] = bn_params(mid)
    p['bn3'] = bn_params(mid)
    p['w1'] = rnd((mid, inp_dim, 1, 1));      p['b1'] = rnd((mid,), 0.1)
    p['w2'] = rnd((mid, mid, 3, 3));          p['b2'] = rnd((mid,), 0.1)
    p['w3'] = rnd((out_dim, mid, 1, 1));      p['b3'] = rnd((out_dim,), 0.1)
    p['wsk'] = rnd((out_dim, inp_dim, 1, 1)); p['bsk'] = rnd((out_dim,), 0.1)
    return p


def residual_reference(x, p, need_skip):
    """Plain-JAX reference mirroring the PyTorch module (NCHW, OIHW)."""
    def bn(y, params):
        g, b, m, v = params
        inv = g / jnp.sqrt(v + EPS)
        return (y - m[None, :, None, None]) * inv[None, :, None, None] + b[None, :, None, None]

    def conv(y, w, b, pad):
        out = lax.conv_general_dilated(y, w, window_strides=(1, 1),
                                       padding=[(pad, pad), (pad, pad)],
                                       dimension_numbers=('NCHW', 'OIHW', 'NCHW'))
        return out + b[None, :, None, None]

    residual = conv(x, p['wsk'], p['bsk'], 0) if need_skip else x
    out = jax.nn.relu(bn(x, p['bn1']))
    out = conv(out, p['w1'], p['b1'], 0)
    out = jax.nn.relu(bn(out, p['bn2']))
    out = conv(out, p['w2'], p['b2'], 1)
    out = jax.nn.relu(bn(out, p['bn3']))
    out = conv(out, p['w3'], p['b3'], 0)
    return out + residual


def residual_forward(x_nchw, p, need_skip, block_rows=512):
    """Pallas wrapper. Takes NCHW float32, returns NCHW float32."""
    N, Cin, H, W = x_nchw.shape
    mid = p['w1'].shape[0]
    Cout = p['w3'].shape[0]

    Cp_in = _round_up(Cin, 128)
    Pmid = _round_up(mid, 128)
    Cp_out = _round_up(Cout, 128)
    P = _round_up(W + 1, 8)                      # halo margin: >= W+1, 8-aligned

    BH = _pick_block_h(H, W, block_rows)
    rows = BH * W
    nHB = H // BH

    # activations: NCHW -> (N, H*W, Cp_in), zero channel pad + P zero rows each side
    x2d = jnp.transpose(x_nchw, (0, 2, 3, 1)).reshape(N, H * W, Cin)
    x2d = jnp.pad(x2d, ((0, 0), (P, P), (0, Cp_in - Cin)))

    def fold_bn(params):
        g, b, m, v = params
        s = g / jnp.sqrt(v + EPS)
        return s, b - m * s

    s1, t1 = fold_bn(p['bn1'])
    s2, t2 = fold_bn(p['bn2'])
    s3, t3 = fold_bn(p['bn3'])
    t2 = t2 + s2 * p['b1']                       # fold conv1 bias into bn2 shift
    t3 = t3 + s3 * p['b2']                       # fold conv2 bias into bn3 shift
    bout = p['b3'] + (p['bsk'] if need_skip else 0.0)   # fold skip bias into conv3 bias

    def vec(v, c):
        return _pad2d(v.reshape(1, -1), 1, c)

    s1v, t1v = vec(s1, Cp_in), vec(t1, Cp_in)
    t2v = vec(t2, Pmid)
    t3v = vec(t3, Pmid)
    boutv = vec(bout, Cp_out)

    # fold bn2 / bn3 scales into the columns of the preceding conv weights
    w1m = jnp.transpose(p['w1'][:, :, 0, 0]) * s2[None, :]              # (Cin, mid)
    w1m = _pad2d(w1m, Cp_in, Pmid).astype(jnp.bfloat16)
    w2t = jnp.transpose(p['w2'], (2, 3, 1, 0)).reshape(9, mid, mid)     # [tap,cin,cout]
    w2t = w2t * s3[None, None, :]
    w2t = jnp.pad(w2t, ((0, 0), (0, Pmid - mid), (0, Pmid - mid)))
    w2m = w2t.reshape(9 * Pmid, Pmid).astype(jnp.bfloat16)
    w3m = _pad2d(jnp.transpose(p['w3'][:, :, 0, 0]), Pmid, Cp_out).astype(jnp.bfloat16)

    def resident(a):                              # small params stay in VMEM
        return pl.BlockSpec(a.shape, lambda n, hb, _nd=a.ndim: (0,) * _nd)

    ins = [x2d, s1v, t1v, w1m, t2v, w2m, t3v, w3m, boutv]
    in_specs = [pl.BlockSpec((None, H * W + 2 * P, Cp_in), lambda n, hb: (n, 0, 0))]
    in_specs += [resident(a) for a in ins[1:]]
    if need_skip:
        wskm = _pad2d(jnp.transpose(p['wsk'][:, :, 0, 0]), Cp_in, Cp_out).astype(jnp.bfloat16)
        ins += [wskm]
        in_specs += [resident(wskm)]

    kernel = functools.partial(residual_kernel, H=H, W=W, BH=BH, P=P,
                               need_skip=need_skip)

    out3d = pl.pallas_call(
        kernel,
        grid=(N, nHB),
        in_specs=in_specs,
        out_specs=pl.BlockSpec((None, rows, Cp_out), lambda n, hb: (n, hb, 0)),
        out_shape=jax.ShapeDtypeStruct((N, H * W, Cp_out), jnp.float32),
        scratch_shapes=[pltpu.VMEM((rows, 9 * Pmid), jnp.bfloat16)],
        compiler_params=pltpu.CompilerParams(
            dimension_semantics=("parallel", "parallel"),
            vmem_limit_bytes=32 * 1024 * 1024),
    )(*ins)

    out = out3d.reshape(N, H, W, Cp_out)[:, :, :, :Cout]
    return jnp.transpose(out, (0, 3, 1, 2))


if __name__ == "__main__":
    key = jax.random.PRNGKey(0)
    kx1, kp1, kx2, kp2 = jax.random.split(key, 4)

    # case 1: inp_dim != out_dim -> skip conv branch; block_rows=128 exercises
    # the multi-row-block grid (2 row blocks per image) and the halo path.
    N, inp_dim, out_dim, H, W = 2, 4, 8, 16, 16
    x1 = jax.random.normal(kx1, (N, inp_dim, H, W), dtype=jnp.float32)
    p1 = make_params(kp1, inp_dim, out_dim)
    out1 = jax.block_until_ready(residual_forward(x1, p1, True, block_rows=128))
    ref1 = jax.block_until_ready(residual_reference(x1, p1, True))
    assert out1.shape == (N, out_dim, H, W), out1.shape
    np.testing.assert_allclose(np.asarray(out1), np.asarray(ref1), rtol=5e-2, atol=5e-2)

    # case 2: inp_dim == out_dim -> specialized identity-skip kernel (no wsk matmul)
    x2 = jax.random.normal(kx2, (N, out_dim, H, W), dtype=jnp.float32)
    p2 = make_params(kp2, out_dim, out_dim)
    out2 = jax.block_until_ready(residual_forward(x2, p2, False, block_rows=128))
    ref2 = jax.block_until_ready(residual_reference(x2, p2, False))
    np.testing.assert_allclose(np.asarray(out2), np.asarray(ref2), rtol=5e-2, atol=5e-2)

    print("KERNEL_OK")
</pallas_src>

<mosaic_0001>
module attributes {stable_mosaic.version = 11 : i64} {
  func.func @residual_kernel(%arg0: i32, %arg1: i32, %arg2: memref<1x304x128xf32, #tpu.memory_space<vmem>>, %arg3: memref<1x128xf32, #tpu.memory_space<vmem>>, %arg4: memref<1x128xf32, #tpu.memory_space<vmem>>, %arg5: memref<128x128xbf16, #tpu.memory_space<vmem>>, %arg6: memref<1x128xf32, #tpu.memory_space<vmem>>, %arg7: memref<1152x128xbf16, #tpu.memory_space<vmem>>, %arg8: memref<1x128xf32, #tpu.memory_space<vmem>>, %arg9: memref<128x128xbf16, #tpu.memory_space<vmem>>, %arg10: memref<1x128xf32, #tpu.memory_space<vmem>>, %arg11: memref<128x128xbf16, #tpu.memory_space<vmem>>, %arg12: memref<1x128x128xf32, #tpu.memory_space<vmem>>, %arg13: memref<128x1152xbf16, #tpu.memory_space<vmem>>) attributes {dimension_semantics = [#tpu.dimension_semantics<parallel>, #tpu.dimension_semantics<parallel>], iteration_bounds = array<i64: 2, 2>, scalar_prefetch = 0 : i64, scratch_operands = 1 : i64, tpu.core_type = #tpu.core_type<tc>, window_params = [{transform_indices = @transform_0, window_bounds = array<i64: 1, 304, 128>}, {pipeline_mode = #tpu.pipeline_mode<synchronous>, transform_indices = @transform_1, window_bounds = array<i64: 1, 128>}, {pipeline_mode = #tpu.pipeline_mode<synchronous>, transform_indices = @transform_2, window_bounds = array<i64: 1, 128>}, {pipeline_mode = #tpu.pipeline_mode<synchronous>, transform_indices = @transform_3, window_bounds = array<i64: 128, 128>}, {pipeline_mode = #tpu.pipeline_mode<synchronous>, transform_indices = @transform_4, window_bounds = array<i64: 1, 128>}, {pipeline_mode = #tpu.pipeline_mode<synchronous>, transform_indices = @transform_5, window_bounds = array<i64: 1152, 128>}, {pipeline_mode = #tpu.pipeline_mode<synchronous>, transform_indices = @transform_6, window_bounds = array<i64: 1, 128>}, {pipeline_mode = #tpu.pipeline_mode<synchronous>, transform_indices = @transform_7, window_bounds = array<i64: 128, 128>}, {pipeline_mode = #tpu.pipeline_mode<synchronous>, transform_indices = @transform_8, window_bounds = array<i64: 1, 128>}, {pipeline_mode = #tpu.pipeline_mode<synchronous>, transform_indices = @transform_9, window_bounds = array<i64: 128, 128>}, {transform_indices = @transform_10, window_bounds = array<i64: 1, 128, 128>}]} {
    %c128_i32 = arith.constant 128 : i32
    %0 = arith.muli %arg1, %c128_i32 : i32
    %1 = tpu.assume_multiple %0, 8 : i32
    %c24_i32 = arith.constant 24 : i32
    %2 = arith.addi %0, %c24_i32 : i32
    %3 = tpu.assume_multiple %2, 8 : i32
    %c0 = arith.constant 0 : index
    %4 = arith.index_cast %1 : i32 to index
    %c0_0 = arith.constant 0 : index
    %5 = vector.load %arg2[%c0, %4, %c0_0] : memref<1x304x128xf32, #tpu.memory_space<vmem>>, vector<1x176x128xf32>
    %6 = vector.shape_cast %5 : vector<1x176x128xf32> to vector<176x128xf32>
    %c0_1 = arith.constant 0 : index
    %c0_2 = arith.constant 0 : index
    %7 = vector.load %arg3[%c0_1, %c0_2] : memref<1x128xf32, #tpu.memory_space<vmem>>, vector<1x128xf32>
    %8 = vector.broadcast %7 : vector<1x128xf32> to vector<176x128xf32>
    %9 = arith.mulf %6, %8 : vector<176x128xf32>
    %c0_3 = arith.constant 0 : index
    %c0_4 = arith.constant 0 : index
    %10 = vector.load %arg4[%c0_3, %c0_4] : memref<1x128xf32, #tpu.memory_space<vmem>>, vector<1x128xf32>
    %11 = vector.broadcast %10 : vector<1x128xf32> to vector<176x128xf32>
    %12 = arith.addf %9, %11 : vector<176x128xf32>
    %cst = arith.constant 0.000000e+00 : f32
    %13 = vector.broadcast %cst : f32 to vector<176x128xf32>
    %14 = arith.maximumf %12, %13 : vector<176x128xf32>
    %15 = arith.truncf %14 : vector<176x128xf32> to vector<176x128xbf16>
    %c0_5 = arith.constant 0 : index
    %c0_6 = arith.constant 0 : index
    %16 = vector.load %arg5[%c0_5, %c0_6] : memref<128x128xbf16, #tpu.memory_space<vmem>>, vector<128x128xbf16>
    %cst_7 = arith.constant dense<0.000000e+00> : vector<176x128xf32>
    %17 = tpu.matmul %15, %16, %cst_7 {dimension_numbers = #tpu.dot_dimension_numbers<[1], [0], [0], [1], [0, 0, 1, 1], [], []>} : vector<176x128xbf16>, vector<128x128xbf16>, vector<176x128xf32> -> vector<176x128xf32>
    %c0_8 = arith.constant 0 : index
    %c0_9 = arith.constant 0 : index
    %18 = vector.load %arg6[%c0_8, %c0_9] : memref<1x128xf32, #tpu.memory_space<vmem>>, vector<1x128xf32>
    %19 = vector.broadcast %18 : vector<1x128xf32> to vector<176x128xf32>
    %20 = arith.addf %17, %19 : vector<176x128xf32>
    %cst_10 = arith.constant 0.000000e+00 : f32
    %21 = vector.broadcast %cst_10 : f32 to vector<176x128xf32>
    %22 = arith.maximumf %20, %21 : vector<176x128xf32>
    %23 = tpu.iota {dimensions = array<i32: 0>} : vector<176x1xi32>
    %24 = vector.broadcast %0 : i32 to vector<176x1xi32>
    %25 = arith.addi %23, %24 : vector<176x1xi32>
    %c24_i32_11 = arith.constant 24 : i32
    %26 = vector.broadcast %c24_i32_11 : i32 to vector<176x1xi32>
    %27 = arith.cmpi sge, %25, %26 : vector<176x1xi32>
    %c280_i32 = arith.constant 280 : i32
    %28 = vector.broadcast %c280_i32 : i32 to vector<176x1xi32>
    %29 = arith.cmpi slt, %25, %28 : vector<176x1xi32>
    %30 = arith.andi %27, %29 : vector<176x1xi1>
    %cst_12 = arith.constant 0.000000e+00 : f32
    %31 = vector.shape_cast %30 : vector<176x1xi1> to vector<176x1xi1>
    %32 = vector.broadcast %31 : vector<176x1xi1> to vector<176x128xi1>
    %33 = vector.broadcast %cst_12 : f32 to vector<176x128xf32>
    %34 = arith.select %32, %22, %33 : vector<176x128xi1>, vector<176x128xf32>
    %35 = tpu.iota {dimensions = array<i32: 0>} : vector<128x1xi32>
    %c16_i32 = arith.constant 16 : i32
    %c0_i32 = arith.constant 0 : i32
    %36 = arith.cmpi eq, %c16_i32, %c0_i32 : i32
    %c1_i32 = arith.constant 1 : i32
    %37 = arith.select %36, %c1_i32, %c16_i32 : i32
    %38 = vector.broadcast %37 : i32 to vector<128x1xi32>
    %39 = arith.remsi %35, %38 : vector<128x1xi32>
    %c0_i32_13 = arith.constant 0 : i32
    %40 = vector.broadcast %c0_i32_13 : i32 to vector<128x1xi32>
    %41 = arith.cmpi ne, %39, %40 : vector<128x1xi32>
    %c0_i32_14 = arith.constant 0 : i32
    %42 = vector.broadcast %c0_i32_14 : i32 to vector<128x1xi32>
    %43 = arith.cmpi slt, %39, %42 : vector<128x1xi32>
    %c0_i32_15 = arith.constant 0 : i32
    %44 = arith.cmpi slt, %37, %c0_i32_15 : i32
    %45 = vector.broadcast %44 : i1 to vector<128x1xi1>
    %46 = vector.broadcast %45 : vector<128x1xi1> to vector<128x1xi1>
    %47 = arith.xori %43, %46 : vector<128x1xi1>
    %48 = arith.andi %47, %41 : vector<128x1xi1>
    %49 = vector.broadcast %37 : i32 to vector<128x1xi32>
    %50 = arith.addi %39, %49 : vector<128x1xi32>
    %51 = arith.select %48, %50, %39 : vector<128x1xi1>, vector<128x1xi32>
    %c0_i32_16 = arith.constant 0 : i32
    %52 = vector.broadcast %c0_i32_16 : i32 to vector<128x1xi32>
    %53 = arith.cmpi sgt, %51, %52 : vector<128x1xi32>
    %c15_i32 = arith.constant 15 : i32
    %54 = vector.broadcast %c15_i32 : i32 to vector<128x1xi32>
    %55 = arith.cmpi slt, %51, %54 : vector<128x1xi32>
    %56 = vector.extract_strided_slice %34 {offsets = [7, 0], sizes = [128, 128], strides = [1, 1]} : vector<176x128xf32> to vector<128x128xf32>
    %cst_17 = arith.constant 0.000000e+00 : f32
    %57 = vector.shape_cast %53 : vector<128x1xi1> to vector<128x1xi1>
    %58 = vector.broadcast %57 : vector<128x1xi1> to vector<128x128xi1>
    %59 = vector.broadcast %cst_17 : f32 to vector<128x128xf32>
    %60 = arith.select %58, %56, %59 : vector<128x128xi1>, vector<128x128xf32>
    %61 = arith.truncf %60 : vector<128x128xf32> to vector<128x128xbf16>
    %c0_18 = arith.constant 0 : index
    %c0_19 = arith.constant 0 : index
    %62 = vector.load %arg13[%c0_18, %c0_19] : memref<128x1152xbf16, #tpu.memory_space<vmem>>, vector<128x128xbf16>
    tpu.vector_store %arg13[%c0_18, %c0_19], %61 {strides = array<i32>} : memref<128x1152xbf16, #tpu.memory_space<vmem>>, vector<128x128xbf16>,
    %63 = vector.extract_strided_slice %34 {offsets = [8, 0], sizes = [128, 128], strides = [1, 1]} : vector<176x128xf32> to vector<128x128xf32>
    %64 = arith.truncf %63 : vector<128x128xf32> to vector<128x128xbf16>
    %c0_20 = arith.constant 0 : index
    %c128 = arith.constant 128 : index
    %65 = vector.load %arg13[%c0_20, %c128] : memref<128x1152xbf16, #tpu.memory_space<vmem>>, vector<128x128xbf16>
    tpu.vector_store %arg13[%c0_20, %c128], %64 {strides = array<i32>} : memref<128x1152xbf16, #tpu.memory_space<vmem>>, vector<128x128xbf16>,
    %66 = vector.extract_strided_slice %34 {offsets = [9, 0], sizes = [128, 128], strides = [1, 1]} : vector<176x128xf32> to vector<128x128xf32>
    %cst_21 = arith.constant 0.000000e+00 : f32
    %67 = vector.shape_cast %55 : vector<128x1xi1> to vector<128x1xi1>
    %68 = vector.broadcast %67 : vector<128x1xi1> to vector<128x128xi1>
    %69 = vector.broadcast %cst_21 : f32 to vector<128x128xf32>
    %70 = arith.select %68, %66, %69 : vector<128x128xi1>, vector<128x128xf32>
    %71 = arith.truncf %70 : vector<128x128xf32> to vector<128x128xbf16>
    %c0_22 = arith.constant 0 : index
    %c256 = arith.constant 256 : index
    %72 = vector.load %arg13[%c0_22, %c256] : memref<128x1152xbf16, #tpu.memory_space<vmem>>, vector<128x128xbf16>
    tpu.vector_store %arg13[%c0_22, %c256], %71 {strides = array<i32>} : memref<128x1152xbf16, #tpu.memory_space<vmem>>, vector<128x128xbf16>,
    %73 = vector.extract_strided_slice %34 {offsets = [23, 0], sizes = [128, 128], strides = [1, 1]} : vector<176x128xf32> to vector<128x128xf32>
    %cst_23 = arith.constant 0.000000e+00 : f32
    %74 = vector.shape_cast %53 : vector<128x1xi1> to vector<128x1xi1>
    %75 = vector.broadcast %74 : vector<128x1xi1> to vector<128x128xi1>
    %76 = vector.broadcast %cst_23 : f32 to vector<128x128xf32>
    %77 = arith.select %75, %73, %76 : vector<128x128xi1>, vector<128x128xf32>
    %78 = arith.truncf %77 : vector<128x128xf32> to vector<128x128xbf16>
    %c0_24 = arith.constant 0 : index
    %c384 = arith.constant 384 : index
    %79 = vector.load %arg13[%c0_24, %c384] : memref<128x1152xbf16, #tpu.memory_space<vmem>>, vector<128x128xbf16>
    tpu.vector_store %arg13[%c0_24, %c384], %78 {strides = array<i32>} : memref<128x1152xbf16, #tpu.memory_space<vmem>>, vector<128x128xbf16>,
    %80 = vector.extract_strided_slice %34 {offsets = [24, 0], sizes = [128, 128], strides = [1, 1]} : vector<176x128xf32> to vector<128x128xf32>
    %81 = arith.truncf %80 : vector<128x128xf32> to vector<128x128xbf16>
    %c0_25 = arith.constant 0 : index
    %c512 = arith.constant 512 : index
    %82 = vector.load %arg13[%c0_25, %c512] : memref<128x1152xbf16, #tpu.memory_space<vmem>>, vector<128x128xbf16>
    tpu.vector_store %arg13[%c0_25, %c512], %81 {strides = array<i32>} : memref<128x1152xbf16, #tpu.memory_space<vmem>>, vector<128x128xbf16>,
    %83 = vector.extract_strided_slice %34 {offsets = [25, 0], sizes = [128, 128], strides = [1, 1]} : vector<176x128xf32> to vector<128x128xf32>
    %cst_26 = arith.constant 0.000000e+00 : f32
    %84 = vector.shape_cast %55 : vector<128x1xi1> to vector<128x1xi1>
    %85 = vector.broadcast %84 : vector<128x1xi1> to vector<128x128xi1>
    %86 = vector.broadcast %cst_26 : f32 to vector<128x128xf32>
    %87 = arith.select %85, %83, %86 : vector<128x128xi1>, vector<128x128xf32>
    %88 = arith.truncf %87 : vector<128x128xf32> to vector<128x128xbf16>
    %c0_27 = arith.constant 0 : index
    %c640 = arith.constant 640 : index
    %89 = vector.load %arg13[%c0_27, %c640] : memref<128x1152xbf16, #tpu.memory_space<vmem>>, vector<128x128xbf16>
    tpu.vector_store %arg13[%c0_27, %c640], %88 {strides = array<i32>} : memref<128x1152xbf16, #tpu.memory_space<vmem>>, vector<128x128xbf16>,
    %90 = vector.extract_strided_slice %34 {offsets = [39, 0], sizes = [128, 128], strides = [1, 1]} : vector<176x128xf32> to vector<128x128xf32>
    %cst_28 = arith.constant 0.000000e+00 : f32
    %91 = vector.shape_cast %53 : vector<128x1xi1> to vector<128x1xi1>
    %92 = vector.broadcast %91 : vector<128x1xi1> to vector<128x128xi1>
    %93 = vector.broadcast %cst_28 : f32 to vector<128x128xf32>
    %94 = arith.select %92, %90, %93 : vector<128x128xi1>, vector<128x128xf32>
    %95 = arith.truncf %94 : vector<128x128xf32> to vector<128x128xbf16>
    %c0_29 = arith.constant 0 : index
    %c768 = arith.constant 768 : index
    %96 = vector.load %arg13[%c0_29, %c768] : memref<128x1152xbf16, #tpu.memory_space<vmem>>, vector<128x128xbf16>
    tpu.vector_store %arg13[%c0_29, %c768], %95 {strides = array<i32>} : memref<128x1152xbf16, #tpu.memory_space<vmem>>, vector<128x128xbf16>,
    %97 = vector.extract_strided_slice %34 {offsets = [40, 0], sizes = [128, 128], strides = [1, 1]} : vector<176x128xf32> to vector<128x128xf32>
    %98 = arith.truncf %97 : vector<128x128xf32> to vector<128x128xbf16>
    %c0_30 = arith.constant 0 : index
    %c896 = arith.constant 896 : index
    %99 = vector.load %arg13[%c0_30, %c896] : memref<128x1152xbf16, #tpu.memory_space<vmem>>, vector<128x128xbf16>
    tpu.vector_store %arg13[%c0_30, %c896], %98 {strides = array<i32>} : memref<128x1152xbf16, #tpu.memory_space<vmem>>, vector<128x128xbf16>,
    %100 = vector.extract_strided_slice %34 {offsets = [41, 0], sizes = [128, 128], strides = [1, 1]} : vector<176x128xf32> to vector<128x128xf32>
    %cst_31 = arith.constant 0.000000e+00 : f32
    %101 = vector.shape_cast %55 : vector<128x1xi1> to vector<128x1xi1>
    %102 = vector.broadcast %101 : vector<128x1xi1> to vector<128x128xi1>
    %103 = vector.broadcast %cst_31 : f32 to vector<128x128xf32>
    %104 = arith.select %102, %100, %103 : vector<128x128xi1>, vector<128x128xf32>
    %105 = arith.truncf %104 : vector<128x128xf32> to vector<128x128xbf16>
    %c0_32 = arith.constant 0 : index
    %c1024 = arith.constant 1024 : index
    %106 = vector.load %arg13[%c0_32, %c1024] : memref<128x1152xbf16, #tpu.memory_space<vmem>>, vector<128x128xbf16>
    tpu.vector_store %arg13[%c0_32, %c1024], %105 {strides = array<i32>} : memref<128x1152xbf16, #tpu.memory_space<vmem>>, vector<128x128xbf16>,
    %c0_33 = arith.constant 0 : index
    %c0_34 = arith.constant 0 : index
    %107 = vector.load %arg13[%c0_33, %c0_34] : memref<128x1152xbf16, #tpu.memory_space<vmem>>, vector<128x1152xbf16>
    %c0_35 = arith.constant 0 : index
    %c0_36 = arith.constant 0 : index
    %108 = vector.load %arg7[%c0_35, %c0_36] : memref<1152x128xbf16, #tpu.memory_space<vmem>>, vector<1152x128xbf16>
    %cst_37 = arith.constant dense<0.000000e+00> : vector<128x128xf32>
    %109 = tpu.matmul %107, %108, %cst_37 {dimension_numbers = #tpu.dot_dimension_numbers<[1], [0], [0], [1], [0, 0, 1, 1], [], []>} : vector<128x1152xbf16>, vector<1152x128xbf16>, vector<128x128xf32> -> vector<128x128xf32>
    %c0_38 = arith.constant 0 : index
    %c0_39 = arith.constant 0 : index
    %110 = vector.load %arg8[%c0_38, %c0_39] : memref<1x128xf32, #tpu.memory_space<vmem>>, vector<1x128xf32>
    %111 = vector.broadcast %110 : vector<1x128xf32> to vector<128x128xf32>
    %112 = arith.addf %109, %111 : vector<128x128xf32>
    %cst_40 = arith.constant 0.000000e+00 : f32
    %113 = vector.broadcast %cst_40 : f32 to vector<128x128xf32>
    %114 = arith.maximumf %112, %113 : vector<128x128xf32>
    %115 = arith.truncf %114 : vector<128x128xf32> to vector<128x128xbf16>
    %c0_41 = arith.constant 0 : index
    %c0_42 = arith.constant 0 : index
    %116 = vector.load %arg9[%c0_41, %c0_42] : memref<128x128xbf16, #tpu.memory_space<vmem>>, vector<128x128xbf16>
    %cst_43 = arith.constant dense<0.000000e+00> : vector<128x128xf32>
    %117 = tpu.matmul %115, %116, %cst_43 {dimension_numbers = #tpu.dot_dimension_numbers<[1], [0], [0], [1], [0, 0, 1, 1], [], []>} : vector<128x128xbf16>, vector<128x128xbf16>, vector<128x128xf32> -> vector<128x128xf32>
    %c0_44 = arith.constant 0 : index
    %c0_45 = arith.constant 0 : index
    %118 = vector.load %arg10[%c0_44, %c0_45] : memref<1x128xf32, #tpu.memory_space<vmem>>, vector<1x128xf32>
    %119 = vector.broadcast %118 : vector<1x128xf32> to vector<128x128xf32>
    %120 = arith.addf %117, %119 : vector<128x128xf32>
    %c0_46 = arith.constant 0 : index
    %121 = arith.index_cast %3 : i32 to index
    %c0_47 = arith.constant 0 : index
    %122 = vector.load %arg2[%c0_46, %121, %c0_47] : memref<1x304x128xf32, #tpu.memory_space<vmem>>, vector<1x128x128xf32>
    %123 = vector.shape_cast %122 : vector<1x128x128xf32> to vector<128x128xf32>
    %124 = arith.truncf %123 : vector<128x128xf32> to vector<128x128xbf16>
    %c0_48 = arith.constant 0 : index
    %c0_49 = arith.constant 0 : index
    %125 = vector.load %arg11[%c0_48, %c0_49] : memref<128x128xbf16, #tpu.memory_space<vmem>>, vector<128x128xbf16>
    %cst_50 = arith.constant dense<0.000000e+00> : vector<128x128xf32>
    %126 = tpu.matmul %124, %125, %cst_50 {dimension_numbers = #tpu.dot_dimension_numbers<[1], [0], [0], [1], [0, 0, 1, 1], [], []>} : vector<128x128xbf16>, vector<128x128xbf16>, vector<128x128xf32> -> vector<128x128xf32>
    %127 = arith.addf %120, %126 : vector<128x128xf32>
    %c0_51 = arith.constant 0 : index
    %c0_52 = arith.constant 0 : index
    %c0_53 = arith.constant 0 : index
    %128 = vector.load %arg12[%c0_51, %c0_52, %c0_53] : memref<1x128x128xf32, #tpu.memory_space<vmem>>, vector<1x128x128xf32>
    %129 = vector.shape_cast %128 : vector<1x128x128xf32> to vector<128x128xf32>
    %130 = vector.shape_cast %127 : vector<128x128xf32> to vector<1x128x128xf32>
    tpu.vector_store %arg12[%c0_51, %c0_52, %c0_53], %130 {strides = array<i32>} : memref<1x128x128xf32, #tpu.memory_space<vmem>>, vector<1x128x128xf32>,
    return
  }
  func.func @transform_0(%arg0: i32, %arg1: i32) -> (i32, i32, i32) {
    %c0_i32 = arith.constant 0 : i32
    %c0_i32_0 = arith.constant 0 : i32
    %c0_i32_1 = arith.constant 0 : i32
    return %arg0, %c0_i32, %c0_i32_0 : i32, i32, i32
  }
  func.func @transform_1(%arg0: i32, %arg1: i32) -> (i32, i32) {
    %c0_i32 = arith.constant 0 : i32
    %c0_i32_0 = arith.constant 0 : i32
    %c0_i32_1 = arith.constant 0 : i32
    return %c0_i32, %c0_i32_0 : i32, i32
  }
  func.func @transform_2(%arg0: i32, %arg1: i32) -> (i32, i32) {
    %c0_i32 = arith.constant 0 : i32
    %c0_i32_0 = arith.constant 0 : i32
    %c0_i32_1 = arith.constant 0 : i32
    return %c0_i32, %c0_i32_0 : i32, i32
  }
  func.func @transform_3(%arg0: i32, %arg1: i32) -> (i32, i32) {
    %c0_i32 = arith.constant 0 : i32
    %c0_i32_0 = arith.constant 0 : i32
    %c0_i32_1 = arith.constant 0 : i32
    return %c0_i32, %c0_i32_0 : i32, i32
  }
  func.func @transform_4(%arg0: i32, %arg1: i32) -> (i32, i32) {
    %c0_i32 = arith.constant 0 : i32
    %c0_i32_0 = arith.constant 0 : i32
    %c0_i32_1 = arith.constant 0 : i32
    return %c0_i32, %c0_i32_0 : i32, i32
  }
  func.func @transform_5(%arg0: i32, %arg1: i32) -> (i32, i32) {
    %c0_i32 = arith.constant 0 : i32
    %c0_i32_0 = arith.constant 0 : i32
    %c0_i32_1 = arith.constant 0 : i32
    return %c0_i32, %c0_i32_0 : i32, i32
  }
  func.func @transform_6(%arg0: i32, %arg1: i32) -> (i32, i32) {
    %c0_i32 = arith.constant 0 : i32
    %c0_i32_0 = arith.constant 0 : i32
    %c0_i32_1 = arith.constant 0 : i32
    return %c0_i32, %c0_i32_0 : i32, i32
  }
  func.func @transform_7(%arg0: i32, %arg1: i32) -> (i32, i32) {
    %c0_i32 = arith.constant 0 : i32
    %c0_i32_0 = arith.constant 0 : i32
    %c0_i32_1 = arith.constant 0 : i32
    return %c0_i32, %c0_i32_0 : i32, i32
  }
  func.func @transform_8(%arg0: i32, %arg1: i32) -> (i32, i32) {
    %c0_i32 = arith.constant 0 : i32
    %c0_i32_0 = arith.constant 0 : i32
    %c0_i32_1 = arith.constant 0 : i32
    return %c0_i32, %c0_i32_0 : i32, i32
  }
  func.func @transform_9(%arg0: i32, %arg1: i32) -> (i32, i32) {
    %c0_i32 = arith.constant 0 : i32
    %c0_i32_0 = arith.constant 0 : i32
    %c0_i32_1 = arith.constant 0 : i32
    return %c0_i32, %c0_i32_0 : i32, i32
  }
  func.func @transform_10(%arg0: i32, %arg1: i32) -> (i32, i32, i32) {
    %c0_i32 = arith.constant 0 : i32
    %c0_i32_0 = arith.constant 0 : i32
    return %arg0, %arg1, %c0_i32 : i32, i32, i32
  }
}

</mosaic_0001>

<llo_original>
// kernel: tpu_custom_call.1
$region0: #{tpu_custom_call.1}
  #allocation0 [shape = 'u32[]', space=smem, size = 0x4, offset = 0x4, fixed_abs, tag = 'smem constant byte address 0x4 - core index']
  #allocation1 [shape = 'u32[72,128]{1,0:T(1,128)}', space=vmem, size = 0x9000, scoped, tag = 'internal scratch']
  #allocation2 [shape = 'bf16[128,1152]{1,0:T(8,128)(2,1)}', space=vmem, size = 0x48000, scoped, tag = 'scratch operand']
  %s0 = inlined_call_operand.hbm [shape: f32[2,304,128], index: 0, kind: input, shape index: {}]
  %s1 = inlined_call_operand.hbm [shape: f32[1,128], index: 1, kind: input, shape index: {}]
  %s2 = inlined_call_operand.vmem [shape: f32[1,128], index: 2, kind: input, shape index: {}]
  %s3 = inlined_call_operand.hbm [shape: bf16[128,128], index: 3, kind: input, shape index: {}]
  %s4 = inlined_call_operand.vmem [shape: f32[1,128], index: 4, kind: input, shape index: {}]
  %s5 = inlined_call_operand.hbm [shape: bf16[1152,128], index: 5, kind: input, shape index: {}]
  %s6 = inlined_call_operand.vmem [shape: f32[1,128], index: 6, kind: input, shape index: {}]
  %s7 = inlined_call_operand.hbm [shape: bf16[128,128], index: 7, kind: input, shape index: {}]
  %s8 = inlined_call_operand.vmem [shape: f32[1,128], index: 8, kind: input, shape index: {}]
  %s9 = inlined_call_operand.hbm [shape: bf16[128,128], index: 9, kind: input, shape index: {}]
  %s10 = inlined_call_operand.hbm [shape: f32[2,256,128], index: 10, kind: output, shape index: {}]
  %s11 = sld [smem:[#allocation0]]
  $region97: #{tpu_custom_call.1} parent=0
    _
  %s13 = ssub.s32 1, %s11
  %s14 = scalar_select 0, %s13, %s11
  $region1: #{tpu_custom_call.1} parent=0
    #allocation3 [shape = 'u8[311296]{0}', space=vmem, size = 0x4c000, scoped, tag = 'input window, operand 0']
    #allocation4 [shape = 's32[2]{0}', space=sflag, size = 0x8, scoped, tag = 'scoped memory for tpu_custom_call.1']
    #allocation5 [shape = 's32[2]{0}', space=sflag, size = 0x8, scoped, tag = 'scoped memory for tpu_custom_call.1']
    #allocation6 [shape = 'u8[512]{0}', space=vmem, size = 0x400, scoped, tag = 'input window, operand 1, single buffered']
    #allocation7 [shape = 's32[1]{0}', space=sflag, size = 0x4, scoped, tag = 'scoped memory for tpu_custom_call.1']
    #allocation8 [shape = 'u8[32768]{0}', space=vmem, size = 0x8000, scoped, tag = 'input window, operand 3, single buffered']
    #allocation9 [shape = 'u8[294912]{0}', space=vmem, size = 0x48000, scoped, tag = 'input window, operand 5, single buffered']
    #allocation10 [shape = 's32[1]{0}', space=sflag, size = 0x4, scoped, tag = 'scoped memory for tpu_custom_call.1']
    #allocation11 [shape = 'u8[32768]{0}', space=vmem, size = 0x8000, scoped, tag = 'input window, operand 7, single buffered']
    #allocation12 [shape = 'u8[32768]{0}', space=vmem, size = 0x8000, scoped, tag = 'input window, operand 9, single buffered']
    #allocation13 [shape = 's32[1]{0}', space=sflag, size = 0x4, scoped, tag = 'scoped memory for tpu_custom_call.1']
    #allocation14 [shape = 'u8[131072]{0}', space=vmem, size = 0x20000, scoped, tag = 'output window, operand 0']
    %15 = vsyncpa [#allocation4], 0
    %s16 = scalar_lea.sflag [#allocation4], 1
    %17 = vsyncpa %s16, 0
    %18 = vsyncpa [#allocation7], 0
    %19 = vsyncpa [#allocation10], 0
    %20 = vsyncpa [#allocation13], 0
    %21 = vsyncpa [#allocation5], 0
    %s22 = scalar_lea.sflag [#allocation5], 1
    %23 = vsyncpa %s22, 0
    loop: start=0, step=1, limit=6
    $region2: #{tpu_custom_call.1} parent=1 // loop_pre_header
      _
    $region3: #{tpu_custom_call.1} parent=1 // loop_header
      %s25 = sphi 0, %s29
      %p26 = scmp.ge.s32.totalorder %s25, 6
      %s32 = sphi 0, %s44
      %s33 = sphi 0, %s40
      %s34 = sphi 0, %s32
      %s35 = sphi 0, %s33
      %s36 = sphi 0, %s34
      %s37 = sphi 0, %s35
      %s47 = sphi 0, %s49
      %s50 = sphi 0, %s47
      %s51 = sphi 0, %s50
      %s67 = sphi 0, %s51
      %s71 = sphi 0, %s71
      %s73 = sphi 0, %s71
      %s74 = sphi 0, %s73
      %s88 = sphi 0, %s74
      %s92 = sphi 0, %s92
      %s94 = sphi 0, %s92
      %s95 = sphi 0, %s94
      %s109 = sphi 0, %s95
      %s113 = sphi 0, %s113
      %s115 = sphi 0, %s113
      %s116 = sphi 0, %s115
      %s130 = sphi 0, %s116
      %s134 = sphi 0, %s134
      %s136 = sphi 0, %s134
      %s137 = sphi 0, %s136
      %s151 = sphi 0, %s137
      %s155 = sphi 0, %s155
      %s157 = sphi 0, %s155
      %s158 = sphi 0, %s157
      %s172 = sphi 0, %s158
      %s176 = sphi 0, %s176
      %s178 = sphi 0, %s176
      %s179 = sphi 0, %s178
      %s193 = sphi 0, %s179
      %s197 = sphi 0, %s197
      %s199 = sphi 0, %s197
      %s200 = sphi 0, %s199
      %s214 = sphi 0, %s200
      %s218 = sphi 0, %s218
      %s220 = sphi 0, %s218
      %s221 = sphi 0, %s220
      %s235 = sphi 0, %s221
      %s239 = sphi 0, %s239
      %s241 = sphi 0, %s239
      %s242 = sphi 0, %s241
      %s256 = sphi 0, %s242
      %s264 = sphi 0, %s266
      %s267 = sphi 0, %s264
      %s268 = sphi 0, %s267
      %s284 = sphi 0, %s268
    $region4: #{tpu_custom_call.1} parent=1 // loop_header_branch
      %28 = sbr.rel (%p26) target = $region8
    $region5: #{tpu_custom_call.1} parent=1 // loop_body
      %s30 = ssub.s32 %s25, 1
      %s31 = ssub.s32 %s25, 2
      %s38 = sadd.s32 1, %s33
      %p39 = scmp.ge.s32.totalorder %s38, 2
      %s40 = scalar_select %p39, 0, %s38
      %s41 = sadd.s32 1, %s32
      %s42 = scalar_select %p39, %s41, %s32
      %p43 = scmp.ge.s32.totalorder %s42, 2
      %s44 = scalar_select %p43, 0, %s42
      %s45 = ssub.s32 %s32, %s44
      %p46 = scmp.eq.s32.totalorder %s45, 0
      %s48 = sadd.s32 %s47, 1
      %s49 = scalar_select %p46, %s47, %s48
      %p52 = pneg %p46
      %p53 = scmp.eq.s32.totalorder %s25, 3
      %p54 = por %p52, %p53
      %p55 = scmp.ne.s32.totalorder %s47, %s50
      %p56 = scmp.eq.s32.totalorder %s25, 0
      %p57 = por %p55, %p56
      %p58 = scmp.ne.s32.totalorder %s47, %s50
      %p59 = scmp.eq.s32.totalorder %s30, 3
      %p60 = por %p58, %p59
      %p61 = scmp.ne.s32.totalorder %s50, %s51
      %p62 = scmp.eq.s32.totalorder %s30, 0
      %p63 = por %p61, %p62
      %p64 = scmp.ne.s32.totalorder %s50, %s51
      %p65 = scmp.eq.s32.totalorder %s31, 3
      %p66 = por %p64, %p65
      %p68 = scmp.ne.s32.totalorder %s51, %s67
      %p69 = scmp.eq.s32.totalorder %s31, 0
      %p70 = por %p68, %p69
      %s72 = sadd.s32 %s71, 1
      %p75 = scmp.eq.s32.totalorder %s25, 3
      %p76 = scmp.ne.s32.totalorder %s71, %s73
      %p77 = scmp.eq.s32.totalorder %s25, 0
      %p78 = por %p76, %p77
      %p79 = scmp.ne.s32.totalorder %s71, %s73
      %p80 = scmp.eq.s32.totalorder %s30, 3
      %p81 = por %p79, %p80
      %p82 = scmp.ne.s32.totalorder %s73, %s74
      %p83 = scmp.eq.s32.totalorder %s30, 0
      %p84 = por %p82, %p83
      %p85 = scmp.ne.s32.totalorder %s73, %s74
      %p86 = scmp.eq.s32.totalorder %s31, 3
      %p87 = por %p85, %p86
      %p89 = scmp.ne.s32.totalorder %s74, %s88
      %p90 = scmp.eq.s32.totalorder %s31, 0
      %p91 = por %p89, %p90
      %s93 = sadd.s32 %s92, 1
      %p96 = scmp.eq.s32.totalorder %s25, 3
      %p97 = scmp.ne.s32.totalorder %s92, %s94
      %p98 = scmp.eq.s32.totalorder %s25, 0
      %p99 = por %p97, %p98
      %p100 = scmp.ne.s32.totalorder %s92, %s94
      %p101 = scmp.eq.s32.totalorder %s30, 3
      %p102 = por %p100, %p101
      %p103 = scmp.ne.s32.totalorder %s94, %s95
      %p104 = scmp.eq.s32.totalorder %s30, 0
      %p105 = por %p103, %p104
      %p106 = scmp.ne.s32.totalorder %s94, %s95
      %p107 = scmp.eq.s32.totalorder %s31, 3
      %p108 = por %p106, %p107
      %p110 = scmp.ne.s32.totalorder %s95, %s109
      %p111 = scmp.eq.s32.totalorder %s31, 0
      %p112 = por %p110, %p111
      %s114 = sadd.s32 %s113, 1
      %p117 = scmp.eq.s32.totalorder %s25, 3
      %p118 = scmp.ne.s32.totalorder %s113, %s115
      %p119 = scmp.eq.s32.totalorder %s25, 0
      %p120 = por %p118, %p119
      %p121 = scmp.ne.s32.totalorder %s113, %s115
      %p122 = scmp.eq.s32.totalorder %s30, 3
      %p123 = por %p121, %p122
      %p124 = scmp.ne.s32.totalorder %s115, %s116
      %p125 = scmp.eq.s32.totalorder %s30, 0
      %p126 = por %p124, %p125
      %p127 = scmp.ne.s32.totalorder %s115, %s116
      %p128 = scmp.eq.s32.totalorder %s31, 3
      %p129 = por %p127, %p128
      %p131 = scmp.ne.s32.totalorder %s116, %s130
      %p132 = scmp.eq.s32.totalorder %s31, 0
      %p133 = por %p131, %p132
      %s135 = sadd.s32 %s134, 1
      %p138 = scmp.eq.s32.totalorder %s25, 3
      %p139 = scmp.ne.s32.totalorder %s134, %s136
      %p140 = scmp.eq.s32.totalorder %s25, 0
      %p141 = por %p139, %p140
      %p142 = scmp.ne.s32.totalorder %s134, %s136
      %p143 = scmp.eq.s32.totalorder %s30, 3
      %p144 = por %p142, %p143
      %p145 = scmp.ne.s32.totalorder %s136, %s137
      %p146 = scmp.eq.s32.totalorder %s30, 0
      %p147 = por %p145, %p146
      %p148 = scmp.ne.s32.totalorder %s136, %s137
      %p149 = scmp.eq.s32.totalorder %s31, 3
      %p150 = por %p148, %p149
      %p152 = scmp.ne.s32.totalorder %s137, %s151
      %p153 = scmp.eq.s32.totalorder %s31, 0
      %p154 = por %p152, %p153
      %s156 = sadd.s32 %s155, 1
      %p159 = scmp.eq.s32.totalorder %s25, 3
      %p160 = scmp.ne.s32.totalorder %s155, %s157
      %p161 = scmp.eq.s32.totalorder %s25, 0
      %p162 = por %p160, %p161
      %p163 = scmp.ne.s32.totalorder %s155, %s157
      %p164 = scmp.eq.s32.totalorder %s30, 3
      %p165 = por %p163, %p164
      %p166 = scmp.ne.s32.totalorder %s157, %s158
      %p167 = scmp.eq.s32.totalorder %s30, 0
      %p168 = por %p166, %p167
      %p169 = scmp.ne.s32.totalorder %s157, %s158
      %p170 = scmp.eq.s32.totalorder %s31, 3
      %p171 = por %p169, %p170
      %p173 = scmp.ne.s32.totalorder %s158, %s172
      %p174 = scmp.eq.s32.totalorder %s31, 0
      %p175 = por %p173, %p174
      %s177 = sadd.s32 %s176, 1
      %p180 = scmp.eq.s32.totalorder %s25, 3
      %p181 = scmp.ne.s32.totalorder %s176, %s178
      %p182 = scmp.eq.s32.totalorder %s25, 0
      %p183 = por %p181, %p182
      %p184 = scmp.ne.s32.totalorder %s176, %s178
      %p185 = scmp.eq.s32.totalorder %s30, 3
      %p186 = por %p184, %p185
      %p187 = scmp.ne.s32.totalorder %s178, %s179
      %p188 = scmp.eq.s32.totalorder %s30, 0
      %p189 = por %p187, %p188
      %p190 = scmp.ne.s32.totalorder %s178, %s179
      %p191 = scmp.eq.s32.totalorder %s31, 3
      %p192 = por %p190, %p191
      %p194 = scmp.ne.s32.totalorder %s179, %s193
      %p195 = scmp.eq.s32.totalorder %s31, 0
      %p196 = por %p194, %p195
      %s198 = sadd.s32 %s197, 1
      %p201 = scmp.eq.s32.totalorder %s25, 3
      %p202 = scmp.ne.s32.totalorder %s197, %s199
      %p203 = scmp.eq.s32.totalorder %s25, 0
      %p204 = por %p202, %p203
      %p205 = scmp.ne.s32.totalorder %s197, %s199
      %p206 = scmp.eq.s32.totalorder %s30, 3
      %p207 = por %p205, %p206
      %p208 = scmp.ne.s32.totalorder %s199, %s200
      %p209 = scmp.eq.s32.totalorder %s30, 0
      %p210 = por %p208, %p209
      %p211 = scmp.ne.s32.totalorder %s199, %s200
      %p212 = scmp.eq.s32.totalorder %s31, 3
      %p213 = por %p211, %p212
      %p215 = scmp.ne.s32.totalorder %s200, %s214
      %p216 = scmp.eq.s32.totalorder %s31, 0
      %p217 = por %p215, %p216
      %s219 = sadd.s32 %s218, 1
      %p222 = scmp.eq.s32.totalorder %s25, 3
      %p223 = scmp.ne.s32.totalorder %s218, %s220
      %p224 = scmp.eq.s32.totalorder %s25, 0
      %p225 = por %p223, %p224
      %p226 = scmp.ne.s32.totalorder %s218, %s220
      %p227 = scmp.eq.s32.totalorder %s30, 3
      %p228 = por %p226, %p227
      %p229 = scmp.ne.s32.totalorder %s220, %s221
      %p230 = scmp.eq.s32.totalorder %s30, 0
      %p231 = por %p229, %p230
      %p232 = scmp.ne.s32.totalorder %s220, %s221
      %p233 = scmp.eq.s32.totalorder %s31, 3
      %p234 = por %p232, %p233
      %p236 = scmp.ne.s32.totalorder %s221, %s235
      %p237 = scmp.eq.s32.totalorder %s31, 0
      %p238 = por %p236, %p237
      %s240 = sadd.s32 %s239, 1
      %p243 = scmp.eq.s32.totalorder %s25, 3
      %p244 = scmp.ne.s32.totalorder %s239, %s241
      %p245 = scmp.eq.s32.totalorder %s25, 0
      %p246 = por %p244, %p245
      %p247 = scmp.ne.s32.totalorder %s239, %s241
      %p248 = scmp.eq.s32.totalorder %s30, 3
      %p249 = por %p247, %p248
      %p250 = scmp.ne.s32.totalorder %s241, %s242
      %p251 = scmp.eq.s32.totalorder %s30, 0
      %p252 = por %p250, %p251
      %p253 = scmp.ne.s32.totalorder %s241, %s242
      %p254 = scmp.eq.s32.totalorder %s31, 3
      %p255 = por %p253, %p254
      %p257 = scmp.ne.s32.totalorder %s242, %s256
      %p258 = scmp.eq.s32.totalorder %s31, 0
      %p259 = por %p257, %p258
      %s260 = ssub.s32 %s32, %s44
      %s261 = ssub.s32 %s33, %s40
      %s262 = sor.u32 %s260, %s261
      %p263 = scmp.eq.s32.totalorder %s262, 0
      %s265 = sadd.s32 %s264, 1
      %s266 = scalar_select %p263, %s264, %s265
      %p269 = pneg %p263
      %p270 = scmp.eq.s32.totalorder %s25, 3
      %p271 = por %p269, %p270
      %p272 = scmp.ne.s32.totalorder %s264, %s267
      %p273 = scmp.eq.s32.totalorder %s25, 0
      %p274 = por %p272, %p273
      %p275 = scmp.ne.s32.totalorder %s264, %s267
      %p276 = scmp.eq.s32.totalorder %s30, 3
      %p277 = por %p275, %p276
      %p278 = scmp.ne.s32.totalorder %s267, %s268
      %p279 = scmp.eq.s32.totalorder %s30, 0
      %p280 = por %p278, %p279
      %p281 = scmp.ne.s32.totalorder %s267, %s268
      %p282 = scmp.eq.s32.totalorder %s31, 3
      %p283 = por %p281, %p282
      %p285 = scmp.ne.s32.totalorder %s268, %s284
      %p286 = scmp.eq.s32.totalorder %s31, 0
      %p287 = por %p285, %p286
      %p288 = scmp.le.s32.totalorder 1, %s25
      %p289 = scmp.lt.s32.totalorder %s25, 5
      %p290 = pnand %p288, %p289
      %p291 = pneg %p290
      // Predicated region
      $region9: #{tpu_custom_call.1} parent=5 // pred_check
        _
      $region10: #{tpu_custom_call.1} parent=5 // pred_check_branch
        %293 = sbr.rel (%p290) target = $region12
      $region11: #{tpu_custom_call.1} parent=5 // pred_region
        %s294 = ssub.s32 %s25, 1
        // Predicated region
        $region13: #{tpu_custom_call.1} parent=11 // pred_check
          %p295 = pneg %p84
        $region14: #{tpu_custom_call.1} parent=11 // pred_check_branch
          %297 = sbr.rel (%p295) target = $region16
        $region15: #{tpu_custom_call.1} parent=11 // pred_region
          %299 = vsyncadd [#allocation7], 0
          %s301 = sshll.u32 %s1, 4
          %s302 = int_to_ptr.hbm [resolvable:$true] %s301
          %s303 = sshll.u32 [#allocation6], 4
          %s304 = int_to_ptr.vmem [resolvable:$true] %s303
          %306 = dma.hbm_to_vmem [thread:$0]  %s302, 16, %s304, [#allocation7]
        $region16: #{tpu_custom_call.1} parent=11 // pred_fallthru
          _
        // Predicated region
        $region17: #{tpu_custom_call.1} parent=11 // pred_check
          %p307 = pneg %p105
        $region18: #{tpu_custom_call.1} parent=11 // pred_check_branch
          %309 = sbr.rel (%p307) target = $region20
        $region19: #{tpu_custom_call.1} parent=11 // pred_region
          _
        $region20: #{tpu_custom_call.1} parent=11 // pred_fallthru
          _
        // Predicated region
        $region21: #{tpu_custom_call.1} parent=11 // pred_check
          %p310 = pneg %p126
        $region22: #{tpu_custom_call.1} parent=11 // pred_check_branch
          %312 = sbr.rel (%p310) target = $region24
        $region23: #{tpu_custom_call.1} parent=11 // pred_region
          %314 = vsyncadd [#allocation7], 0
          %s315 = sshll.u32 %s3, 4
          %s316 = int_to_ptr.hbm [resolvable:$true] %s315
          %s317 = sshll.u32 [#allocation8], 4
          %s318 = int_to_ptr.vmem [resolvable:$true] %s317
          %323 = dma.hbm_to_vmem [thread:$0]  %s316, 1024, %s318, [#allocation7], 64, 64, 4
        $region24: #{tpu_custom_call.1} parent=11 // pred_fallthru
          _
        // Predicated region
        $region25: #{tpu_custom_call.1} parent=11 // pred_check
          %p324 = pneg %p147
        $region26: #{tpu_custom_call.1} parent=11 // pred_check_branch
          %326 = sbr.rel (%p324) target = $region28
        $region27: #{tpu_custom_call.1} parent=11 // pred_region
          _
        $region28: #{tpu_custom_call.1} parent=11 // pred_fallthru
          _
        // Predicated region
        $region29: #{tpu_custom_call.1} parent=11 // pred_check
          %p327 = pneg %p168
        $region30: #{tpu_custom_call.1} parent=11 // pred_check_branch
          %329 = sbr.rel (%p327) target = $region32
        $region31: #{tpu_custom_call.1} parent=11 // pred_region
          %331 = vsyncadd [#allocation10], 0
          %s332 = sshll.u32 %s5, 4
          %s333 = int_to_ptr.hbm [resolvable:$true] %s332
          %s334 = sshll.u32 [#allocation9], 4
          %s335 = int_to_ptr.vmem [resolvable:$true] %s334
          %340 = dma.hbm_to_vmem [thread:$0]  %s333, 9216, %s335, [#allocation10], 64, 64, 4
        $region32: #{tpu_custom_call.1} parent=11 // pred_fallthru
          _
        // Predicated region
        $region33: #{tpu_custom_call.1} parent=11 // pred_check
          %p341 = pneg %p189
        $region34: #{tpu_custom_call.1} parent=11 // pred_check_branch
          %343 = sbr.rel (%p341) target = $region36
        $region35: #{tpu_custom_call.1} parent=11 // pred_region
          _
        $region36: #{tpu_custom_call.1} parent=11 // pred_fallthru
          _
        // Predicated region
        $region37: #{tpu_custom_call.1} parent=11 // pred_check
          %p344 = pneg %p210
        $region38: #{tpu_custom_call.1} parent=11 // pred_check_branch
          %346 = sbr.rel (%p344) target = $region40
        $region39: #{tpu_custom_call.1} parent=11 // pred_region
          %348 = vsyncadd [#allocation10], 0
          %s349 = sshll.u32 %s7, 4
          %s350 = int_to_ptr.hbm [resolvable:$true] %s349
          %s351 = sshll.u32 [#allocation11], 4
          %s352 = int_to_ptr.vmem [resolvable:$true] %s351
          %357 = dma.hbm_to_vmem [thread:$0]  %s350, 1024, %s352, [#allocation10], 64, 64, 4
        $region40: #{tpu_custom_call.1} parent=11 // pred_fallthru
          _
        // Predicated region
        $region41: #{tpu_custom_call.1} parent=11 // pred_check
          %p358 = pneg %p231
        $region42: #{tpu_custom_call.1} parent=11 // pred_check_branch
          %360 = sbr.rel (%p358) target = $region44
        $region43: #{tpu_custom_call.1} parent=11 // pred_region
          _
        $region44: #{tpu_custom_call.1} parent=11 // pred_fallthru
          _
        // Predicated region
        $region45: #{tpu_custom_call.1} parent=11 // pred_check
          %p361 = pneg %p252
        $region46: #{tpu_custom_call.1} parent=11 // pred_check_branch
          %363 = sbr.rel (%p361) target = $region48
        $region47: #{tpu_custom_call.1} parent=11 // pred_region
          %365 = vsyncadd [#allocation13], 0
          %s366 = sshll.u32 %s9, 4
          %s367 = int_to_ptr.hbm [resolvable:$true] %s366
          %s368 = sshll.u32 [#allocation12], 4
          %s369 = int_to_ptr.vmem [resolvable:$true] %s368
          %374 = dma.hbm_to_vmem [thread:$0]  %s367, 1024, %s369, [#allocation13], 64, 64, 4
        $region48: #{tpu_custom_call.1} parent=11 // pred_fallthru
          _
      $region12: #{tpu_custom_call.1} parent=5 // pred_fallthru
        _
      %p375 = scmp.lt.s32.totalorder %s25, 4
      // Predicated region
      $region49: #{tpu_custom_call.1} parent=5 // pred_check
        %p376 = pneg %p375
      $region50: #{tpu_custom_call.1} parent=5 // pred_check_branch
        %378 = sbr.rel (%p376) target = $region52
      $region51: #{tpu_custom_call.1} parent=5 // pred_region
        // Predicated region
        $region53: #{tpu_custom_call.1} parent=51 // pred_check
          %p379 = pneg %p57
        $region54: #{tpu_custom_call.1} parent=51 // pred_check_branch
          %381 = sbr.rel (%p379) target = $region56
        $region55: #{tpu_custom_call.1} parent=51 // pred_region
          %s382 = sand.u32 %s47, 1
          %s383 = scalar_lea.sflag [#allocation4], %s382
          %s384 = sand.u32 %s47, 1
          %s385 = smul.addr %s384, 304
          %s386 = scalar_lea.vmem [#allocation3], %s385
          %388 = vsyncadd %s383, 0
          %s389 = smul.addr %s32, 38
          %s390 = smul.addr %s389, 8
          %s391 = scalar_lea.hbm %s0, %s390
          %s392 = sshll.u32 %s391, 4
          %s393 = int_to_ptr.hbm [resolvable:$true] %s392
          %s394 = sshll.u32 %s386, 4
          %s395 = int_to_ptr.vmem [resolvable:$true] %s394
          %400 = dma.hbm_to_vmem [thread:$0]  %s393, 4864, %s395, %s383, 128, 128, 8
        $region56: #{tpu_custom_call.1} parent=51 // pred_fallthru
          _
      $region52: #{tpu_custom_call.1} parent=5 // pred_fallthru
        _
      %p401 = scmp.le.s32.totalorder 1, %s25
      %p402 = scmp.lt.s32.totalorder %s25, 5
      %p403 = pnand %p401, %p402
      %p404 = pneg %p403
      // Predicated region
      $region57: #{tpu_custom_call.1} parent=5 // pred_check
        _
      $region58: #{tpu_custom_call.1} parent=5 // pred_check_branch
        %406 = sbr.rel (%p403) target = $region60
      $region59: #{tpu_custom_call.1} parent=5 // pred_region
        %s407 = ssub.s32 %s25, 1
        %s408 = sand.u32 %s50, 1
        %s409 = scalar_lea.sflag [#allocation4], %s408
        %s410 = sand.u32 %s50, 1
        %s411 = smul.addr %s410, 304
        %s412 = scalar_lea.vmem [#allocation3], %s411
        // Predicated region
        $region61: #{tpu_custom_call.1} parent=59 // pred_check
          %p413 = pneg %p63
        $region62: #{tpu_custom_call.1} parent=59 // pred_check_branch
          %415 = sbr.rel (%p413) target = $region64
        $region63: #{tpu_custom_call.1} parent=59 // pred_region
          %417 = dma.done %s409, 4864
        $region64: #{tpu_custom_call.1} parent=59 // pred_fallthru
          _
        // Predicated region
        $region65: #{tpu_custom_call.1} parent=59 // pred_check
          %p418 = pneg %p84
        $region66: #{tpu_custom_call.1} parent=59 // pred_check_branch
          %420 = sbr.rel (%p418) target = $region68
        $region67: #{tpu_custom_call.1} parent=59 // pred_region
          %422 = dma.done [#allocation7], 16
        $region68: #{tpu_custom_call.1} parent=59 // pred_fallthru
          _
        // Predicated region
        $region69: #{tpu_custom_call.1} parent=59 // pred_check
          %p423 = pneg %p126
        $region70: #{tpu_custom_call.1} parent=59 // pred_check_branch
          %425 = sbr.rel (%p423) target = $region72
        $region71: #{tpu_custom_call.1} parent=59 // pred_region
          %427 = dma.done [#allocation7], 1024
        $region72: #{tpu_custom_call.1} parent=59 // pred_fallthru
          _
        // Predicated region
        $region73: #{tpu_custom_call.1} parent=59 // pred_check
          %p428 = pneg %p168
        $region74: #{tpu_custom_call.1} parent=59 // pred_check_branch
          %430 = sbr.rel (%p428) target = $region76
        $region75: #{tpu_custom_call.1} parent=59 // pred_region
          %432 = dma.done [#allocation10], 9216
        $region76: #{tpu_custom_call.1} parent=59 // pred_fallthru
          _
        // Predicated region
        $region77: #{tpu_custom_call.1} parent=59 // pred_check
          %p433 = pneg %p210
        $region78: #{tpu_custom_call.1} parent=59 // pred_check_branch
          %435 = sbr.rel (%p433) target = $region80
        $region79: #{tpu_custom_call.1} parent=59 // pred_region
          %437 = dma.done [#allocation10], 1024
        $region80: #{tpu_custom_call.1} parent=59 // pred_fallthru
          _
        // Predicated region
        $region81: #{tpu_custom_call.1} parent=59 // pred_check
          %p438 = pneg %p252
        $region82: #{tpu_custom_call.1} parent=59 // pred_check_branch
          %440 = sbr.rel (%p438) target = $region84
        $region83: #{tpu_custom_call.1} parent=59 // pred_region
          %442 = dma.done [#allocation13], 1024
        $region84: #{tpu_custom_call.1} parent=59 // pred_fallthru
          _
        %s443 = sand.u32 %s50, 1
        %s444 = scalar_lea.sflag [#allocation4], %s443
        %s445 = sand.u32 %s50, 1
        %s446 = smul.addr %s445, 304
        %s447 = scalar_lea.vmem [#allocation3], %s446
        %p448 = pneg %p63
        %p449 = pneg %p60
        %p450 = pneg %p84
        %p451 = pneg %p81
        %p452 = pneg %p105
        %p453 = pneg %p102
        %p454 = pneg %p126
        %p455 = pneg %p123
        %p456 = pneg %p147
        %p457 = pneg %p144
        %p458 = pneg %p168
        %p459 = pneg %p165
        %p460 = pneg %p189
        %p461 = pneg %p186
        %p462 = pneg %p210
        %p463 = pneg %p207
        %p464 = pneg %p231
        %p465 = pneg %p228
        %p466 = pneg %p252
        %p467 = pneg %p249
        %p468 = pneg %p280
        %p469 = pneg %p277
        %s470 = sand.u32 %s267, 1
        %s471 = scalar_lea.sflag [#allocation5], %s470
        %s472 = sand.u32 %s267, 1
        %s473 = smul.addr %s472, 128
        %s474 = scalar_lea.vmem [#allocation14], %s473
        %s475 = smul.u32 16, %s35
        %s476 = smul.u32 %s35, 128
        %s477 = sadd.s32 %s476, 24
        %s478 = scalar_lea.vmem %s412, %s476 [#allocation3]
        %v479 = vld [vmem:[%s478] sm:$0xff]
        %v480 = vld [vmem:[%s478 + $0x8] sm:$0xff]
        %v481 = vld [vmem:[%s478 + $0x10] sm:$0xff]
        %v482 = vld [vmem:[%s478 + $0x18] sm:$0xff]
        %v483 = vld [vmem:[%s478 + $0x20] sm:$0xff]
        %v484 = vld [vmem:[%s478 + $0x28] sm:$0xff]
        %v485 = vld [vmem:[%s478 + $0x30] sm:$0xff]
        %v486 = vld [vmem:[%s478 + $0x38] sm:$0xff]
        %v487 = vld [vmem:[%s478 + $0x40] sm:$0xff]
        %v488 = vld [vmem:[%s478 + $0x48] sm:$0xff]
        %v489 = vld [vmem:[%s478 + $0x50] sm:$0xff]
        %v490 = vld [vmem:[%s478 + $0x58] sm:$0xff]
        %v491 = vld [vmem:[%s478 + $0x60] sm:$0xff]
        %v492 = vld [vmem:[%s478 + $0x68] sm:$0xff]
        %v493 = vld [vmem:[%s478 + $0x70] sm:$0xff]
        %v494 = vld [vmem:[%s478 + $0x78] sm:$0xff]
        %v495 = vld [vmem:[%s478 + $0x80] sm:$0xff]
        %v496 = vld [vmem:[%s478 + $0x88] sm:$0xff]
        %v497 = vld [vmem:[%s478 + $0x90] sm:$0xff]
        %v498 = vld [vmem:[%s478 + $0x98] sm:$0xff]
        %v499 = vld [vmem:[%s478 + $0xa0] sm:$0xff]
        %v500 = vld [vmem:[%s478 + $0xa8] sm:$0xff]
        %v501 = vld [vmem:[#allocation6] sm:$0x1]
        %v503 = vperm.slane %v501, 0
        %v505 = vmul.f32 %v479, %v503
        %v506 = vmul.f32 %v480, %v503
        %v507 = vmul.f32 %v481, %v503
        %v508 = vmul.f32 %v482, %v503
        %v509 = vmul.f32 %v483, %v503
        %v510 = vmul.f32 %v484, %v503
        %v511 = vmul.f32 %v485, %v503
        %v512 = vmul.f32 %v486, %v503
        %v513 = vmul.f32 %v487, %v503
        %v514 = vmul.f32 %v488, %v503
        %v515 = vmul.f32 %v489, %v503
        %v516 = vmul.f32 %v490, %v503
        %v517 = vmul.f32 %v491, %v503
        %v518 = vmul.f32 %v492, %v503
        %v519 = vmul.f32 %v493, %v503
        %v520 = vmul.f32 %v494, %v503
        %v521 = vmul.f32 %v495, %v503
        %v522 = vmul.f32 %v496, %v503
        %v523 = vmul.f32 %v497, %v503
        %v524 = vmul.f32 %v498, %v503
        %v525 = vmul.f32 %v499, %v503
        %v526 = vmul.f32 %v500, %v503
        %v527 = vld [vmem:[%s2] sm:$0x1]
        %v529 = vperm.slane %v527, 0
        %v531 = vadd.f32 %v505, %v529
        %v532 = vadd.f32 %v506, %v529
        %v533 = vadd.f32 %v507, %v529
        %v534 = vadd.f32 %v508, %v529
        %v535 = vadd.f32 %v509, %v529
        %v536 = vadd.f32 %v510, %v529
        %v537 = vadd.f32 %v511, %v529
        %v538 = vadd.f32 %v512, %v529
        %v539 = vadd.f32 %v513, %v529
        %v540 = vadd.f32 %v514, %v529
        %v541 = vadd.f32 %v515, %v529
        %v542 = vadd.f32 %v516, %v529
        %v543 = vadd.f32 %v517, %v529
        %v544 = vadd.f32 %v518, %v529
        %v545 = vadd.f32 %v519, %v529
        %v546 = vadd.f32 %v520, %v529
        %v547 = vadd.f32 %v521, %v529
        %v548 = vadd.f32 %v522, %v529
        %v549 = vadd.f32 %v523, %v529
        %v550 = vadd.f32 %v524, %v529
        %v551 = vadd.f32 %v525, %v529
        %v552 = vadd.f32 %v526, %v529
        %v553 = vmax.f32 %v531, 0.0
        %v554 = vmax.f32 %v532, 0.0
        %v555 = vmax.f32 %v533, 0.0
        %v556 = vmax.f32 %v534, 0.0
        %v557 = vmax.f32 %v535, 0.0
        %v558 = vmax.f32 %v536, 0.0
        %v559 = vmax.f32 %v537, 0.0
        %v560 = vmax.f32 %v538, 0.0
        %v561 = vmax.f32 %v539, 0.0
        %v562 = vmax.f32 %v540, 0.0
        %v563 = vmax.f32 %v541, 0.0
        %v564 = vmax.f32 %v542, 0.0
        %v565 = vmax.f32 %v543, 0.0
        %v566 = vmax.f32 %v544, 0.0
        %v567 = vmax.f32 %v545, 0.0
        %v568 = vmax.f32 %v546, 0.0
        %v569 = vmax.f32 %v547, 0.0
        %v570 = vmax.f32 %v548, 0.0
        %v571 = vmax.f32 %v549, 0.0
        %v572 = vmax.f32 %v550, 0.0
        %v573 = vmax.f32 %v551, 0.0
        %v574 = vmax.f32 %v552, 0.0
        %v575 = vpack.c.bf16 %v554, %v553
        %v576 = vpack.c.bf16 %v556, %v555
        %v577 = vpack.c.bf16 %v558, %v557
        %v578 = vpack.c.bf16 %v560, %v559
        %v579 = vpack.c.bf16 %v562, %v561
        %v580 = vpack.c.bf16 %v564, %v563
        %v581 = vpack.c.bf16 %v566, %v565
        %v582 = vpack.c.bf16 %v568, %v567
        %v583 = vpack.c.bf16 %v570, %v569
        %v584 = vpack.c.bf16 %v572, %v571
        %v585 = vpack.c.bf16 %v574, %v573
        %v586 = vld [vmem:[#allocation8] sm:$0xf]
        %v587 = vld [vmem:[#allocation8 + $0x4] sm:$0xf]
        %v588 = vld [vmem:[#allocation8 + $0x8] sm:$0xf]
        %v589 = vld [vmem:[#allocation8 + $0xc] sm:$0xf]
        %v590 = vld [vmem:[#allocation8 + $0x10] sm:$0xf]
        %v591 = vld [vmem:[#allocation8 + $0x14] sm:$0xf]
        %v592 = vld [vmem:[#allocation8 + $0x18] sm:$0xf]
        %v593 = vld [vmem:[#allocation8 + $0x1c] sm:$0xf]
        %v594 = vld [vmem:[#allocation8 + $0x20] sm:$0xf]
        %v595 = vld [vmem:[#allocation8 + $0x24] sm:$0xf]
        %v596 = vld [vmem:[#allocation8 + $0x28] sm:$0xf]
        %v597 = vld [vmem:[#allocation8 + $0x2c] sm:$0xf]
        %v598 = vld [vmem:[#allocation8 + $0x30] sm:$0xf]
        %v599 = vld [vmem:[#allocation8 + $0x34] sm:$0xf]
        %v600 = vld [vmem:[#allocation8 + $0x38] sm:$0xf]
        %v601 = vld [vmem:[#allocation8 + $0x3c] sm:$0xf]
        %v602 = vld [vmem:[%s4] sm:$0x1]
        %v604 = vperm.slane %v602, 0
        %v622 = vunpack.c.l.b16 %v586
        %v623 = vunpack.c.l.b16 %v587
        %v624 = vunpack.c.l.b16 %v588
        %v625 = vunpack.c.l.b16 %v589
        %v626 = vunpack.c.l.b16 %v590
        %v627 = vunpack.c.l.b16 %v591
        %v628 = vunpack.c.l.b16 %v592
        %v629 = vunpack.c.l.b16 %v593
        %v630 = vunpack.c.l.b16 %v594
        %v631 = vunpack.c.l.b16 %v595
        %v632 = vunpack.c.l.b16 %v596
        %v633 = vunpack.c.l.b16 %v597
        %v634 = vunpack.c.l.b16 %v598
        %v635 = vunpack.c.l.b16 %v599
        %v636 = vunpack.c.l.b16 %v600
        %v637 = vunpack.c.l.b16 %v601
        %v638 = vpack.c.b16 %v623, %v622
        %v639 = vpack.c.b16 %v625, %v624
        %v640 = vpack.c.b16 %v627, %v626
        %v641 = vpack.c.b16 %v629, %v628
        %v642 = vpack.c.b16 %v631, %v630
        %v643 = vpack.c.b16 %v633, %v632
        %v644 = vpack.c.b16 %v635, %v634
        %v645 = vpack.c.b16 %v637, %v636
        %654 = vmatpush.bf16.msra.mxu0 %v645
        %655 = vmatpush.bf16.msra.mxu0 %v644
        %656 = vmatpush.bf16.msra.mxu0 %v643
        %657 = vmatpush.bf16.msra.mxu0 %v642
        %658 = vmatpush.bf16.msra.mxu0 %v641
        %659 = vmatpush.bf16.msra.mxu0 %v640
        %660 = vmatpush.bf16.msra.mxu0 %v639
        %661 = vmatpush.bf16.msra.mxu0 %v638
        %662 = vmatmul.bf16.gmra.mxu0 %v575
        %v663 = vpop.f32.mrf.mxu0
        %v664 = vadd.f32 %v604, %v663
        %v665 = vpop.f32.mrf.mxu0
        %v666 = vadd.f32 %v604, %v665
        %667 = vmatmul.bf16.gmra.mxu0 %v576
        %v668 = vpop.f32.mrf.mxu0
        %v669 = vadd.f32 %v604, %v668
        %v670 = vpop.f32.mrf.mxu0
        %v671 = vadd.f32 %v604, %v670
        %672 = vmatmul.bf16.gmra.mxu0 %v577
        %v673 = vpop.f32.mrf.mxu0
        %v674 = vadd.f32 %v604, %v673
        %v675 = vpop.f32.mrf.mxu0
        %v676 = vadd.f32 %v604, %v675
        %677 = vmatmul.bf16.gmra.mxu0 %v578
        %v678 = vpop.f32.mrf.mxu0
        %v679 = vadd.f32 %v604, %v678
        %v680 = vpop.f32.mrf.mxu0
        %v681 = vadd.f32 %v604, %v680
        %682 = vmatmul.bf16.gmra.mxu0 %v579
        %v683 = vpop.f32.mrf.mxu0
        %v684 = vadd.f32 %v604, %v683
        %v685 = vpop.f32.mrf.mxu0
        %v686 = vadd.f32 %v604, %v685
        %687 = vmatmul.bf16.gmra.mxu0 %v580
        %v688 = vpop.f32.mrf.mxu0
        %v689 = vadd.f32 %v604, %v688
        %v690 = vpop.f32.mrf.mxu0
        %v691 = vadd.f32 %v604, %v690
        %692 = vmatmul.bf16.gmra.mxu0 %v581
        %v693 = vpop.f32.mrf.mxu0
        %v694 = vadd.f32 %v604, %v693
        %v695 = vpop.f32.mrf.mxu0
        %v696 = vadd.f32 %v604, %v695
        %697 = vmatmul.bf16.gmra.mxu0 %v582
        %v698 = vpop.f32.mrf.mxu0
        %v699 = vadd.f32 %v604, %v698
        %v700 = vpop.f32.mrf.mxu0
        %v701 = vadd.f32 %v604, %v700
        %702 = vmatmul.bf16.gmra.mxu0 %v583
        %v703 = vpop.f32.mrf.mxu0
        %v704 = vadd.f32 %v604, %v703
        %v705 = vpop.f32.mrf.mxu0
        %v706 = vadd.f32 %v604, %v705
        %707 = vmatmul.bf16.gmra.mxu0 %v584
        %v708 = vpop.f32.mrf.mxu0
        %v709 = vadd.f32 %v604, %v708
        %v710 = vpop.f32.mrf.mxu0
        %v711 = vadd.f32 %v604, %v710
        %712 = vmatmul.bf16.gmra.mxu0 %v585
        %v713 = vpop.f32.mrf.mxu0
        %v714 = vadd.f32 %v604, %v713
        %v715 = vpop.f32.mrf.mxu0
        %v716 = vadd.f32 %v604, %v715
        %717 = vdwg.mxu0
        %v718 = vmax.f32 %v664, 0.0
        %v719 = vmax.f32 %v666, 0.0
        %v720 = vmax.f32 %v669, 0.0
        %v721 = vmax.f32 %v671, 0.0
        %v722 = vmax.f32 %v674, 0.0
        %v723 = vmax.f32 %v676, 0.0
        %v724 = vmax.f32 %v679, 0.0
        %v725 = vmax.f32 %v681, 0.0
        %v726 = vmax.f32 %v684, 0.0
        %v727 = vmax.f32 %v686, 0.0
        %v728 = vmax.f32 %v689, 0.0
        %v729 = vmax.f32 %v691, 0.0
        %v730 = vmax.f32 %v694, 0.0
        %v731 = vmax.f32 %v696, 0.0
        %v732 = vmax.f32 %v699, 0.0
        %v733 = vmax.f32 %v701, 0.0
        %v734 = vmax.f32 %v704, 0.0
        %v735 = vmax.f32 %v706, 0.0
        %v736 = vmax.f32 %v709, 0.0
        %v737 = vmax.f32 %v711, 0.0
        %v738 = vmax.f32 %v714, 0.0
        %v739 = vmax.f32 %v716, 0.0
        %v740 = vlaneseq
        %v741 = vshrl.u32 %v740, 7
        %v742 = vadd.s32 %v741, 8
        %v743 = vadd.s32 %v741, 16
        %v744 = vadd.s32 %v741, 24
        %v745 = vadd.s32 %v741, 32
        %v746 = vadd.s32 %v741, 40
        %v747 = vadd.s32 %v741, 48
        %v748 = vadd.s32 %v741, 56
        %v749 = vadd.s32 %v741, 64
        %v750 = vadd.s32 %v741, 72
        %v751 = vadd.s32 %v741, 80
        %v752 = vadd.s32 %v741, 88
        %v753 = vadd.s32 %v741, 96
        %v754 = vadd.s32 %v741, 104
        %v755 = vadd.s32 %v741, 112
        %v756 = vadd.s32 %v741, 120
        %v757 = vadd.s32 %v741, 128
        %v758 = vadd.s32 %v741, 136
        %v759 = vadd.s32 %v741, 144
        %v760 = vadd.s32 %v741, 152
        %v761 = vadd.s32 %v741, 160
        %v762 = vadd.s32 %v741, 168
        %v763 = vstv %s476
        %v764 = vadd.s32 %v741, %v763
        %v765 = vadd.s32 %v742, %v763
        %v766 = vadd.s32 %v743, %v763
        %v767 = vadd.s32 %v744, %v763
        %v768 = vadd.s32 %v745, %v763
        %v769 = vadd.s32 %v746, %v763
        %v770 = vadd.s32 %v747, %v763
        %v771 = vadd.s32 %v748, %v763
        %v772 = vadd.s32 %v749, %v763
        %v773 = vadd.s32 %v750, %v763
        %v774 = vadd.s32 %v751, %v763
        %v775 = vadd.s32 %v752, %v763
        %v776 = vadd.s32 %v753, %v763
        %v777 = vadd.s32 %v754, %v763
        %v778 = vadd.s32 %v755, %v763
        %v779 = vadd.s32 %v756, %v763
        %v780 = vadd.s32 %v757, %v763
        %v781 = vadd.s32 %v758, %v763
        %v782 = vadd.s32 %v759, %v763
        %v783 = vadd.s32 %v760, %v763
        %v784 = vadd.s32 %v761, %v763
        %v785 = vadd.s32 %v762, %v763
        %vm786 = vcmp.ge.s32.totalorder %v764, 24
        %vm787 = vcmp.ge.s32.totalorder %v765, 24
        %vm788 = vcmp.ge.s32.totalorder %v766, 24
        %vm789 = vcmp.ge.s32.totalorder %v767, 24
        %vm790 = vcmp.ge.s32.totalorder %v768, 24
        %vm791 = vcmp.ge.s32.totalorder %v769, 24
        %vm792 = vcmp.ge.s32.totalorder %v770, 24
        %vm793 = vcmp.ge.s32.totalorder %v771, 24
        %vm794 = vcmp.ge.s32.totalorder %v772, 24
        %vm795 = vcmp.ge.s32.totalorder %v773, 24
        %vm796 = vcmp.ge.s32.totalorder %v774, 24
        %vm797 = vcmp.ge.s32.totalorder %v775, 24
        %vm798 = vcmp.ge.s32.totalorder %v776, 24
        %vm799 = vcmp.ge.s32.totalorder %v777, 24
        %vm800 = vcmp.ge.s32.totalorder %v778, 24
        %vm801 = vcmp.ge.s32.totalorder %v779, 24
        %vm802 = vcmp.ge.s32.totalorder %v780, 24
        %vm803 = vcmp.ge.s32.totalorder %v781, 24
        %vm804 = vcmp.ge.s32.totalorder %v782, 24
        %vm805 = vcmp.ge.s32.totalorder %v783, 24
        %vm806 = vcmp.ge.s32.totalorder %v784, 24
        %vm807 = vcmp.ge.s32.totalorder %v785, 24
        %vm808 = vcmp.lt.s32.totalorder %v764, 280
        %vm809 = vcmp.lt.s32.totalorder %v765, 280
        %vm810 = vcmp.lt.s32.totalorder %v766, 280
        %vm811 = vcmp.lt.s32.totalorder %v767, 280
        %vm812 = vcmp.lt.s32.totalorder %v768, 280
        %vm813 = vcmp.lt.s32.totalorder %v769, 280
        %vm814 = vcmp.lt.s32.totalorder %v770, 280
        %vm815 = vcmp.lt.s32.totalorder %v771, 280
        %vm816 = vcmp.lt.s32.totalorder %v772, 280
        %vm817 = vcmp.lt.s32.totalorder %v773, 280
        %vm818 = vcmp.lt.s32.totalorder %v774, 280
        %vm819 = vcmp.lt.s32.totalorder %v775, 280
        %vm820 = vcmp.lt.s32.totalorder %v776, 280
        %vm821 = vcmp.lt.s32.totalorder %v777, 280
        %vm822 = vcmp.lt.s32.totalorder %v778, 280
        %vm823 = vcmp.lt.s32.totalorder %v779, 280
        %vm824 = vcmp.lt.s32.totalorder %v780, 280
        %vm825 = vcmp.lt.s32.totalorder %v781, 280
        %vm826 = vcmp.lt.s32.totalorder %v782, 280
        %vm827 = vcmp.lt.s32.totalorder %v783, 280
        %vm828 = vcmp.lt.s32.totalorder %v784, 280
        %vm829 = vcmp.lt.s32.totalorder %v785, 280
        %vm830 = vmand %vm786, %vm808
        %vm831 = vmand %vm787, %vm809
        %vm832 = vmand %vm788, %vm810
        %vm833 = vmand %vm789, %vm811
        %vm834 = vmand %vm790, %vm812
        %vm835 = vmand %vm791, %vm813
        %vm836 = vmand %vm792, %vm814
        %vm837 = vmand %vm793, %vm815
        %vm838 = vmand %vm794, %vm816
        %vm839 = vmand %vm795, %vm817
        %vm840 = vmand %vm796, %vm818
        %vm841 = vmand %vm797, %vm819
        %vm842 = vmand %vm798, %vm820
        %vm843 = vmand %vm799, %vm821
        %vm844 = vmand %vm800, %vm822
        %vm845 = vmand %vm801, %vm823
        %vm846 = vmand %vm802, %vm824
        %vm847 = vmand %vm803, %vm825
        %vm848 = vmand %vm804, %vm826
        %vm849 = vmand %vm805, %vm827
        %vm850 = vmand %vm806, %vm828
        %vm851 = vmand %vm807, %vm829
        %v852 = vsel %vm830, 1, 0
        %v853 = vsel %vm831, 1, 0
        %v854 = vsel %vm832, 1, 0
        %v855 = vsel %vm833, 1, 0
        %v856 = vsel %vm834, 1, 0
        %v857 = vsel %vm835, 1, 0
        %v858 = vsel %vm836, 1, 0
        %v859 = vsel %vm837, 1, 0
        %v860 = vsel %vm838, 1, 0
        %v861 = vsel %vm839, 1, 0
        %v862 = vsel %vm840, 1, 0
        %v863 = vsel %vm841, 1, 0
        %v864 = vsel %vm842, 1, 0
        %v865 = vsel %vm843, 1, 0
        %v866 = vsel %vm844, 1, 0
        %v867 = vsel %vm845, 1, 0
        %v868 = vsel %vm846, 1, 0
        %v869 = vsel %vm847, 1, 0
        %v870 = vsel %vm848, 1, 0
        %v871 = vsel %vm849, 1, 0
        %v872 = vsel %vm850, 1, 0
        %v873 = vsel %vm851, 1, 0
        %vm874 = vcmp.eq.s32.totalorder %v852, 1
        %vm875 = vcmp.eq.s32.totalorder %v853, 1
        %vm876 = vcmp.eq.s32.totalorder %v854, 1
        %vm877 = vcmp.eq.s32.totalorder %v855, 1
        %vm878 = vcmp.eq.s32.totalorder %v856, 1
        %vm879 = vcmp.eq.s32.totalorder %v857, 1
        %vm880 = vcmp.eq.s32.totalorder %v858, 1
        %vm881 = vcmp.eq.s32.totalorder %v859, 1
        %vm882 = vcmp.eq.s32.totalorder %v860, 1
        %vm883 = vcmp.eq.s32.totalorder %v861, 1
        %vm884 = vcmp.eq.s32.totalorder %v862, 1
        %vm885 = vcmp.eq.s32.totalorder %v863, 1
        %vm886 = vcmp.eq.s32.totalorder %v864, 1
        %vm887 = vcmp.eq.s32.totalorder %v865, 1
        %vm888 = vcmp.eq.s32.totalorder %v866, 1
        %vm889 = vcmp.eq.s32.totalorder %v867, 1
        %vm890 = vcmp.eq.s32.totalorder %v868, 1
        %vm891 = vcmp.eq.s32.totalorder %v869, 1
        %vm892 = vcmp.eq.s32.totalorder %v870, 1
        %vm893 = vcmp.eq.s32.totalorder %v871, 1
        %vm894 = vcmp.eq.s32.totalorder %v872, 1
        %vm895 = vcmp.eq.s32.totalorder %v873, 1
        %v896 = vsel %vm874, %v718, 0.0
        %v897 = vsel %vm875, %v719, 0.0
        %v898 = vsel %vm876, %v720, 0.0
        %v899 = vsel %vm877, %v721, 0.0
        %v900 = vsel %vm878, %v722, 0.0
        %v901 = vsel %vm879, %v723, 0.0
        %v902 = vsel %vm880, %v724, 0.0
        %v903 = vsel %vm881, %v725, 0.0
        %v904 = vsel %vm882, %v726, 0.0
        %v905 = vsel %vm883, %v727, 0.0
        %v906 = vsel %vm884, %v728, 0.0
        %v907 = vsel %vm885, %v729, 0.0
        %v908 = vsel %vm886, %v730, 0.0
        %v909 = vsel %vm887, %v731, 0.0
        %v910 = vsel %vm888, %v732, 0.0
        %v911 = vsel %vm889, %v733, 0.0
        %v912 = vsel %vm890, %v734, 0.0
        %v913 = vsel %vm891, %v735, 0.0
        %v914 = vsel %vm892, %v736, 0.0
        %v915 = vsel %vm893, %v737, 0.0
        %v916 = vsel %vm894, %v738, 0.0
        %v917 = vsel %vm895, %v739, 0.0
        %vm918 = vcmp.lt.s32.totalorder %v741, 0
        %v919 = vsub.s32 0, %v741
        %v920 = vsel %vm918, %v919, %v741
        %v921 = vshrl.u32 %v920, 4
        %v922 = vand.u32 %v920, 15
        %v923 = vsub.s32 0, %v922
        %v924 = vsel %vm918, %v923, %v922
        %vm925 = vcmp.lt.s32.totalorder %v742, 0
        %v926 = vsub.s32 0, %v742
        %v927 = vsel %vm925, %v926, %v742
        %v928 = vshrl.u32 %v927, 4
        %v929 = vand.u32 %v927, 15
        %v930 = vsub.s32 0, %v929
        %v931 = vsel %vm925, %v930, %v929
        %vm932 = vcmp.lt.s32.totalorder %v743, 0
        %v933 = vsub.s32 0, %v743
        %v934 = vsel %vm932, %v933, %v743
        %v935 = vshrl.u32 %v934, 4
        %v936 = vand.u32 %v934, 15
        %v937 = vsub.s32 0, %v936
        %v938 = vsel %vm932, %v937, %v936
        %vm939 = vcmp.lt.s32.totalorder %v744, 0
        %v940 = vsub.s32 0, %v744
        %v941 = vsel %vm939, %v940, %v744
        %v942 = vshrl.u32 %v941, 4
        %v943 = vand.u32 %v941, 15
        %v944 = vsub.s32 0, %v943
        %v945 = vsel %vm939, %v944, %v943
        %vm946 = vcmp.lt.s32.totalorder %v745, 0
        %v947 = vsub.s32 0, %v745
        %v948 = vsel %vm946, %v947, %v745
        %v949 = vshrl.u32 %v948, 4
        %v950 = vand.u32 %v948, 15
        %v951 = vsub.s32 0, %v950
        %v952 = vsel %vm946, %v951, %v950
        %vm953 = vcmp.lt.s32.totalorder %v746, 0
        %v954 = vsub.s32 0, %v746
        %v955 = vsel %vm953, %v954, %v746
        %v956 = vshrl.u32 %v955, 4
        %v957 = vand.u32 %v955, 15
        %v958 = vsub.s32 0, %v957
        %v959 = vsel %vm953, %v958, %v957
        %vm960 = vcmp.lt.s32.totalorder %v747, 0
        %v961 = vsub.s32 0, %v747
        %v962 = vsel %vm960, %v961, %v747
        %v963 = vshrl.u32 %v962, 4
        %v964 = vand.u32 %v962, 15
        %v965 = vsub.s32 0, %v964
        %v966 = vsel %vm960, %v965, %v964
        %vm967 = vcmp.lt.s32.totalorder %v748, 0
        %v968 = vsub.s32 0, %v748
        %v969 = vsel %vm967, %v968, %v748
        %v970 = vshrl.u32 %v969, 4
        %v971 = vand.u32 %v969, 15
        %v972 = vsub.s32 0, %v971
        %v973 = vsel %vm967, %v972, %v971
        %vm974 = vcmp.lt.s32.totalorder %v749, 0
        %v975 = vsub.s32 0, %v749
        %v976 = vsel %vm974, %v975, %v749
        %v977 = vshrl.u32 %v976, 4
        %v978 = vand.u32 %v976, 15
        %v979 = vsub.s32 0, %v978
        %v980 = vsel %vm974, %v979, %v978
        %vm981 = vcmp.lt.s32.totalorder %v750, 0
        %v982 = vsub.s32 0, %v750
        %v983 = vsel %vm981, %v982, %v750
        %v984 = vshrl.u32 %v983, 4
        %v985 = vand.u32 %v983, 15
        %v986 = vsub.s32 0, %v985
        %v987 = vsel %vm981, %v986, %v985
        %vm988 = vcmp.lt.s32.totalorder %v751, 0
        %v989 = vsub.s32 0, %v751
        %v990 = vsel %vm988, %v989, %v751
        %v991 = vshrl.u32 %v990, 4
        %v992 = vand.u32 %v990, 15
        %v993 = vsub.s32 0, %v992
        %v994 = vsel %vm988, %v993, %v992
        %vm995 = vcmp.lt.s32.totalorder %v752, 0
        %v996 = vsub.s32 0, %v752
        %v997 = vsel %vm995, %v996, %v752
        %v998 = vshrl.u32 %v997, 4
        %v999 = vand.u32 %v997, 15
        %v1000 = vsub.s32 0, %v999
        %v1001 = vsel %vm995, %v1000, %v999
        %vm1002 = vcmp.lt.s32.totalorder %v753, 0
        %v1003 = vsub.s32 0, %v753
        %v1004 = vsel %vm1002, %v1003, %v753
        %v1005 = vshrl.u32 %v1004, 4
        %v1006 = vand.u32 %v1004, 15
        %v1007 = vsub.s32 0, %v1006
        %v1008 = vsel %vm1002, %v1007, %v1006
        %vm1009 = vcmp.lt.s32.totalorder %v754, 0
        %v1010 = vsub.s32 0, %v754
        %v1011 = vsel %vm1009, %v1010, %v754
        %v1012 = vshrl.u32 %v1011, 4
        %v1013 = vand.u32 %v1011, 15
        %v1014 = vsub.s32 0, %v1013
        %v1015 = vsel %vm1009, %v1014, %v1013
        %vm1016 = vcmp.lt.s32.totalorder %v755, 0
        %v1017 = vsub.s32 0, %v755
        %v1018 = vsel %vm1016, %v1017, %v755
        %v1019 = vshrl.u32 %v1018, 4
        %v1020 = vand.u32 %v1018, 15
        %v1021 = vsub.s32 0, %v1020
        %v1022 = vsel %vm1016, %v1021, %v1020
        %vm1023 = vcmp.lt.s32.totalorder %v756, 0
        %v1024 = vsub.s32 0, %v756
        %v1025 = vsel %vm1023, %v1024, %v756
        %v1026 = vshrl.u32 %v1025, 4
        %v1027 = vand.u32 %v1025, 15
        %v1028 = vsub.s32 0, %v1027
        %v1029 = vsel %vm1023, %v1028, %v1027
        %vm1030 = vcmp.ne.s32.totalorder %v924, 0
        %vm1031 = vcmp.ne.s32.totalorder %v931, 0
        %vm1032 = vcmp.ne.s32.totalorder %v938, 0
        %vm1033 = vcmp.ne.s32.totalorder %v945, 0
        %vm1034 = vcmp.ne.s32.totalorder %v952, 0
        %vm1035 = vcmp.ne.s32.totalorder %v959, 0
        %vm1036 = vcmp.ne.s32.totalorder %v966, 0
        %vm1037 = vcmp.ne.s32.totalorder %v973, 0
        %vm1038 = vcmp.ne.s32.totalorder %v980, 0
        %vm1039 = vcmp.ne.s32.totalorder %v987, 0
        %vm1040 = vcmp.ne.s32.totalorder %v994, 0
        %vm1041 = vcmp.ne.s32.totalorder %v1001, 0
        %vm1042 = vcmp.ne.s32.totalorder %v1008, 0
        %vm1043 = vcmp.ne.s32.totalorder %v1015, 0
        %vm1044 = vcmp.ne.s32.totalorder %v1022, 0
        %vm1045 = vcmp.ne.s32.totalorder %v1029, 0
        %vm1046 = vcmp.lt.s32.totalorder %v924, 0
        %vm1047 = vcmp.lt.s32.totalorder %v931, 0
        %vm1048 = vcmp.lt.s32.totalorder %v938, 0
        %vm1049 = vcmp.lt.s32.totalorder %v945, 0
        %vm1050 = vcmp.lt.s32.totalorder %v952, 0
        %vm1051 = vcmp.lt.s32.totalorder %v959, 0
        %vm1052 = vcmp.lt.s32.totalorder %v966, 0
        %vm1053 = vcmp.lt.s32.totalorder %v973, 0
        %vm1054 = vcmp.lt.s32.totalorder %v980, 0
        %vm1055 = vcmp.lt.s32.totalorder %v987, 0
        %vm1056 = vcmp.lt.s32.totalorder %v994, 0
        %vm1057 = vcmp.lt.s32.totalorder %v1001, 0
        %vm1058 = vcmp.lt.s32.totalorder %v1008, 0
        %vm1059 = vcmp.lt.s32.totalorder %v1015, 0
        %vm1060 = vcmp.lt.s32.totalorder %v1022, 0
        %vm1061 = vcmp.lt.s32.totalorder %v1029, 0
        %vm1062 = vmand %vm1046, %vm1030
        %vm1063 = vmand %vm1047, %vm1031
        %vm1064 = vmand %vm1048, %vm1032
        %vm1065 = vmand %vm1049, %vm1033
        %vm1066 = vmand %vm1050, %vm1034
        %vm1067 = vmand %vm1051, %vm1035
        %vm1068 = vmand %vm1052, %vm1036
        %vm1069 = vmand %vm1053, %vm1037
        %vm1070 = vmand %vm1054, %vm1038
        %vm1071 = vmand %vm1055, %vm1039
        %vm1072 = vmand %vm1056, %vm1040
        %vm1073 = vmand %vm1057, %vm1041
        %vm1074 = vmand %vm1058, %vm1042
        %vm1075 = vmand %vm1059, %vm1043
        %vm1076 = vmand %vm1060, %vm1044
        %vm1077 = vmand %vm1061, %vm1045
        %v1078 = vadd.s32 %v924, 16
        %v1079 = vadd.s32 %v931, 16
        %v1080 = vadd.s32 %v938, 16
        %v1081 = vadd.s32 %v945, 16
        %v1082 = vadd.s32 %v952, 16
        %v1083 = vadd.s32 %v959, 16
        %v1084 = vadd.s32 %v966, 16
        %v1085 = vadd.s32 %v973, 16
        %v1086 = vadd.s32 %v980, 16
        %v1087 = vadd.s32 %v987, 16
        %v1088 = vadd.s32 %v994, 16
        %v1089 = vadd.s32 %v1001, 16
        %v1090 = vadd.s32 %v1008, 16
        %v1091 = vadd.s32 %v1015, 16
        %v1092 = vadd.s32 %v1022, 16
        %v1093 = vadd.s32 %v1029, 16
        %v1094 = vsel %vm1062, %v1078, %v924
        %v1095 = vsel %vm1063, %v1079, %v931
        %v1096 = vsel %vm1064, %v1080, %v938
        %v1097 = vsel %vm1065, %v1081, %v945
        %v1098 = vsel %vm1066, %v1082, %v952
        %v1099 = vsel %vm1067, %v1083, %v959
        %v1100 = vsel %vm1068, %v1084, %v966
        %v1101 = vsel %vm1069, %v1085, %v973
        %v1102 = vsel %vm1070, %v1086, %v980
        %v1103 = vsel %vm1071, %v1087, %v987
        %v1104 = vsel %vm1072, %v1088, %v994
        %v1105 = vsel %vm1073, %v1089, %v1001
        %v1106 = vsel %vm1074, %v1090, %v1008
        %v1107 = vsel %vm1075, %v1091, %v1015
        %v1108 = vsel %vm1076, %v1092, %v1022
        %v1109 = vsel %vm1077, %v1093, %v1029
        %vm1110 = vcmp.gt.s32.totalorder %v1094, 0
        %vm1111 = vcmp.gt.s32.totalorder %v1095, 0
        %vm1112 = vcmp.gt.s32.totalorder %v1096, 0
        %vm1113 = vcmp.gt.s32.totalorder %v1097, 0
        %vm1114 = vcmp.gt.s32.totalorder %v1098, 0
        %vm1115 = vcmp.gt.s32.totalorder %v1099, 0
        %vm1116 = vcmp.gt.s32.totalorder %v1100, 0
        %vm1117 = vcmp.gt.s32.totalorder %v1101, 0
        %vm1118 = vcmp.gt.s32.totalorder %v1102, 0
        %vm1119 = vcmp.gt.s32.totalorder %v1103, 0
        %vm1120 = vcmp.gt.s32.totalorder %v1104, 0
        %vm1121 = vcmp.gt.s32.totalorder %v1105, 0
        %vm1122 = vcmp.gt.s32.totalorder %v1106, 0
        %vm1123 = vcmp.gt.s32.totalorder %v1107, 0
        %vm1124 = vcmp.gt.s32.totalorder %v1108, 0
        %vm1125 = vcmp.gt.s32.totalorder %v1109, 0
        %vm1126 = vcmp.lt.s32.totalorder %v1094, 15
        %vm1127 = vcmp.lt.s32.totalorder %v1095, 15
        %vm1128 = vcmp.lt.s32.totalorder %v1096, 15
        %vm1129 = vcmp.lt.s32.totalorder %v1097, 15
        %vm1130 = vcmp.lt.s32.totalorder %v1098, 15
        %vm1131 = vcmp.lt.s32.totalorder %v1099, 15
        %vm1132 = vcmp.lt.s32.totalorder %v1100, 15
        %vm1133 = vcmp.lt.s32.totalorder %v1101, 15
        %vm1134 = vcmp.lt.s32.totalorder %v1102, 15
        %vm1135 = vcmp.lt.s32.totalorder %v1103, 15
        %vm1136 = vcmp.lt.s32.totalorder %v1104, 15
        %vm1137 = vcmp.lt.s32.totalorder %v1105, 15
        %vm1138 = vcmp.lt.s32.totalorder %v1106, 15
        %vm1139 = vcmp.lt.s32.totalorder %v1107, 15
        %vm1140 = vcmp.lt.s32.totalorder %v1108, 15
        %vm1141 = vcmp.lt.s32.totalorder %v1109, 15
        %v1142 = vsel %vm1110, 1, 0
        %v1143 = vsel %vm1111, 1, 0
        %v1144 = vsel %vm1112, 1, 0
        %v1145 = vsel %vm1113, 1, 0
        %v1146 = vsel %vm1114, 1, 0
        %v1147 = vsel %vm1115, 1, 0
        %v1148 = vsel %vm1116, 1, 0
        %v1149 = vsel %vm1117, 1, 0
        %v1150 = vsel %vm1118, 1, 0
        %v1151 = vsel %vm1119, 1, 0
        %v1152 = vsel %vm1120, 1, 0
        %v1153 = vsel %vm1121, 1, 0
        %v1154 = vsel %vm1122, 1, 0
        %v1155 = vsel %vm1123, 1, 0
        %v1156 = vsel %vm1124, 1, 0
        %v1157 = vsel %vm1125, 1, 0
        %vm1158 = vcmp.eq.s32.totalorder %v1142, 1
        %vm1159 = vcmp.eq.s32.totalorder %v1143, 1
        %vm1160 = vcmp.eq.s32.totalorder %v1144, 1
        %vm1161 = vcmp.eq.s32.totalorder %v1145, 1
        %vm1162 = vcmp.eq.s32.totalorder %v1146, 1
        %vm1163 = vcmp.eq.s32.totalorder %v1147, 1
        %vm1164 = vcmp.eq.s32.totalorder %v1148, 1
        %vm1165 = vcmp.eq.s32.totalorder %v1149, 1
        %vm1166 = vcmp.eq.s32.totalorder %v1150, 1
        %vm1167 = vcmp.eq.s32.totalorder %v1151, 1
        %vm1168 = vcmp.eq.s32.totalorder %v1152, 1
        %vm1169 = vcmp.eq.s32.totalorder %v1153, 1
        %vm1170 = vcmp.eq.s32.totalorder %v1154, 1
        %vm1171 = vcmp.eq.s32.totalorder %v1155, 1
        %vm1172 = vcmp.eq.s32.totalorder %v1156, 1
        %vm1173 = vcmp.eq.s32.totalorder %v1157, 1
        %vm1191 = vcmask 1040384
        %v1192 = vrot.slane %v896, 7
        %v1193 = vrot.slane %v897, 7
        %v1194 = vsel %vm1191, %v1192, %v1193
        %v1195 = vrot.slane %v898, 7
        %v1196 = vsel %vm1191, %v1193, %v1195
        %v1197 = vrot.slane %v899, 7
        %v1198 = vsel %vm1191, %v1195, %v1197
        %v1199 = vrot.slane %v900, 7
        %v1200 = vsel %vm1191, %v1197, %v1199
        %v1201 = vrot.slane %v901, 7
        %v1202 = vsel %vm1191, %v1199, %v1201
        %v1203 = vrot.slane %v902, 7
        %v1204 = vsel %vm1191, %v1201, %v1203
        %v1205 = vrot.slane %v903, 7
        %v1206 = vsel %vm1191, %v1203, %v1205
        %v1207 = vrot.slane %v904, 7
        %v1208 = vsel %vm1191, %v1205, %v1207
        %v1209 = vrot.slane %v905, 7
        %v1210 = vsel %vm1191, %v1207, %v1209
        %v1211 = vrot.slane %v906, 7
        %v1212 = vsel %vm1191, %v1209, %v1211
        %v1213 = vrot.slane %v907, 7
        %v1214 = vsel %vm1191, %v1211, %v1213
        %v1215 = vrot.slane %v908, 7
        %v1216 = vsel %vm1191, %v1213, %v1215
        %v1217 = vrot.slane %v909, 7
        %v1218 = vsel %vm1191, %v1215, %v1217
        %v1219 = vrot.slane %v910, 7
        %v1220 = vsel %vm1191, %v1217, %v1219
        %v1221 = vrot.slane %v911, 7
        %v1222 = vsel %vm1191, %v1219, %v1221
        %v1223 = vrot.slane %v912, 7
        %v1224 = vsel %vm1191, %v1221, %v1223
        %v1241 = vsel %vm1158, %v1194, 0.0
        %v1242 = vsel %vm1159, %v1196, 0.0
        %v1243 = vsel %vm1160, %v1198, 0.0
        %v1244 = vsel %vm1161, %v1200, 0.0
        %v1245 = vsel %vm1162, %v1202, 0.0
        %v1246 = vsel %vm1163, %v1204, 0.0
        %v1247 = vsel %vm1164, %v1206, 0.0
        %v1248 = vsel %vm1165, %v1208, 0.0
        %v1249 = vsel %vm1166, %v1210, 0.0
        %v1250 = vsel %vm1167, %v1212, 0.0
        %v1251 = vsel %vm1168, %v1214, 0.0
        %v1252 = vsel %vm1169, %v1216, 0.0
        %v1253 = vsel %vm1170, %v1218, 0.0
        %v1254 = vsel %vm1171, %v1220, 0.0
        %v1255 = vsel %vm1172, %v1222, 0.0
        %v1256 = vsel %vm1173, %v1224, 0.0
        %v1257 = vpack.c.bf16 %v1241, %v1241
        %v1258 = vpack.c.bf16 %v1242, %v1242
        %v1259 = vpack.c.bf16 %v1243, %v1243
        %v1260 = vpack.c.bf16 %v1244, %v1244
        %v1261 = vpack.c.bf16 %v1245, %v1245
        %v1262 = vpack.c.bf16 %v1246, %v1246
        %v1263 = vpack.c.bf16 %v1247, %v1247
        %v1264 = vpack.c.bf16 %v1248, %v1248
        %v1265 = vpack.c.bf16 %v1249, %v1249
        %v1266 = vpack.c.bf16 %v1250, %v1250
        %v1267 = vpack.c.bf16 %v1251, %v1251
        %v1268 = vpack.c.bf16 %v1252, %v1252
        %v1269 = vpack.c.bf16 %v1253, %v1253
        %v1270 = vpack.c.bf16 %v1254, %v1254
        %v1271 = vpack.c.bf16 %v1255, %v1255
        %v1272 = vpack.c.bf16 %v1256, %v1256
        %1273 = vst [vmem:[#allocation2] sm:$0xf] %v1257
        %1274 = vst [vmem:[#allocation2 + $0x24] sm:$0xf] %v1258
        %1275 = vst [vmem:[#allocation2 + $0x48] sm:$0xf] %v1259
        %1276 = vst [vmem:[#allocation2 + $0x6c] sm:$0xf] %v1260
        %1277 = vst [vmem:[#allocation2 + $0x90] sm:$0xf] %v1261
        %1278 = vst [vmem:[#allocation2 + $0xb4] sm:$0xf] %v1262
        %1279 = vst [vmem:[#allocation2 + $0xd8] sm:$0xf] %v1263
        %1280 = vst [vmem:[#allocation2 + $0xfc] sm:$0xf] %v1264
        %1281 = vst [vmem:[#allocation2 + $0x120] sm:$0xf] %v1265
        %1282 = vst [vmem:[#allocation2 + $0x144] sm:$0xf] %v1266
        %1283 = vst [vmem:[#allocation2 + $0x168] sm:$0xf] %v1267
        %1284 = vst [vmem:[#allocation2 + $0x18c] sm:$0xf] %v1268
        %1285 = vst [vmem:[#allocation2 + $0x1b0] sm:$0xf] %v1269
        %1286 = vst [vmem:[#allocation2 + $0x1d4] sm:$0xf] %v1270
        %1287 = vst [vmem:[#allocation2 + $0x1f8] sm:$0xf] %v1271
        %1288 = vst [vmem:[#allocation2 + $0x21c] sm:$0xf] %v1272
        %v1289 = vpack.c.bf16 %v897, %v897
        %v1290 = vpack.c.bf16 %v898, %v898
        %v1291 = vpack.c.bf16 %v899, %v899
        %v1292 = vpack.c.bf16 %v900, %v900
        %v1293 = vpack.c.bf16 %v901, %v901
        %v1294 = vpack.c.bf16 %v902, %v902
        %v1295 = vpack.c.bf16 %v903, %v903
        %v1296 = vpack.c.bf16 %v904, %v904
        %v1297 = vpack.c.bf16 %v905, %v905
        %v1298 = vpack.c.bf16 %v906, %v906
        %v1299 = vpack.c.bf16 %v907, %v907
        %v1300 = vpack.c.bf16 %v908, %v908
        %v1301 = vpack.c.bf16 %v909, %v909
        %v1302 = vpack.c.bf16 %v910, %v910
        %v1303 = vpack.c.bf16 %v911, %v911
        %v1304 = vpack.c.bf16 %v912, %v912
        %1305 = vst [vmem:[#allocation2 + $0x4] sm:$0xf] %v1289
        %1306 = vst [vmem:[#allocation2 + $0x28] sm:$0xf] %v1290
        %1307 = vst [vmem:[#allocation2 + $0x4c] sm:$0xf] %v1291
        %1308 = vst [vmem:[#allocation2 + $0x70] sm:$0xf] %v1292
        %1309 = vst [vmem:[#allocation2 + $0x94] sm:$0xf] %v1293
        %1310 = vst [vmem:[#allocation2 + $0xb8] sm:$0xf] %v1294
        %1311 = vst [vmem:[#allocation2 + $0xdc] sm:$0xf] %v1295
        %1312 = vst [vmem:[#allocation2 + $0x100] sm:$0xf] %v1296
        %1313 = vst [vmem:[#allocation2 + $0x124] sm:$0xf] %v1297
        %1314 = vst [vmem:[#allocation2 + $0x148] sm:$0xf] %v1298
        %1315 = vst [vmem:[#allocation2 + $0x16c] sm:$0xf] %v1299
        %1316 = vst [vmem:[#allocation2 + $0x190] sm:$0xf] %v1300
        %1317 = vst [vmem:[#allocation2 + $0x1b4] sm:$0xf] %v1301
        %1318 = vst [vmem:[#allocation2 + $0x1d8] sm:$0xf] %v1302
        %1319 = vst [vmem:[#allocation2 + $0x1fc] sm:$0xf] %v1303
        %1320 = vst [vmem:[#allocation2 + $0x220] sm:$0xf] %v1304
        %v1321 = vsel %vm1126, 1, 0
        %v1322 = vsel %vm1127, 1, 0
        %v1323 = vsel %vm1128, 1, 0
        %v1324 = vsel %vm1129, 1, 0
        %v1325 = vsel %vm1130, 1, 0
        %v1326 = vsel %vm1131, 1, 0
        %v1327 = vsel %vm1132, 1, 0
        %v1328 = vsel %vm1133, 1, 0
        %v1329 = vsel %vm1134, 1, 0
        %v1330 = vsel %vm1135, 1, 0
        %v1331 = vsel %vm1136, 1, 0
        %v1332 = vsel %vm1137, 1, 0
        %v1333 = vsel %vm1138, 1, 0
        %v1334 = vsel %vm1139, 1, 0
        %v1335 = vsel %vm1140, 1, 0
        %v1336 = vsel %vm1141, 1, 0
        %vm1337 = vcmp.eq.s32.totalorder %v1321, 1
        %vm1338 = vcmp.eq.s32.totalorder %v1322, 1
        %vm1339 = vcmp.eq.s32.totalorder %v1323, 1
        %vm1340 = vcmp.eq.s32.totalorder %v1324, 1
        %vm1341 = vcmp.eq.s32.totalorder %v1325, 1
        %vm1342 = vcmp.eq.s32.totalorder %v1326, 1
        %vm1343 = vcmp.eq.s32.totalorder %v1327, 1
        %vm1344 = vcmp.eq.s32.totalorder %v1328, 1
        %vm1345 = vcmp.eq.s32.totalorder %v1329, 1
        %vm1346 = vcmp.eq.s32.totalorder %v1330, 1
        %vm1347 = vcmp.eq.s32.totalorder %v1331, 1
        %vm1348 = vcmp.eq.s32.totalorder %v1332, 1
        %vm1349 = vcmp.eq.s32.totalorder %v1333, 1
        %vm1350 = vcmp.eq.s32.totalorder %v1334, 1
        %vm1351 = vcmp.eq.s32.totalorder %v1335, 1
        %vm1352 = vcmp.eq.s32.totalorder %v1336, 1
        %vm1354 = vcmask 1046528
        %v1355 = vrot.slane %v897, 1
        %v1356 = vrot.slane %v898, 1
        %v1357 = vsel %vm1354, %v1355, %v1356
        %v1358 = vrot.slane %v899, 1
        %v1359 = vsel %vm1354, %v1356, %v1358
        %v1360 = vrot.slane %v900, 1
        %v1361 = vsel %vm1354, %v1358, %v1360
        %v1362 = vrot.slane %v901, 1
        %v1363 = vsel %vm1354, %v1360, %v1362
        %v1364 = vrot.slane %v902, 1
        %v1365 = vsel %vm1354, %v1362, %v1364
        %v1366 = vrot.slane %v903, 1
        %v1367 = vsel %vm1354, %v1364, %v1366
        %v1368 = vrot.slane %v904, 1
        %v1369 = vsel %vm1354, %v1366, %v1368
        %v1370 = vrot.slane %v905, 1
        %v1371 = vsel %vm1354, %v1368, %v1370
        %v1372 = vrot.slane %v906, 1
        %v1373 = vsel %vm1354, %v1370, %v1372
        %v1374 = vrot.slane %v907, 1
        %v1375 = vsel %vm1354, %v1372, %v1374
        %v1376 = vrot.slane %v908, 1
        %v1377 = vsel %vm1354, %v1374, %v1376
        %v1378 = vrot.slane %v909, 1
        %v1379 = vsel %vm1354, %v1376, %v1378
        %v1380 = vrot.slane %v910, 1
        %v1381 = vsel %vm1354, %v1378, %v1380
        %v1382 = vrot.slane %v911, 1
        %v1383 = vsel %vm1354, %v1380, %v1382
        %v1384 = vrot.slane %v912, 1
        %v1385 = vsel %vm1354, %v1382, %v1384
        %v1386 = vrot.slane %v913, 1
        %v1387 = vsel %vm1354, %v1384, %v1386
        %v1404 = vsel %vm1337, %v1357, 0.0
        %v1405 = vsel %vm1338, %v1359, 0.0
        %v1406 = vsel %vm1339, %v1361, 0.0
        %v1407 = vsel %vm1340, %v1363, 0.0
        %v1408 = vsel %vm1341, %v1365, 0.0
        %v1409 = vsel %vm1342, %v1367, 0.0
        %v1410 = vsel %vm1343, %v1369, 0.0
        %v1411 = vsel %vm1344, %v1371, 0.0
        %v1412 = vsel %vm1345, %v1373, 0.0
        %v1413 = vsel %vm1346, %v1375, 0.0
        %v1414 = vsel %vm1347, %v1377, 0.0
        %v1415 = vsel %vm1348, %v1379, 0.0
        %v1416 = vsel %vm1349, %v1381, 0.0
        %v1417 = vsel %vm1350, %v1383, 0.0
        %v1418 = vsel %vm1351, %v1385, 0.0
        %v1419 = vsel %vm1352, %v1387, 0.0
        %v1420 = vpack.c.bf16 %v1404, %v1404
        %v1421 = vpack.c.bf16 %v1405, %v1405
        %v1422 = vpack.c.bf16 %v1406, %v1406
        %v1423 = vpack.c.bf16 %v1407, %v1407
        %v1424 = vpack.c.bf16 %v1408, %v1408
        %v1425 = vpack.c.bf16 %v1409, %v1409
        %v1426 = vpack.c.bf16 %v1410, %v1410
        %v1427 = vpack.c.bf16 %v1411, %v1411
        %v1428 = vpack.c.bf16 %v1412, %v1412
        %v1429 = vpack.c.bf16 %v1413, %v1413
        %v1430 = vpack.c.bf16 %v1414, %v1414
        %v1431 = vpack.c.bf16 %v1415, %v1415
        %v1432 = vpack.c.bf16 %v1416, %v1416
        %v1433 = vpack.c.bf16 %v1417, %v1417
        %v1434 = vpack.c.bf16 %v1418, %v1418
        %v1435 = vpack.c.bf16 %v1419, %v1419
        %1436 = vst [vmem:[#allocation2 + $0x8] sm:$0xf] %v1420
        %1437 = vst [vmem:[#allocation2 + $0x2c] sm:$0xf] %v1421
        %1438 = vst [vmem:[#allocation2 + $0x50] sm:$0xf] %v1422
        %1439 = vst [vmem:[#allocation2 + $0x74] sm:$0xf] %v1423
        %1440 = vst [vmem:[#allocation2 + $0x98] sm:$0xf] %v1424
        %1441 = vst [vmem:[#allocation2 + $0xbc] sm:$0xf] %v1425
        %1442 = vst [vmem:[#allocation2 + $0xe0] sm:$0xf] %v1426
        %1443 = vst [vmem:[#allocation2 + $0x104] sm:$0xf] %v1427
        %1444 = vst [vmem:[#allocation2 + $0x128] sm:$0xf] %v1428
        %1445 = vst [vmem:[#allocation2 + $0x14c] sm:$0xf] %v1429
        %1446 = vst [vmem:[#allocation2 + $0x170] sm:$0xf] %v1430
        %1447 = vst [vmem:[#allocation2 + $0x194] sm:$0xf] %v1431
        %1448 = vst [vmem:[#allocation2 + $0x1b8] sm:$0xf] %v1432
        %1449 = vst [vmem:[#allocation2 + $0x1dc] sm:$0xf] %v1433
        %1450 = vst [vmem:[#allocation2 + $0x200] sm:$0xf] %v1434
        %1451 = vst [vmem:[#allocation2 + $0x224] sm:$0xf] %v1435
        %v1453 = vrot.slane %v913, 7
        %v1454 = vsel %vm1191, %v1223, %v1453
        %v1455 = vrot.slane %v914, 7
        %v1456 = vsel %vm1191, %v1453, %v1455
        %v1459 = vsel %vm1158, %v1198, 0.0
        %v1460 = vsel %vm1159, %v1200, 0.0
        %v1461 = vsel %vm1160, %v1202, 0.0
        %v1462 = vsel %vm1161, %v1204, 0.0
        %v1463 = vsel %vm1162, %v1206, 0.0
        %v1464 = vsel %vm1163, %v1208, 0.0
        %v1465 = vsel %vm1164, %v1210, 0.0
        %v1466 = vsel %vm1165, %v1212, 0.0
        %v1467 = vsel %vm1166, %v1214, 0.0
        %v1468 = vsel %vm1167, %v1216, 0.0
        %v1469 = vsel %vm1168, %v1218, 0.0
        %v1470 = vsel %vm1169, %v1220, 0.0
        %v1471 = vsel %vm1170, %v1222, 0.0
        %v1472 = vsel %vm1171, %v1224, 0.0
        %v1473 = vsel %vm1172, %v1454, 0.0
        %v1474 = vsel %vm1173, %v1456, 0.0
        %v1475 = vpack.c.bf16 %v1459, %v1459
        %v1476 = vpack.c.bf16 %v1460, %v1460
        %v1477 = vpack.c.bf16 %v1461, %v1461
        %v1478 = vpack.c.bf16 %v1462, %v1462
        %v1479 = vpack.c.bf16 %v1463, %v1463
        %v1480 = vpack.c.bf16 %v1464, %v1464
        %v1481 = vpack.c.bf16 %v1465, %v1465
        %v1482 = vpack.c.bf16 %v1466, %v1466
        %v1483 = vpack.c.bf16 %v1467, %v1467
        %v1484 = vpack.c.bf16 %v1468, %v1468
        %v1485 = vpack.c.bf16 %v1469, %v1469
        %v1486 = vpack.c.bf16 %v1470, %v1470
        %v1487 = vpack.c.bf16 %v1471, %v1471
        %v1488 = vpack.c.bf16 %v1472, %v1472
        %v1489 = vpack.c.bf16 %v1473, %v1473
        %v1490 = vpack.c.bf16 %v1474, %v1474
        %1491 = vst [vmem:[#allocation2 + $0xc] sm:$0xf] %v1475
        %1492 = vst [vmem:[#allocation2 + $0x30] sm:$0xf] %v1476
        %1493 = vst [vmem:[#allocation2 + $0x54] sm:$0xf] %v1477
        %1494 = vst [vmem:[#allocation2 + $0x78] sm:$0xf] %v1478
        %1495 = vst [vmem:[#allocation2 + $0x9c] sm:$0xf] %v1479
        %1496 = vst [vmem:[#allocation2 + $0xc0] sm:$0xf] %v1480
        %1497 = vst [vmem:[#allocation2 + $0xe4] sm:$0xf] %v1481
        %1498 = vst [vmem:[#allocation2 + $0x108] sm:$0xf] %v1482
        %1499 = vst [vmem:[#allocation2 + $0x12c] sm:$0xf] %v1483
        %1500 = vst [vmem:[#allocation2 + $0x150] sm:$0xf] %v1484
        %1501 = vst [vmem:[#allocation2 + $0x174] sm:$0xf] %v1485
        %1502 = vst [vmem:[#allocation2 + $0x198] sm:$0xf] %v1486
        %1503 = vst [vmem:[#allocation2 + $0x1bc] sm:$0xf] %v1487
        %1504 = vst [vmem:[#allocation2 + $0x1e0] sm:$0xf] %v1488
        %1505 = vst [vmem:[#allocation2 + $0x204] sm:$0xf] %v1489
        %1506 = vst [vmem:[#allocation2 + $0x228] sm:$0xf] %v1490
        %v1507 = vpack.c.bf16 %v913, %v913
        %v1508 = vpack.c.bf16 %v914, %v914
        %1509 = vst [vmem:[#allocation2 + $0x10] sm:$0xf] %v1291
        %1510 = vst [vmem:[#allocation2 + $0x34] sm:$0xf] %v1292
        %1511 = vst [vmem:[#allocation2 + $0x58] sm:$0xf] %v1293
        %1512 = vst [vmem:[#allocation2 + $0x7c] sm:$0xf] %v1294
        %1513 = vst [vmem:[#allocation2 + $0xa0] sm:$0xf] %v1295
        %1514 = vst [vmem:[#allocation2 + $0xc4] sm:$0xf] %v1296
        %1515 = vst [vmem:[#allocation2 + $0xe8] sm:$0xf] %v1297
        %1516 = vst [vmem:[#allocation2 + $0x10c] sm:$0xf] %v1298
        %1517 = vst [vmem:[#allocation2 + $0x130] sm:$0xf] %v1299
        %1518 = vst [vmem:[#allocation2 + $0x154] sm:$0xf] %v1300
        %1519 = vst [vmem:[#allocation2 + $0x178] sm:$0xf] %v1301
        %1520 = vst [vmem:[#allocation2 + $0x19c] sm:$0xf] %v1302
        %1521 = vst [vmem:[#allocation2 + $0x1c0] sm:$0xf] %v1303
        %1522 = vst [vmem:[#allocation2 + $0x1e4] sm:$0xf] %v1304
        %1523 = vst [vmem:[#allocation2 + $0x208] sm:$0xf] %v1507
        %1524 = vst [vmem:[#allocation2 + $0x22c] sm:$0xf] %v1508
        %v1526 = vrot.slane %v914, 1
        %v1527 = vsel %vm1354, %v1386, %v1526
        %v1528 = vrot.slane %v915, 1
        %v1529 = vsel %vm1354, %v1526, %v1528
        %v1532 = vsel %vm1337, %v1361, 0.0
        %v1533 = vsel %vm1338, %v1363, 0.0
        %v1534 = vsel %vm1339, %v1365, 0.0
        %v1535 = vsel %vm1340, %v1367, 0.0
        %v1536 = vsel %vm1341, %v1369, 0.0
        %v1537 = vsel %vm1342, %v1371, 0.0
        %v1538 = vsel %vm1343, %v1373, 0.0
        %v1539 = vsel %vm1344, %v1375, 0.0
        %v1540 = vsel %vm1345, %v1377, 0.0
        %v1541 = vsel %vm1346, %v1379, 0.0
        %v1542 = vsel %vm1347, %v1381, 0.0
        %v1543 = vsel %vm1348, %v1383, 0.0
        %v1544 = vsel %vm1349, %v1385, 0.0
        %v1545 = vsel %vm1350, %v1387, 0.0
        %v1546 = vsel %vm1351, %v1527, 0.0
        %v1547 = vsel %vm1352, %v1529, 0.0
        %v1548 = vpack.c.bf16 %v1532, %v1532
        %v1549 = vpack.c.bf16 %v1533, %v1533
        %v1550 = vpack.c.bf16 %v1534, %v1534
        %v1551 = vpack.c.bf16 %v1535, %v1535
        %v1552 = vpack.c.bf16 %v1536, %v1536
        %v1553 = vpack.c.bf16 %v1537, %v1537
        %v1554 = vpack.c.bf16 %v1538, %v1538
        %v1555 = vpack.c.bf16 %v1539, %v1539
        %v1556 = vpack.c.bf16 %v1540, %v1540
        %v1557 = vpack.c.bf16 %v1541, %v1541
        %v1558 = vpack.c.bf16 %v1542, %v1542
        %v1559 = vpack.c.bf16 %v1543, %v1543
        %v1560 = vpack.c.bf16 %v1544, %v1544
        %v1561 = vpack.c.bf16 %v1545, %v1545
        %v1562 = vpack.c.bf16 %v1546, %v1546
        %v1563 = vpack.c.bf16 %v1547, %v1547
        %1564 = vst [vmem:[#allocation2 + $0x14] sm:$0xf] %v1548
        %1565 = vst [vmem:[#allocation2 + $0x38] sm:$0xf] %v1549
        %1566 = vst [vmem:[#allocation2 + $0x5c] sm:$0xf] %v1550
        %1567 = vst [vmem:[#allocation2 + $0x80] sm:$0xf] %v1551
        %1568 = vst [vmem:[#allocation2 + $0xa4] sm:$0xf] %v1552
        %1569 = vst [vmem:[#allocation2 + $0xc8] sm:$0xf] %v1553
        %1570 = vst [vmem:[#allocation2 + $0xec] sm:$0xf] %v1554
        %1571 = vst [vmem:[#allocation2 + $0x110] sm:$0xf] %v1555
        %1572 = vst [vmem:[#allocation2 + $0x134] sm:$0xf] %v1556
        %1573 = vst [vmem:[#allocation2 + $0x158] sm:$0xf] %v1557
        %1574 = vst [vmem:[#allocation2 + $0x17c] sm:$0xf] %v1558
        %1575 = vst [vmem:[#allocation2 + $0x1a0] sm:$0xf] %v1559
        %1576 = vst [vmem:[#allocation2 + $0x1c4] sm:$0xf] %v1560
        %1577 = vst [vmem:[#allocation2 + $0x1e8] sm:$0xf] %v1561
        %1578 = vst [vmem:[#allocation2 + $0x20c] sm:$0xf] %v1562
        %1579 = vst [vmem:[#allocation2 + $0x230] sm:$0xf] %v1563
        %v1581 = vrot.slane %v915, 7
        %v1582 = vsel %vm1191, %v1455, %v1581
        %v1583 = vrot.slane %v916, 7
        %v1584 = vsel %vm1191, %v1581, %v1583
        %v1587 = vsel %vm1158, %v1202, 0.0
        %v1588 = vsel %vm1159, %v1204, 0.0
        %v1589 = vsel %vm1160, %v1206, 0.0
        %v1590 = vsel %vm1161, %v1208, 0.0
        %v1591 = vsel %vm1162, %v1210, 0.0
        %v1592 = vsel %vm1163, %v1212, 0.0
        %v1593 = vsel %vm1164, %v1214, 0.0
        %v1594 = vsel %vm1165, %v1216, 0.0
        %v1595 = vsel %vm1166, %v1218, 0.0
        %v1596 = vsel %vm1167, %v1220, 0.0
        %v1597 = vsel %vm1168, %v1222, 0.0
        %v1598 = vsel %vm1169, %v1224, 0.0
        %v1599 = vsel %vm1170, %v1454, 0.0
        %v1600 = vsel %vm1171, %v1456, 0.0
        %v1601 = vsel %vm1172, %v1582, 0.0
        %v1602 = vsel %vm1173, %v1584, 0.0
        %v1603 = vpack.c.bf16 %v1587, %v1587
        %v1604 = vpack.c.bf16 %v1588, %v1588
        %v1605 = vpack.c.bf16 %v1589, %v1589
        %v1606 = vpack.c.bf16 %v1590, %v1590
        %v1607 = vpack.c.bf16 %v1591, %v1591
        %v1608 = vpack.c.bf16 %v1592, %v1592
        %v1609 = vpack.c.bf16 %v1593, %v1593
        %v1610 = vpack.c.bf16 %v1594, %v1594
        %v1611 = vpack.c.bf16 %v1595, %v1595
        %v1612 = vpack.c.bf16 %v1596, %v1596
        %v1613 = vpack.c.bf16 %v1597, %v1597
        %v1614 = vpack.c.bf16 %v1598, %v1598
        %v1615 = vpack.c.bf16 %v1599, %v1599
        %v1616 = vpack.c.bf16 %v1600, %v1600
        %v1617 = vpack.c.bf16 %v1601, %v1601
        %v1618 = vpack.c.bf16 %v1602, %v1602
        %1619 = vst [vmem:[#allocation2 + $0x18] sm:$0xf] %v1603
        %1620 = vst [vmem:[#allocation2 + $0x3c] sm:$0xf] %v1604
        %1621 = vst [vmem:[#allocation2 + $0x60] sm:$0xf] %v1605
        %1622 = vst [vmem:[#allocation2 + $0x84] sm:$0xf] %v1606
        %1623 = vst [vmem:[#allocation2 + $0xa8] sm:$0xf] %v1607
        %1624 = vst [vmem:[#allocation2 + $0xcc] sm:$0xf] %v1608
        %1625 = vst [vmem:[#allocation2 + $0xf0] sm:$0xf] %v1609
        %1626 = vst [vmem:[#allocation2 + $0x114] sm:$0xf] %v1610
        %1627 = vst [vmem:[#allocation2 + $0x138] sm:$0xf] %v1611
        %1628 = vst [vmem:[#allocation2 + $0x15c] sm:$0xf] %v1612
        %1629 = vst [vmem:[#allocation2 + $0x180] sm:$0xf] %v1613
        %1630 = vst [vmem:[#allocation2 + $0x1a4] sm:$0xf] %v1614
        %1631 = vst [vmem:[#allocation2 + $0x1c8] sm:$0xf] %v1615
        %1632 = vst [vmem:[#allocation2 + $0x1ec] sm:$0xf] %v1616
        %1633 = vst [vmem:[#allocation2 + $0x210] sm:$0xf] %v1617
        %1634 = vst [vmem:[#allocation2 + $0x234] sm:$0xf] %v1618
        %v1635 = vpack.c.bf16 %v915, %v915
        %v1636 = vpack.c.bf16 %v916, %v916
        %1637 = vst [vmem:[#allocation2 + $0x1c] sm:$0xf] %v1293
        %1638 = vst [vmem:[#allocation2 + $0x40] sm:$0xf] %v1294
        %1639 = vst [vmem:[#allocation2 + $0x64] sm:$0xf] %v1295
        %1640 = vst [vmem:[#allocation2 + $0x88] sm:$0xf] %v1296
        %1641 = vst [vmem:[#allocation2 + $0xac] sm:$0xf] %v1297
        %1642 = vst [vmem:[#allocation2 + $0xd0] sm:$0xf] %v1298
        %1643 = vst [vmem:[#allocation2 + $0xf4] sm:$0xf] %v1299
        %1644 = vst [vmem:[#allocation2 + $0x118] sm:$0xf] %v1300
        %1645 = vst [vmem:[#allocation2 + $0x13c] sm:$0xf] %v1301
        %1646 = vst [vmem:[#allocation2 + $0x160] sm:$0xf] %v1302
        %1647 = vst [vmem:[#allocation2 + $0x184] sm:$0xf] %v1303
        %1648 = vst [vmem:[#allocation2 + $0x1a8] sm:$0xf] %v1304
        %1649 = vst [vmem:[#allocation2 + $0x1cc] sm:$0xf] %v1507
        %1650 = vst [vmem:[#allocation2 + $0x1f0] sm:$0xf] %v1508
        %1651 = vst [vmem:[#allocation2 + $0x214] sm:$0xf] %v1635
        %1652 = vst [vmem:[#allocation2 + $0x238] sm:$0xf] %v1636
        %v1654 = vrot.slane %v916, 1
        %v1655 = vsel %vm1354, %v1528, %v1654
        %v1656 = vrot.slane %v917, 1
        %v1657 = vsel %vm1354, %v1654, %v1656
        %v1660 = vsel %vm1337, %v1365, 0.0
        %v1661 = vsel %vm1338, %v1367, 0.0
        %v1662 = vsel %vm1339, %v1369, 0.0
        %v1663 = vsel %vm1340, %v1371, 0.0
        %v1664 = vsel %vm1341, %v1373, 0.0
        %v1665 = vsel %vm1342, %v1375, 0.0
        %v1666 = vsel %vm1343, %v1377, 0.0
        %v1667 = vsel %vm1344, %v1379, 0.0
        %v1668 = vsel %vm1345, %v1381, 0.0
        %v1669 = vsel %vm1346, %v1383, 0.0
        %v1670 = vsel %vm1347, %v1385, 0.0
        %v1671 = vsel %vm1348, %v1387, 0.0
        %v1672 = vsel %vm1349, %v1527, 0.0
        %v1673 = vsel %vm1350, %v1529, 0.0
        %v1674 = vsel %vm1351, %v1655, 0.0
        %v1675 = vsel %vm1352, %v1657, 0.0
        %v1676 = vpack.c.bf16 %v1660, %v1660
        %v1677 = vpack.c.bf16 %v1661, %v1661
        %v1678 = vpack.c.bf16 %v1662, %v1662
        %v1679 = vpack.c.bf16 %v1663, %v1663
        %v1680 = vpack.c.bf16 %v1664, %v1664
        %v1681 = vpack.c.bf16 %v1665, %v1665
        %v1682 = vpack.c.bf16 %v1666, %v1666
        %v1683 = vpack.c.bf16 %v1667, %v1667
        %v1684 = vpack.c.bf16 %v1668, %v1668
        %v1685 = vpack.c.bf16 %v1669, %v1669
        %v1686 = vpack.c.bf16 %v1670, %v1670
        %v1687 = vpack.c.bf16 %v1671, %v1671
        %v1688 = vpack.c.bf16 %v1672, %v1672
        %v1689 = vpack.c.bf16 %v1673, %v1673
        %v1690 = vpack.c.bf16 %v1674, %v1674
        %v1691 = vpack.c.bf16 %v1675, %v1675
        %1692 = vst [vmem:[#allocation2 + $0x20] sm:$0xf] %v1676
        %1693 = vst [vmem:[#allocation2 + $0x44] sm:$0xf] %v1677
        %1694 = vst [vmem:[#allocation2 + $0x68] sm:$0xf] %v1678
        %1695 = vst [vmem:[#allocation2 + $0x8c] sm:$0xf] %v1679
        %1696 = vst [vmem:[#allocation2 + $0xb0] sm:$0xf] %v1680
        %1697 = vst [vmem:[#allocation2 + $0xd4] sm:$0xf] %v1681
        %1698 = vst [vmem:[#allocation2 + $0xf8] sm:$0xf] %v1682
        %1699 = vst [vmem:[#allocation2 + $0x11c] sm:$0xf] %v1683
        %1700 = vst [vmem:[#allocation2 + $0x140] sm:$0xf] %v1684
        %1701 = vst [vmem:[#allocation2 + $0x164] sm:$0xf] %v1685
        %1702 = vst [vmem:[#allocation2 + $0x188] sm:$0xf] %v1686
        %1703 = vst [vmem:[#allocation2 + $0x1ac] sm:$0xf] %v1687
        %1704 = vst [vmem:[#allocation2 + $0x1d0] sm:$0xf] %v1688
        %1705 = vst [vmem:[#allocation2 + $0x1f4] sm:$0xf] %v1689
        %1706 = vst [vmem:[#allocation2 + $0x218] sm:$0xf] %v1690
        %1707 = vst [vmem:[#allocation2 + $0x23c] sm:$0xf] %v1691
        %v1708 = vld [vmem:[#allocation2] sm:$0xff]
        %v1709 = vld [vmem:[#allocation2 + $0x8] sm:$0xff]
        %v1710 = vld [vmem:[#allocation2 + $0x10] sm:$0xff]
        %v1711 = vld [vmem:[#allocation2 + $0x18] sm:$0xff]
        %v1712 = vld [vmem:[#allocation2 + $0x20] sm:$0xf]
        %v1713 = vld [vmem:[#allocation2 + $0x24] sm:$0xff]
        %v1714 = vld [vmem:[#allocation2 + $0x2c] sm:$0xff]
        %v1715 = vld [vmem:[#allocation2 + $0x34] sm:$0xff]
        %v1716 = vld [vmem:[#allocation2 + $0x3c] sm:$0xff]
        %v1717 = vld [vmem:[#allocation2 + $0x44] sm:$0xf]
        %v1718 = vld [vmem:[#allocation2 + $0x48] sm:$0xff]
        %v1719 = vld [vmem:[#allocation2 + $0x50] sm:$0xff]
        %v1720 = vld [vmem:[#allocation2 + $0x58] sm:$0xff]
        %v1721 = vld [vmem:[#allocation2 + $0x60] sm:$0xff]
        %v1722 = vld [vmem:[#allocation2 + $0x68] sm:$0xf]
        %v1723 = vld [vmem:[#allocation2 + $0x6c] sm:$0xff]
        %v1724 = vld [vmem:[#allocation2 + $0x74] sm:$0xff]
        %v1725 = vld [vmem:[#allocation2 + $0x7c] sm:$0xff]
        %v1726 = vld [vmem:[#allocation2 + $0x84] sm:$0xff]
        %v1727 = vld [vmem:[#allocation2 + $0x8c] sm:$0xf]
        %v1728 = vld [vmem:[#allocation2 + $0x90] sm:$0xff]
        %v1729 = vld [vmem:[#allocation2 + $0x98] sm:$0xff]
        %v1730 = vld [vmem:[#allocation2 + $0xa0] sm:$0xff]
        %v1731 = vld [vmem:[#allocation2 + $0xa8] sm:$0xff]
        %v1732 = vld [vmem:[#allocation2 + $0xb0] sm:$0xf]
        %v1733 = vld [vmem:[#allocation2 + $0xb4] sm:$0xff]
        %v1734 = vld [vmem:[#allocation2 + $0xbc] sm:$0xff]
        %v1735 = vld [vmem:[#allocation2 + $0xc4] sm:$0xff]
        %v1736 = vld [vmem:[#allocation2 + $0xcc] sm:$0xff]
        %v1737 = vld [vmem:[#allocation2 + $0xd4] sm:$0xf]
        %v1738 = vld [vmem:[#allocation2 + $0xd8] sm:$0xff]
        %v1739 = vld [vmem:[#allocation2 + $0xe0] sm:$0xff]
        %v1740 = vld [vmem:[#allocation2 + $0xe8] sm:$0xff]
        %v1741 = vld [vmem:[#allocation2 + $0xf0] sm:$0xff]
        %v1742 = vld [vmem:[#allocation2 + $0xf8] sm:$0xf]
        %v1743 = vld [vmem:[#allocation2 + $0xfc] sm:$0xff]
        %v1744 = vld [vmem:[#allocation2 + $0x104] sm:$0xff]
        %v1745 = vld [vmem:[#allocation2 + $0x10c] sm:$0xff]
        %v1746 = vld [vmem:[#allocation2 + $0x114] sm:$0xff]
        %v1747 = vld [vmem:[#allocation2 + $0x11c] sm:$0xf]
        %v1748 = vld [vmem:[#allocation2 + $0x120] sm:$0xff]
        %v1749 = vld [vmem:[#allocation2 + $0x128] sm:$0xff]
        %v1750 = vld [vmem:[#allocation2 + $0x130] sm:$0xff]
        %v1751 = vld [vmem:[#allocation2 + $0x138] sm:$0xff]
        %v1752 = vld [vmem:[#allocation2 + $0x140] sm:$0xf]
        %v1753 = vld [vmem:[#allocation2 + $0x144] sm:$0xff]
        %v1754 = vld [vmem:[#allocation2 + $0x14c] sm:$0xff]
        %v1755 = vld [vmem:[#allocation2 + $0x154] sm:$0xff]
        %v1756 = vld [vmem:[#allocation2 + $0x15c] sm:$0xff]
        %v1757 = vld [vmem:[#allocation2 + $0x164] sm:$0xf]
        %v1758 = vld [vmem:[#allocation2 + $0x168] sm:$0xff]
        %v1759 = vld [vmem:[#allocation2 + $0x170] sm:$0xff]
        %v1760 = vld [vmem:[#allocation2 + $0x178] sm:$0xff]
        %v1761 = vld [vmem:[#allocation2 + $0x180] sm:$0xff]
        %v1762 = vld [vmem:[#allocation2 + $0x188] sm:$0xf]
        %v1763 = vld [vmem:[#allocation2 + $0x18c] sm:$0xff]
        %v1764 = vld [vmem:[#allocation2 + $0x194] sm:$0xff]
        %v1765 = vld [vmem:[#allocation2 + $0x19c] sm:$0xff]
        %v1766 = vld [vmem:[#allocation2 + $0x1a4] sm:$0xff]
        %v1767 = vld [vmem:[#allocation2 + $0x1ac] sm:$0xf]
        %v1768 = vld [vmem:[#allocation2 + $0x1b0] sm:$0xff]
        %v1769 = vld [vmem:[#allocation2 + $0x1b8] sm:$0xff]
        %v1770 = vld [vmem:[#allocation2 + $0x1c0] sm:$0xff]
        %v1771 = vld [vmem:[#allocation2 + $0x1c8] sm:$0xff]
        %v1772 = vld [vmem:[#allocation2 + $0x1d0] sm:$0xf]
        %v1773 = vld [vmem:[#allocation2 + $0x1d4] sm:$0xff]
        %v1774 = vld [vmem:[#allocation2 + $0x1dc] sm:$0xff]
        %v1775 = vld [vmem:[#allocation2 + $0x1e4] sm:$0xff]
        %v1776 = vld [vmem:[#allocation2 + $0x1ec] sm:$0xff]
        %v1777 = vld [vmem:[#allocation2 + $0x1f4] sm:$0xf]
        %v1778 = vld [vmem:[#allocation2 + $0x1f8] sm:$0xff]
        %v1779 = vld [vmem:[#allocation2 + $0x200] sm:$0xff]
        %v1780 = vld [vmem:[#allocation2 + $0x208] sm:$0xff]
        %v1781 = vld [vmem:[#allocation2 + $0x210] sm:$0xff]
        %v1782 = vld [vmem:[#allocation2 + $0x218] sm:$0xf]
        %v1783 = vld [vmem:[#allocation2 + $0x21c] sm:$0xff]
        %v1784 = vld [vmem:[#allocation2 + $0x224] sm:$0xff]
        %v1785 = vld [vmem:[#allocation2 + $0x22c] sm:$0xff]
        %v1786 = vld [vmem:[#allocation2 + $0x234] sm:$0xff]
        %v1787 = vld [vmem:[#allocation2 + $0x23c] sm:$0xf]
        %v1788 = vld [vmem:[#allocation9] sm:$0xf]
        %v1789 = vld [vmem:[#allocation9 + $0x4] sm:$0xf]
        %v1790 = vld [vmem:[#allocation9 + $0x8] sm:$0xf]
        %v1791 = vld [vmem:[#allocation9 + $0xc] sm:$0xf]
        %v1792 = vld [vmem:[#allocation9 + $0x10] sm:$0xf]
        %v1793 = vld [vmem:[#allocation9 + $0x14] sm:$0xf]
        %v1794 = vld [vmem:[#allocation9 + $0x18] sm:$0xf]
        %v1795 = vld [vmem:[#allocation9 + $0x1c] sm:$0xf]
        %v1796 = vld [vmem:[#allocation9 + $0x20] sm:$0xf]
        %v1797 = vld [vmem:[#allocation9 + $0x24] sm:$0xf]
        %v1798 = vld [vmem:[#allocation9 + $0x28] sm:$0xf]
        %v1799 = vld [vmem:[#allocation9 + $0x2c] sm:$0xf]
        %v1800 = vld [vmem:[#allocation9 + $0x30] sm:$0xf]
        %v1801 = vld [vmem:[#allocation9 + $0x34] sm:$0xf]
        %v1802 = vld [vmem:[#allocation9 + $0x38] sm:$0xf]
        %v1803 = vld [vmem:[#allocation9 + $0x3c] sm:$0xf]
        %v1804 = vld [vmem:[#allocation9 + $0x40] sm:$0xf]
        %v1805 = vld [vmem:[#allocation9 + $0x44] sm:$0xf]
        %v1806 = vld [vmem:[#allocation9 + $0x48] sm:$0xf]
        %v1807 = vld [vmem:[#allocation9 + $0x4c] sm:$0xf]
        %v1808 = vld [vmem:[#allocation9 + $0x50] sm:$0xf]
        %v1809 = vld [vmem:[#allocation9 + $0x54] sm:$0xf]
        %v1810 = vld [vmem:[#allocation9 + $0x58] sm:$0xf]
        %v1811 = vld [vmem:[#allocation9 + $0x5c] sm:$0xf]
        %v1812 = vld [vmem:[#allocation9 + $0x60] sm:$0xf]
        %v1813 = vld [vmem:[#allocation9 + $0x64] sm:$0xf]
        %v1814 = vld [vmem:[#allocation9 + $0x68] sm:$0xf]
        %v1815 = vld [vmem:[#allocation9 + $0x6c] sm:$0xf]
        %v1816 = vld [vmem:[#allocation9 + $0x70] sm:$0xf]
        %v1817 = vld [vmem:[#allocation9 + $0x74] sm:$0xf]
        %v1818 = vld [vmem:[#allocation9 + $0x78] sm:$0xf]
        %v1819 = vld [vmem:[#allocation9 + $0x7c] sm:$0xf]
        %v1820 = vld [vmem:[#allocation9 + $0x80] sm:$0xf]
        %v1821 = vld [vmem:[#allocation9 + $0x84] sm:$0xf]
        %v1822 = vld [vmem:[#allocation9 + $0x88] sm:$0xf]
        %v1823 = vld [vmem:[#allocation9 + $0x8c] sm:$0xf]
        %v1824 = vld [vmem:[#allocation9 + $0x90] sm:$0xf]
        %v1825 = vld [vmem:[#allocation9 + $0x94] sm:$0xf]
        %v1826 = vld [vmem:[#allocation9 + $0x98] sm:$0xf]
        %v1827 = vld [vmem:[#allocation9 + $0x9c] sm:$0xf]
        %v1828 = vld [vmem:[#allocation9 + $0xa0] sm:$0xf]
        %v1829 = vld [vmem:[#allocation9 + $0xa4] sm:$0xf]
        %v1830 = vld [vmem:[#allocation9 + $0xa8] sm:$0xf]
        %v1831 = vld [vmem:[#allocation9 + $0xac] sm:$0xf]
        %v1832 = vld [vmem:[#allocation9 + $0xb0] sm:$0xf]
        %v1833 = vld [vmem:[#allocation9 + $0xb4] sm:$0xf]
        %v1834 = vld [vmem:[#allocation9 + $0xb8] sm:$0xf]
        %v1835 = vld [vmem:[#allocation9 + $0xbc] sm:$0xf]
        %v1836 = vld [vmem:[#allocation9 + $0xc0] sm:$0xf]
        %v1837 = vld [vmem:[#allocation9 + $0xc4] sm:$0xf]
        %v1838 = vld [vmem:[#allocation9 + $0xc8] sm:$0xf]
        %v1839 = vld [vmem:[#allocation9 + $0xcc] sm:$0xf]
        %v1840 = vld [vmem:[#allocation9 + $0xd0] sm:$0xf]
        %v1841 = vld [vmem:[#allocation9 + $0xd4] sm:$0xf]
        %v1842 = vld [vmem:[#allocation9 + $0xd8] sm:$0xf]
        %v1843 = vld [vmem:[#allocation9 + $0xdc] sm:$0xf]
        %v1844 = vld [vmem:[#allocation9 + $0xe0] sm:$0xf]
        %v1845 = vld [vmem:[#allocation9 + $0xe4] sm:$0xf]
        %v1846 = vld [vmem:[#allocation9 + $0xe8] sm:$0xf]
        %v1847 = vld [vmem:[#allocation9 + $0xec] sm:$0xf]
        %v1848 = vld [vmem:[#allocation9 + $0xf0] sm:$0xf]
        %v1849 = vld [vmem:[#allocation9 + $0xf4] sm:$0xf]
        %v1850 = vld [vmem:[#allocation9 + $0xf8] sm:$0xf]
        %v1851 = vld [vmem:[#allocation9 + $0xfc] sm:$0xf]
        %v1852 = vld [vmem:[#allocation9 + $0x100] sm:$0xf]
        %v1853 = vld [vmem:[#allocation9 + $0x104] sm:$0xf]
        %v1854 = vld [vmem:[#allocation9 + $0x108] sm:$0xf]
        %v1855 = vld [vmem:[#allocation9 + $0x10c] sm:$0xf]
        %v1856 = vld [vmem:[#allocation9 + $0x110] sm:$0xf]
        %v1857 = vld [vmem:[#allocation9 + $0x114] sm:$0xf]
        %v1858 = vld [vmem:[#allocation9 + $0x118] sm:$0xf]
        %v1859 = vld [vmem:[#allocation9 + $0x11c] sm:$0xf]
        %v1860 = vld [vmem:[#allocation9 + $0x120] sm:$0xf]
        %v1861 = vld [vmem:[#allocation9 + $0x124] sm:$0xf]
        %v1862 = vld [vmem:[#allocation9 + $0x128] sm:$0xf]
        %v1863 = vld [vmem:[#allocation9 + $0x12c] sm:$0xf]
        %v1864 = vld [vmem:[#allocation9 + $0x130] sm:$0xf]
        %v1865 = vld [vmem:[#allocation9 + $0x134] sm:$0xf]
        %v1866 = vld [vmem:[#allocation9 + $0x138] sm:$0xf]
        %v1867 = vld [vmem:[#allocation9 + $0x13c] sm:$0xf]
        %v1868 = vld [vmem:[#allocation9 + $0x140] sm:$0xf]
        %v1869 = vld [vmem:[#allocation9 + $0x144] sm:$0xf]
        %v1870 = vld [vmem:[#allocation9 + $0x148] sm:$0xf]
        %v1871 = vld [vmem:[#allocation9 + $0x14c] sm:$0xf]
        %v1872 = vld [vmem:[#allocation9 + $0x150] sm:$0xf]
        %v1873 = vld [vmem:[#allocation9 + $0x154] sm:$0xf]
        %v1874 = vld [vmem:[#allocation9 + $0x158] sm:$0xf]
        %v1875 = vld [vmem:[#allocation9 + $0x15c] sm:$0xf]
        %v1876 = vld [vmem:[#allocation9 + $0x160] sm:$0xf]
        %v1877 = vld [vmem:[#allocation9 + $0x164] sm:$0xf]
        %v1878 = vld [vmem:[#allocation9 + $0x168] sm:$0xf]
        %v1879 = vld [vmem:[#allocation9 + $0x16c] sm:$0xf]
        %v1880 = vld [vmem:[#allocation9 + $0x170] sm:$0xf]
        %v1881 = vld [vmem:[#allocation9 + $0x174] sm:$0xf]
        %v1882 = vld [vmem:[#allocation9 + $0x178] sm:$0xf]
        %v1883 = vld [vmem:[#allocation9 + $0x17c] sm:$0xf]
        %v1884 = vld [vmem:[#allocation9 + $0x180] sm:$0xf]
        %v1885 = vld [vmem:[#allocation9 + $0x184] sm:$0xf]
        %v1886 = vld [vmem:[#allocation9 + $0x188] sm:$0xf]
        %v1887 = vld [vmem:[#allocation9 + $0x18c] sm:$0xf]
        %v1888 = vld [vmem:[#allocation9 + $0x190] sm:$0xf]
        %v1889 = vld [vmem:[#allocation9 + $0x194] sm:$0xf]
        %v1890 = vld [vmem:[#allocation9 + $0x198] sm:$0xf]
        %v1891 = vld [vmem:[#allocation9 + $0x19c] sm:$0xf]
        %v1892 = vld [vmem:[#allocation9 + $0x1a0] sm:$0xf]
        %v1893 = vld [vmem:[#allocation9 + $0x1a4] sm:$0xf]
        %v1894 = vld [vmem:[#allocation9 + $0x1a8] sm:$0xf]
        %v1895 = vld [vmem:[#allocation9 + $0x1ac] sm:$0xf]
        %v1896 = vld [vmem:[#allocation9 + $0x1b0] sm:$0xf]
        %v1897 = vld [vmem:[#allocation9 + $0x1b4] sm:$0xf]
        %v1898 = vld [vmem:[#allocation9 + $0x1b8] sm:$0xf]
        %v1899 = vld [vmem:[#allocation9 + $0x1bc] sm:$0xf]
        %v1900 = vld [vmem:[#allocation9 + $0x1c0] sm:$0xf]
        %v1901 = vld [vmem:[#allocation9 + $0x1c4] sm:$0xf]
        %v1902 = vld [vmem:[#allocation9 + $0x1c8] sm:$0xf]
        %v1903 = vld [vmem:[#allocation9 + $0x1cc] sm:$0xf]
        %v1904 = vld [vmem:[#allocation9 + $0x1d0] sm:$0xf]
        %v1905 = vld [vmem:[#allocation9 + $0x1d4] sm:$0xf]
        %v1906 = vld [vmem:[#allocation9 + $0x1d8] sm:$0xf]
        %v1907 = vld [vmem:[#allocation9 + $0x1dc] sm:$0xf]
        %v1908 = vld [vmem:[#allocation9 + $0x1e0] sm:$0xf]
        %v1909 = vld [vmem:[#allocation9 + $0x1e4] sm:$0xf]
        %v1910 = vld [vmem:[#allocation9 + $0x1e8] sm:$0xf]
        %v1911 = vld [vmem:[#allocation9 + $0x1ec] sm:$0xf]
        %v1912 = vld [vmem:[#allocation9 + $0x1f0] sm:$0xf]
        %v1913 = vld [vmem:[#allocation9 + $0x1f4] sm:$0xf]
        %v1914 = vld [vmem:[#allocation9 + $0x1f8] sm:$0xf]
        %v1915 = vld [vmem:[#allocation9 + $0x1fc] sm:$0xf]
        %v1916 = vld [vmem:[#allocation9 + $0x200] sm:$0xf]
        %v1917 = vld [vmem:[#allocation9 + $0x204] sm:$0xf]
        %v1918 = vld [vmem:[#allocation9 + $0x208] sm:$0xf]
        %v1919 = vld [vmem:[#allocation9 + $0x20c] sm:$0xf]
        %v1920 = vld [vmem:[#allocation9 + $0x210] sm:$0xf]
        %v1921 = vld [vmem:[#allocation9 + $0x214] sm:$0xf]
        %v1922 = vld [vmem:[#allocation9 + $0x218] sm:$0xf]
        %v1923 = vld [vmem:[#allocation9 + $0x21c] sm:$0xf]
        %v1924 = vld [vmem:[#allocation9 + $0x220] sm:$0xf]
        %v1925 = vld [vmem:[#allocation9 + $0x224] sm:$0xf]
        %v1926 = vld [vmem:[#allocation9 + $0x228] sm:$0xf]
        %v1927 = vld [vmem:[#allocation9 + $0x22c] sm:$0xf]
        %v1928 = vld [vmem:[#allocation9 + $0x230] sm:$0xf]
        %v1929 = vld [vmem:[#allocation9 + $0x234] sm:$0xf]
        %v1930 = vld [vmem:[#allocation9 + $0x238] sm:$0xf]
        %v1931 = vld [vmem:[#allocation9 + $0x23c] sm:$0xf]
        %v1932 = vld [vmem:[%s6] sm:$0x1]
        %v1934 = vperm.slane %v1932, 0
        %v2016 = vunpack.c.l.b16 %v1708
        %v2017 = vunpack.c.h.b16 %v1708
        %v2018 = vunpack.c.l.b16 %v1709
        %v2019 = vunpack.c.h.b16 %v1709
        %v2020 = vunpack.c.l.b16 %v1710
        %v2021 = vunpack.c.h.b16 %v1710
        %v2022 = vunpack.c.l.b16 %v1711
        %v2023 = vunpack.c.h.b16 %v1711
        %v2024 = vunpack.c.l.b16 %v1712
        %v2025 = vunpack.c.l.b16 %v1713
        %v2026 = vunpack.c.h.b16 %v1713
        %v2027 = vunpack.c.l.b16 %v1714
        %v2028 = vunpack.c.h.b16 %v1714
        %v2029 = vunpack.c.l.b16 %v1715
        %v2030 = vunpack.c.h.b16 %v1715
        %v2031 = vunpack.c.l.b16 %v1716
        %v2032 = vunpack.c.h.b16 %v1716
        %v2033 = vunpack.c.l.b16 %v1717
        %v2034 = vunpack.c.l.b16 %v1718
        %v2035 = vunpack.c.h.b16 %v1718
        %v2036 = vunpack.c.l.b16 %v1719
        %v2037 = vunpack.c.h.b16 %v1719
        %v2038 = vunpack.c.l.b16 %v1720
        %v2039 = vunpack.c.h.b16 %v1720
        %v2040 = vunpack.c.l.b16 %v1721
        %v2041 = vunpack.c.h.b16 %v1721
        %v2042 = vunpack.c.l.b16 %v1722
        %v2043 = vunpack.c.l.b16 %v1723
        %v2044 = vunpack.c.h.b16 %v1723
        %v2045 = vunpack.c.l.b16 %v1724
        %v2046 = vunpack.c.h.b16 %v1724
        %v2047 = vunpack.c.l.b16 %v1725
        %v2048 = vunpack.c.h.b16 %v1725
        %v2049 = vunpack.c.l.b16 %v1726
        %v2050 = vunpack.c.h.b16 %v1726
        %v2051 = vunpack.c.l.b16 %v1727
        %v2052 = vunpack.c.l.b16 %v1728
        %v2053 = vunpack.c.h.b16 %v1728
        %v2054 = vunpack.c.l.b16 %v1729
        %v2055 = vunpack.c.h.b16 %v1729
        %v2056 = vunpack.c.l.b16 %v1730
        %v2057 = vunpack.c.h.b16 %v1730
        %v2058 = vunpack.c.l.b16 %v1731
        %v2059 = vunpack.c.h.b16 %v1731
        %v2060 = vunpack.c.l.b16 %v1732
        %v2061 = vunpack.c.l.b16 %v1733
        %v2062 = vunpack.c.h.b16 %v1733
        %v2063 = vunpack.c.l.b16 %v1734
        %v2064 = vunpack.c.h.b16 %v1734
        %v2065 = vunpack.c.l.b16 %v1735
        %v2066 = vunpack.c.h.b16 %v1735
        %v2067 = vunpack.c.l.b16 %v1736
        %v2068 = vunpack.c.h.b16 %v1736
        %v2069 = vunpack.c.l.b16 %v1737
        %v2070 = vunpack.c.l.b16 %v1738
        %v2071 = vunpack.c.h.b16 %v1738
        %v2072 = vunpack.c.l.b16 %v1739
        %v2073 = vunpack.c.h.b16 %v1739
        %v2074 = vunpack.c.l.b16 %v1740
        %v2075 = vunpack.c.h.b16 %v1740
        %v2076 = vunpack.c.l.b16 %v1741
        %v2077 = vunpack.c.h.b16 %v1741
        %v2078 = vunpack.c.l.b16 %v1742
        %v2079 = vunpack.c.l.b16 %v1743
        %v2080 = vunpack.c.h.b16 %v1743
        %v2081 = vunpack.c.l.b16 %v1744
        %v2082 = vunpack.c.h.b16 %v1744
        %v2083 = vunpack.c.l.b16 %v1745
        %v2084 = vunpack.c.h.b16 %v1745
        %v2085 = vunpack.c.l.b16 %v1746
        %v2086 = vunpack.c.h.b16 %v1746
        %v2087 = vunpack.c.l.b16 %v1747
        %v2088 = vunpack.c.l.b16 %v1748
        %v2089 = vunpack.c.h.b16 %v1748
        %v2090 = vunpack.c.l.b16 %v1749
        %v2091 = vunpack.c.h.b16 %v1749
        %v2092 = vunpack.c.l.b16 %v1750
        %v2093 = vunpack.c.h.b16 %v1750
        %v2094 = vunpack.c.l.b16 %v1751
        %v2095 = vunpack.c.h.b16 %v1751
        %v2096 = vunpack.c.l.b16 %v1752
        %v2097 = vunpack.c.l.b16 %v1753
        %v2098 = vunpack.c.h.b16 %v1753
        %v2099 = vunpack.c.l.b16 %v1754
        %v2100 = vunpack.c.h.b16 %v1754
        %v2101 = vunpack.c.l.b16 %v1755
        %v2102 = vunpack.c.h.b16 %v1755
        %v2103 = vunpack.c.l.b16 %v1756
        %v2104 = vunpack.c.h.b16 %v1756
        %v2105 = vunpack.c.l.b16 %v1757
        %v2106 = vunpack.c.l.b16 %v1758
        %v2107 = vunpack.c.h.b16 %v1758
        %v2108 = vunpack.c.l.b16 %v1759
        %v2109 = vunpack.c.h.b16 %v1759
        %v2110 = vunpack.c.l.b16 %v1760
        %v2111 = vunpack.c.h.b16 %v1760
        %v2112 = vunpack.c.l.b16 %v1761
        %v2113 = vunpack.c.h.b16 %v1761
        %v2114 = vunpack.c.l.b16 %v1762
        %v2115 = vunpack.c.l.b16 %v1763
        %v2116 = vunpack.c.h.b16 %v1763
        %v2117 = vunpack.c.l.b16 %v1764
        %v2118 = vunpack.c.h.b16 %v1764
        %v2119 = vunpack.c.l.b16 %v1765
        %v2120 = vunpack.c.h.b16 %v1765
        %v2121 = vunpack.c.l.b16 %v1766
        %v2122 = vunpack.c.h.b16 %v1766
        %v2123 = vunpack.c.l.b16 %v1767
        %v2124 = vunpack.c.l.b16 %v1768
        %v2125 = vunpack.c.h.b16 %v1768
        %v2126 = vunpack.c.l.b16 %v1769
        %v2127 = vunpack.c.h.b16 %v1769
        %v2128 = vunpack.c.l.b16 %v1770
        %v2129 = vunpack.c.h.b16 %v1770
        %v2130 = vunpack.c.l.b16 %v1771
        %v2131 = vunpack.c.h.b16 %v1771
        %v2132 = vunpack.c.l.b16 %v1772
        %v2133 = vunpack.c.l.b16 %v1773
        %v2134 = vunpack.c.h.b16 %v1773
        %v2135 = vunpack.c.l.b16 %v1774
        %v2136 = vunpack.c.h.b16 %v1774
        %v2137 = vunpack.c.l.b16 %v1775
        %v2138 = vunpack.c.h.b16 %v1775
        %v2139 = vunpack.c.l.b16 %v1776
        %v2140 = vunpack.c.h.b16 %v1776
        %v2141 = vunpack.c.l.b16 %v1777
        %v2142 = vunpack.c.l.b16 %v1778
        %v2143 = vunpack.c.h.b16 %v1778
        %v2144 = vunpack.c.l.b16 %v1779
        %v2145 = vunpack.c.h.b16 %v1779
        %v2146 = vunpack.c.l.b16 %v1780
        %v2147 = vunpack.c.h.b16 %v1780
        %v2148 = vunpack.c.l.b16 %v1781
        %v2149 = vunpack.c.h.b16 %v1781
        %v2150 = vunpack.c.l.b16 %v1782
        %v2151 = vunpack.c.l.b16 %v1783
        %v2152 = vunpack.c.h.b16 %v1783
        %v2153 = vunpack.c.l.b16 %v1784
        %v2154 = vunpack.c.h.b16 %v1784
        %v2155 = vunpack.c.l.b16 %v1785
        %v2156 = vunpack.c.h.b16 %v1785
        %v2157 = vunpack.c.l.b16 %v1786
        %v2158 = vunpack.c.h.b16 %v1786
        %v2159 = vunpack.c.l.b16 %v1787
        %v2160 = vpack.c.b16 %v2025, %v2016
        %v2161 = vpack.c.b16 %v2026, %v2017
        %v2162 = vpack.c.b16 %v2027, %v2018
        %v2163 = vpack.c.b16 %v2028, %v2019
        %v2164 = vpack.c.b16 %v2029, %v2020
        %v2165 = vpack.c.b16 %v2030, %v2021
        %v2166 = vpack.c.b16 %v2031, %v2022
        %v2167 = vpack.c.b16 %v2032, %v2023
        %v2168 = vpack.c.b16 %v2033, %v2024
        %v2169 = vpack.c.b16 %v2043, %v2034
        %v2170 = vpack.c.b16 %v2044, %v2035
        %v2171 = vpack.c.b16 %v2045, %v2036
        %v2172 = vpack.c.b16 %v2046, %v2037
        %v2173 = vpack.c.b16 %v2047, %v2038
        %v2174 = vpack.c.b16 %v2048, %v2039
        %v2175 = vpack.c.b16 %v2049, %v2040
        %v2176 = vpack.c.b16 %v2050, %v2041
        %v2177 = vpack.c.b16 %v2051, %v2042
        %v2178 = vpack.c.b16 %v2061, %v2052
        %v2179 = vpack.c.b16 %v2062, %v2053
        %v2180 = vpack.c.b16 %v2063, %v2054
        %v2181 = vpack.c.b16 %v2064, %v2055
        %v2182 = vpack.c.b16 %v2065, %v2056
        %v2183 = vpack.c.b16 %v2066, %v2057
        %v2184 = vpack.c.b16 %v2067, %v2058
        %v2185 = vpack.c.b16 %v2068, %v2059
        %v2186 = vpack.c.b16 %v2069, %v2060
        %v2187 = vpack.c.b16 %v2079, %v2070
        %v2188 = vpack.c.b16 %v2080, %v2071
        %v2189 = vpack.c.b16 %v2081, %v2072
        %v2190 = vpack.c.b16 %v2082, %v2073
        %v2191 = vpack.c.b16 %v2083, %v2074
        %v2192 = vpack.c.b16 %v2084, %v2075
        %v2193 = vpack.c.b16 %v2085, %v2076
        %v2194 = vpack.c.b16 %v2086, %v2077
        %v2195 = vpack.c.b16 %v2087, %v2078
        %v2196 = vpack.c.b16 %v2097, %v2088
        %v2197 = vpack.c.b16 %v2098, %v2089
        %v2198 = vpack.c.b16 %v2099, %v2090
        %v2199 = vpack.c.b16 %v2100, %v2091
        %v2200 = vpack.c.b16 %v2101, %v2092
        %v2201 = vpack.c.b16 %v2102, %v2093
        %v2202 = vpack.c.b16 %v2103, %v2094
        %v2203 = vpack.c.b16 %v2104, %v2095
        %v2204 = vpack.c.b16 %v2105, %v2096
        %v2205 = vpack.c.b16 %v2115, %v2106
        %v2206 = vpack.c.b16 %v2116, %v2107
        %v2207 = vpack.c.b16 %v2117, %v2108
        %v2208 = vpack.c.b16 %v2118, %v2109
        %v2209 = vpack.c.b16 %v2119, %v2110
        %v2210 = vpack.c.b16 %v2120, %v2111
        %v2211 = vpack.c.b16 %v2121, %v2112
        %v2212 = vpack.c.b16 %v2122, %v2113
        %v2213 = vpack.c.b16 %v2123, %v2114
        %v2214 = vpack.c.b16 %v2133, %v2124
        %v2215 = vpack.c.b16 %v2134, %v2125
        %v2216 = vpack.c.b16 %v2135, %v2126
        %v2217 = vpack.c.b16 %v2136, %v2127
        %v2218 = vpack.c.b16 %v2137, %v2128
        %v2219 = vpack.c.b16 %v2138, %v2129
        %v2220 = vpack.c.b16 %v2139, %v2130
        %v2221 = vpack.c.b16 %v2140, %v2131
        %v2222 = vpack.c.b16 %v2141, %v2132
        %v2223 = vpack.c.b16 %v2151, %v2142
        %v2224 = vpack.c.b16 %v2152, %v2143
        %v2225 = vpack.c.b16 %v2153, %v2144
        %v2226 = vpack.c.b16 %v2154, %v2145
        %v2227 = vpack.c.b16 %v2155, %v2146
        %v2228 = vpack.c.b16 %v2156, %v2147
        %v2229 = vpack.c.b16 %v2157, %v2148
        %v2230 = vpack.c.b16 %v2158, %v2149
        %v2231 = vpack.c.b16 %v2159, %v2150
        %v2448 = vunpack.c.l.b16 %v1788
        %v2449 = vunpack.c.l.b16 %v1789
        %v2450 = vunpack.c.l.b16 %v1790
        %v2451 = vunpack.c.l.b16 %v1791
        %v2452 = vunpack.c.l.b16 %v1792
        %v2453 = vunpack.c.l.b16 %v1793
        %v2454 = vunpack.c.l.b16 %v1794
        %v2455 = vunpack.c.l.b16 %v1795
        %v2456 = vunpack.c.l.b16 %v1796
        %v2457 = vunpack.c.l.b16 %v1797
        %v2458 = vunpack.c.l.b16 %v1798
        %v2459 = vunpack.c.l.b16 %v1799
        %v2460 = vunpack.c.l.b16 %v1800
        %v2461 = vunpack.c.l.b16 %v1801
        %v2462 = vunpack.c.l.b16 %v1802
        %v2463 = vunpack.c.l.b16 %v1803
        %v2464 = vunpack.c.l.b16 %v1804
        %v2465 = vunpack.c.l.b16 %v1805
        %v2466 = vunpack.c.l.b16 %v1806
        %v2467 = vunpack.c.l.b16 %v1807
        %v2468 = vunpack.c.l.b16 %v1808
        %v2469 = vunpack.c.l.b16 %v1809
        %v2470 = vunpack.c.l.b16 %v1810
        %v2471 = vunpack.c.l.b16 %v1811
        %v2472 = vunpack.c.l.b16 %v1812
        %v2473 = vunpack.c.l.b16 %v1813
        %v2474 = vunpack.c.l.b16 %v1814
        %v2475 = vunpack.c.l.b16 %v1815
        %v2476 = vunpack.c.l.b16 %v1816
        %v2477 = vunpack.c.l.b16 %v1817
        %v2478 = vunpack.c.l.b16 %v1818
        %v2479 = vunpack.c.l.b16 %v1819
        %v2480 = vunpack.c.l.b16 %v1820
        %v2481 = vunpack.c.l.b16 %v1821
        %v2482 = vunpack.c.l.b16 %v1822
        %v2483 = vunpack.c.l.b16 %v1823
        %v2484 = vunpack.c.l.b16 %v1824
        %v2485 = vunpack.c.l.b16 %v1825
        %v2486 = vunpack.c.l.b16 %v1826
        %v2487 = vunpack.c.l.b16 %v1827
        %v2488 = vunpack.c.l.b16 %v1828
        %v2489 = vunpack.c.l.b16 %v1829
        %v2490 = vunpack.c.l.b16 %v1830
        %v2491 = vunpack.c.l.b16 %v1831
        %v2492 = vunpack.c.l.b16 %v1832
        %v2493 = vunpack.c.l.b16 %v1833
        %v2494 = vunpack.c.l.b16 %v1834
        %v2495 = vunpack.c.l.b16 %v1835
        %v2496 = vunpack.c.l.b16 %v1836
        %v2497 = vunpack.c.l.b16 %v1837
        %v2498 = vunpack.c.l.b16 %v1838
        %v2499 = vunpack.c.l.b16 %v1839
        %v2500 = vunpack.c.l.b16 %v1840
        %v2501 = vunpack.c.l.b16 %v1841
        %v2502 = vunpack.c.l.b16 %v1842
        %v2503 = vunpack.c.l.b16 %v1843
        %v2504 = vunpack.c.l.b16 %v1844
        %v2505 = vunpack.c.l.b16 %v1845
        %v2506 = vunpack.c.l.b16 %v1846
        %v2507 = vunpack.c.l.b16 %v1847
        %v2508 = vunpack.c.l.b16 %v1848
        %v2509 = vunpack.c.l.b16 %v1849
        %v2510 = vunpack.c.l.b16 %v1850
        %v2511 = vunpack.c.l.b16 %v1851
        %v2512 = vunpack.c.l.b16 %v1852
        %v2513 = vunpack.c.l.b16 %v1853
        %v2514 = vunpack.c.l.b16 %v1854
        %v2515 = vunpack.c.l.b16 %v1855
        %v2516 = vunpack.c.l.b16 %v1856
        %v2517 = vunpack.c.l.b16 %v1857
        %v2518 = vunpack.c.l.b16 %v1858
        %v2519 = vunpack.c.l.b16 %v1859
        %v2520 = vunpack.c.l.b16 %v1860
        %v2521 = vunpack.c.l.b16 %v1861
        %v2522 = vunpack.c.l.b16 %v1862
        %v2523 = vunpack.c.l.b16 %v1863
        %v2524 = vunpack.c.l.b16 %v1864
        %v2525 = vunpack.c.l.b16 %v1865
        %v2526 = vunpack.c.l.b16 %v1866
        %v2527 = vunpack.c.l.b16 %v1867
        %v2528 = vunpack.c.l.b16 %v1868
        %v2529 = vunpack.c.l.b16 %v1869
        %v2530 = vunpack.c.l.b16 %v1870
        %v2531 = vunpack.c.l.b16 %v1871
        %v2532 = vunpack.c.l.b16 %v1872
        %v2533 = vunpack.c.l.b16 %v1873
        %v2534 = vunpack.c.l.b16 %v1874
        %v2535 = vunpack.c.l.b16 %v1875
        %v2536 = vunpack.c.l.b16 %v1876
        %v2537 = vunpack.c.l.b16 %v1877
        %v2538 = vunpack.c.l.b16 %v1878
        %v2539 = vunpack.c.l.b16 %v1879
        %v2540 = vunpack.c.l.b16 %v1880
        %v2541 = vunpack.c.l.b16 %v1881
        %v2542 = vunpack.c.l.b16 %v1882
        %v2543 = vunpack.c.l.b16 %v1883
        %v2544 = vunpack.c.l.b16 %v1884
        %v2545 = vunpack.c.l.b16 %v1885
        %v2546 = vunpack.c.l.b16 %v1886
        %v2547 = vunpack.c.l.b16 %v1887
        %v2548 = vunpack.c.l.b16 %v1888
        %v2549 = vunpack.c.l.b16 %v1889
        %v2550 = vunpack.c.l.b16 %v1890
        %v2551 = vunpack.c.l.b16 %v1891
        %v2552 = vunpack.c.l.b16 %v1892
        %v2553 = vunpack.c.l.b16 %v1893
        %v2554 = vunpack.c.l.b16 %v1894
        %v2555 = vunpack.c.l.b16 %v1895
        %v2556 = vunpack.c.l.b16 %v1896
        %v2557 = vunpack.c.l.b16 %v1897
        %v2558 = vunpack.c.l.b16 %v1898
        %v2559 = vunpack.c.l.b16 %v1899
        %v2560 = vunpack.c.l.b16 %v1900
        %v2561 = vunpack.c.l.b16 %v1901
        %v2562 = vunpack.c.l.b16 %v1902
        %v2563 = vunpack.c.l.b16 %v1903
        %v2564 = vunpack.c.l.b16 %v1904
        %v2565 = vunpack.c.l.b16 %v1905
        %v2566 = vunpack.c.l.b16 %v1906
        %v2567 = vunpack.c.l.b16 %v1907
        %v2568 = vunpack.c.l.b16 %v1908
        %v2569 = vunpack.c.l.b16 %v1909
        %v2570 = vunpack.c.l.b16 %v1910
        %v2571 = vunpack.c.l.b16 %v1911
        %v2572 = vunpack.c.l.b16 %v1912
        %v2573 = vunpack.c.l.b16 %v1913
        %v2574 = vunpack.c.l.b16 %v1914
        %v2575 = vunpack.c.l.b16 %v1915
        %v2576 = vunpack.c.l.b16 %v1916
        %v2577 = vunpack.c.l.b16 %v1917
        %v2578 = vunpack.c.l.b16 %v1918
        %v2579 = vunpack.c.l.b16 %v1919
        %v2580 = vunpack.c.l.b16 %v1920
        %v2581 = vunpack.c.l.b16 %v1921
        %v2582 = vunpack.c.l.b16 %v1922
        %v2583 = vunpack.c.l.b16 %v1923
        %v2584 = vunpack.c.l.b16 %v1924
        %v2585 = vunpack.c.l.b16 %v1925
        %v2586 = vunpack.c.l.b16 %v1926
        %v2587 = vunpack.c.l.b16 %v1927
        %v2588 = vunpack.c.l.b16 %v1928
        %v2589 = vunpack.c.l.b16 %v1929
        %v2590 = vunpack.c.l.b16 %v1930
        %v2591 = vunpack.c.l.b16 %v1931
        %v2592 = vpack.c.b16 %v2449, %v2448
        %v2593 = vpack.c.b16 %v2451, %v2450
        %v2594 = vpack.c.b16 %v2453, %v2452
        %v2595 = vpack.c.b16 %v2455, %v2454
        %v2596 = vpack.c.b16 %v2457, %v2456
        %v2597 = vpack.c.b16 %v2459, %v2458
        %v2598 = vpack.c.b16 %v2461, %v2460
        %v2599 = vpack.c.b16 %v2463, %v2462
        %v2600 = vpack.c.b16 %v2465, %v2464
        %v2601 = vpack.c.b16 %v2467, %v2466
        %v2602 = vpack.c.b16 %v2469, %v2468
        %v2603 = vpack.c.b16 %v2471, %v2470
        %v2604 = vpack.c.b16 %v2473, %v2472
        %v2605 = vpack.c.b16 %v2475, %v2474
        %v2606 = vpack.c.b16 %v2477, %v2476
        %v2607 = vpack.c.b16 %v2479, %v2478
        %v2608 = vpack.c.b16 %v2481, %v2480
        %v2609 = vpack.c.b16 %v2483, %v2482
        %v2610 = vpack.c.b16 %v2485, %v2484
        %v2611 = vpack.c.b16 %v2487, %v2486
        %v2612 = vpack.c.b16 %v2489, %v2488
        %v2613 = vpack.c.b16 %v2491, %v2490
        %v2614 = vpack.c.b16 %v2493, %v2492
        %v2615 = vpack.c.b16 %v2495, %v2494
        %v2616 = vpack.c.b16 %v2497, %v2496
        %v2617 = vpack.c.b16 %v2499, %v2498
        %v2618 = vpack.c.b16 %v2501, %v2500
        %v2619 = vpack.c.b16 %v2503, %v2502
        %v2620 = vpack.c.b16 %v2505, %v2504
        %v2621 = vpack.c.b16 %v2507, %v2506
        %v2622 = vpack.c.b16 %v2509, %v2508
        %v2623 = vpack.c.b16 %v2511, %v2510
        %v2624 = vpack.c.b16 %v2513, %v2512
        %v2625 = vpack.c.b16 %v2515, %v2514
        %v2626 = vpack.c.b16 %v2517, %v2516
        %v2627 = vpack.c.b16 %v2519, %v2518
        %v2628 = vpack.c.b16 %v2521, %v2520
        %v2629 = vpack.c.b16 %v2523, %v2522
        %v2630 = vpack.c.b16 %v2525, %v2524
        %v2631 = vpack.c.b16 %v2527, %v2526
        %v2632 = vpack.c.b16 %v2529, %v2528
        %v2633 = vpack.c.b16 %v2531, %v2530
        %v2634 = vpack.c.b16 %v2533, %v2532
        %v2635 = vpack.c.b16 %v2535, %v2534
        %v2636 = vpack.c.b16 %v2537, %v2536
        %v2637 = vpack.c.b16 %v2539, %v2538
        %v2638 = vpack.c.b16 %v2541, %v2540
        %v2639 = vpack.c.b16 %v2543, %v2542
        %v2640 = vpack.c.b16 %v2545, %v2544
        %v2641 = vpack.c.b16 %v2547, %v2546
        %v2642 = vpack.c.b16 %v2549, %v2548
        %v2643 = vpack.c.b16 %v2551, %v2550
        %v2644 = vpack.c.b16 %v2553, %v2552
        %v2645 = vpack.c.b16 %v2555, %v2554
        %v2646 = vpack.c.b16 %v2557, %v2556
        %v2647 = vpack.c.b16 %v2559, %v2558
        %v2648 = vpack.c.b16 %v2561, %v2560
        %v2649 = vpack.c.b16 %v2563, %v2562
        %v2650 = vpack.c.b16 %v2565, %v2564
        %v2651 = vpack.c.b16 %v2567, %v2566
        %v2652 = vpack.c.b16 %v2569, %v2568
        %v2653 = vpack.c.b16 %v2571, %v2570
        %v2654 = vpack.c.b16 %v2573, %v2572
        %v2655 = vpack.c.b16 %v2575, %v2574
        %v2656 = vpack.c.b16 %v2577, %v2576
        %v2657 = vpack.c.b16 %v2579, %v2578
        %v2658 = vpack.c.b16 %v2581, %v2580
        %v2659 = vpack.c.b16 %v2583, %v2582
        %v2660 = vpack.c.b16 %v2585, %v2584
        %v2661 = vpack.c.b16 %v2587, %v2586
        %v2662 = vpack.c.b16 %v2589, %v2588
        %v2663 = vpack.c.b16 %v2591, %v2590
        %2736 = vmatpush.bf16.msra.mxu0 %v2599
        %2737 = vmatpush.bf16.msra.mxu0 %v2598
        %2738 = vmatpush.bf16.msra.mxu0 %v2597
        %2739 = vmatpush.bf16.msra.mxu0 %v2596
        %2740 = vmatpush.bf16.msra.mxu0 %v2595
        %2741 = vmatpush.bf16.msra.mxu0 %v2594
        %2742 = vmatpush.bf16.msra.mxu0 %v2593
        %2743 = vmatpush.bf16.msra.mxu0 %v2592
        %2744 = vmatmul.bf16.gmra.mxu0 %v2160
        %v2745 = vpop.f32.mrf.mxu0
        %v2746 = vadd.f32 %v1934, %v2745
        %v2747 = vpop.f32.mrf.mxu0
        %v2748 = vadd.f32 %v1934, %v2747
        %2749 = vmatmul.bf16.gmra.mxu0 %v2169
        %v2750 = vpop.f32.mrf.mxu0
        %v2751 = vadd.f32 %v1934, %v2750
        %v2752 = vpop.f32.mrf.mxu0
        %v2753 = vadd.f32 %v1934, %v2752
        %2754 = vmatmul.bf16.gmra.mxu0 %v2178
        %v2755 = vpop.f32.mrf.mxu0
        %v2756 = vadd.f32 %v1934, %v2755
        %v2757 = vpop.f32.mrf.mxu0
        %v2758 = vadd.f32 %v1934, %v2757
        %2759 = vmatmul.bf16.gmra.mxu0 %v2187
        %v2760 = vpop.f32.mrf.mxu0
        %v2761 = vadd.f32 %v1934, %v2760
        %v2762 = vpop.f32.mrf.mxu0
        %v2763 = vadd.f32 %v1934, %v2762
        %2764 = vmatmul.bf16.gmra.mxu0 %v2196
        %v2765 = vpop.f32.mrf.mxu0
        %v2766 = vadd.f32 %v1934, %v2765
        %v2767 = vpop.f32.mrf.mxu0
        %v2768 = vadd.f32 %v1934, %v2767
        %2769 = vmatmul.bf16.gmra.mxu0 %v2205
        %v2770 = vpop.f32.mrf.mxu0
        %v2771 = vadd.f32 %v1934, %v2770
        %v2772 = vpop.f32.mrf.mxu0
        %v2773 = vadd.f32 %v1934, %v2772
        %2774 = vmatmul.bf16.gmra.mxu0 %v2214
        %v2775 = vpop.f32.mrf.mxu0
        %v2776 = vadd.f32 %v1934, %v2775
        %v2777 = vpop.f32.mrf.mxu0
        %v2778 = vadd.f32 %v1934, %v2777
        %2779 = vmatmul.bf16.gmra.mxu0 %v2223
        %v2780 = vpop.f32.mrf.mxu0
        %v2781 = vadd.f32 %v1934, %v2780
        %v2782 = vpop.f32.mrf.mxu0
        %v2783 = vadd.f32 %v1934, %v2782
        %2784 = vdwg.mxu0
        %2785 = vmatpush.bf16.msra.mxu0 %v2607
        %2786 = vmatpush.bf16.msra.mxu0 %v2606
        %2787 = vmatpush.bf16.msra.mxu0 %v2605
        %2788 = vmatpush.bf16.msra.mxu0 %v2604
        %2789 = vmatpush.bf16.msra.mxu0 %v2603
        %2790 = vmatpush.bf16.msra.mxu0 %v2602
        %2791 = vmatpush.bf16.msra.mxu0 %v2601
        %2792 = vmatpush.bf16.msra.mxu0 %v2600
        %2793 = vmatmul.bf16.gmra.mxu0 %v2161
        %v2794 = vpop.f32.mrf.mxu0
        %v2795 = vadd.f32 %v2746, %v2794
        %v2796 = vpop.f32.mrf.mxu0
        %v2797 = vadd.f32 %v2748, %v2796
        %2798 = vmatmul.bf16.gmra.mxu0 %v2170
        %v2799 = vpop.f32.mrf.mxu0
        %v2800 = vadd.f32 %v2751, %v2799
        %v2801 = vpop.f32.mrf.mxu0
        %v2802 = vadd.f32 %v2753, %v2801
        %2803 = vmatmul.bf16.gmra.mxu0 %v2179
        %v2804 = vpop.f32.mrf.mxu0
        %v2805 = vadd.f32 %v2756, %v2804
        %v2806 = vpop.f32.mrf.mxu0
        %v2807 = vadd.f32 %v2758, %v2806
        %2808 = vmatmul.bf16.gmra.mxu0 %v2188
        %v2809 = vpop.f32.mrf.mxu0
        %v2810 = vadd.f32 %v2761, %v2809
        %v2811 = vpop.f32.mrf.mxu0
        %v2812 = vadd.f32 %v2763, %v2811
        %2813 = vmatmul.bf16.gmra.mxu0 %v2197
        %v2814 = vpop.f32.mrf.mxu0
        %v2815 = vadd.f32 %v2766, %v2814
        %v2816 = vpop.f32.mrf.mxu0
        %v2817 = vadd.f32 %v2768, %v2816
        %2818 = vmatmul.bf16.gmra.mxu0 %v2206
        %v2819 = vpop.f32.mrf.mxu0
        %v2820 = vadd.f32 %v2771, %v2819
        %v2821 = vpop.f32.mrf.mxu0
        %v2822 = vadd.f32 %v2773, %v2821
        %2823 = vmatmul.bf16.gmra.mxu0 %v2215
        %v2824 = vpop.f32.mrf.mxu0
        %v2825 = vadd.f32 %v2776, %v2824
        %v2826 = vpop.f32.mrf.mxu0
        %v2827 = vadd.f32 %v2778, %v2826
        %2828 = vmatmul.bf16.gmra.mxu0 %v2224
        %v2829 = vpop.f32.mrf.mxu0
        %v2830 = vadd.f32 %v2781, %v2829
        %v2831 = vpop.f32.mrf.mxu0
        %v2832 = vadd.f32 %v2783, %v2831
        %2833 = vdwg.mxu0
        %2834 = vmatpush.bf16.msra.mxu0 %v2615
        %2835 = vmatpush.bf16.msra.mxu0 %v2614
        %2836 = vmatpush.bf16.msra.mxu0 %v2613
        %2837 = vmatpush.bf16.msra.mxu0 %v2612
        %2838 = vmatpush.bf16.msra.mxu0 %v2611
        %2839 = vmatpush.bf16.msra.mxu0 %v2610
        %2840 = vmatpush.bf16.msra.mxu0 %v2609
        %2841 = vmatpush.bf16.msra.mxu0 %v2608
        %2842 = vmatmul.bf16.gmra.mxu0 %v2162
        %v2843 = vpop.f32.mrf.mxu0
        %v2844 = vadd.f32 %v2795, %v2843
        %v2845 = vpop.f32.mrf.mxu0
        %v2846 = vadd.f32 %v2797, %v2845
        %2847 = vmatmul.bf16.gmra.mxu0 %v2171
        %v2848 = vpop.f32.mrf.mxu0
        %v2849 = vadd.f32 %v2800, %v2848
        %v2850 = vpop.f32.mrf.mxu0
        %v2851 = vadd.f32 %v2802, %v2850
        %2852 = vmatmul.bf16.gmra.mxu0 %v2180
        %v2853 = vpop.f32.mrf.mxu0
        %v2854 = vadd.f32 %v2805, %v2853
        %v2855 = vpop.f32.mrf.mxu0
        %v2856 = vadd.f32 %v2807, %v2855
        %2857 = vmatmul.bf16.gmra.mxu0 %v2189
        %v2858 = vpop.f32.mrf.mxu0
        %v2859 = vadd.f32 %v2810, %v2858
        %v2860 = vpop.f32.mrf.mxu0
        %v2861 = vadd.f32 %v2812, %v2860
        %2862 = vmatmul.bf16.gmra.mxu0 %v2198
        %v2863 = vpop.f32.mrf.mxu0
        %v2864 = vadd.f32 %v2815, %v2863
        %v2865 = vpop.f32.mrf.mxu0
        %v2866 = vadd.f32 %v2817, %v2865
        %2867 = vmatmul.bf16.gmra.mxu0 %v2207
        %v2868 = vpop.f32.mrf.mxu0
        %v2869 = vadd.f32 %v2820, %v2868
        %v2870 = vpop.f32.mrf.mxu0
        %v2871 = vadd.f32 %v2822, %v2870
        %2872 = vmatmul.bf16.gmra.mxu0 %v2216
        %v2873 = vpop.f32.mrf.mxu0
        %v2874 = vadd.f32 %v2825, %v2873
        %v2875 = vpop.f32.mrf.mxu0
        %v2876 = vadd.f32 %v2827, %v2875
        %2877 = vmatmul.bf16.gmra.mxu0 %v2225
        %v2878 = vpop.f32.mrf.mxu0
        %v2879 = vadd.f32 %v2830, %v2878
        %v2880 = vpop.f32.mrf.mxu0
        %v2881 = vadd.f32 %v2832, %v2880
        %2882 = vdwg.mxu0
        %2883 = vmatpush.bf16.msra.mxu0 %v2623
        %2884 = vmatpush.bf16.msra.mxu0 %v2622
        %2885 = vmatpush.bf16.msra.mxu0 %v2621
        %2886 = vmatpush.bf16.msra.mxu0 %v2620
        %2887 = vmatpush.bf16.msra.mxu0 %v2619
        %2888 = vmatpush.bf16.msra.mxu0 %v2618
        %2889 = vmatpush.bf16.msra.mxu0 %v2617
        %2890 = vmatpush.bf16.msra.mxu0 %v2616
        %2891 = vmatmul.bf16.gmra.mxu0 %v2163
        %v2892 = vpop.f32.mrf.mxu0
        %v2893 = vadd.f32 %v2844, %v2892
        %v2894 = vpop.f32.mrf.mxu0
        %v2895 = vadd.f32 %v2846, %v2894
        %2896 = vmatmul.bf16.gmra.mxu0 %v2172
        %v2897 = vpop.f32.mrf.mxu0
        %v2898 = vadd.f32 %v2849, %v2897
        %v2899 = vpop.f32.mrf.mxu0
        %v2900 = vadd.f32 %v2851, %v2899
        %2901 = vmatmul.bf16.gmra.mxu0 %v2181
        %v2902 = vpop.f32.mrf.mxu0
        %v2903 = vadd.f32 %v2854, %v2902
        %v2904 = vpop.f32.mrf.mxu0
        %v2905 = vadd.f32 %v2856, %v2904
        %2906 = vmatmul.bf16.gmra.mxu0 %v2190
        %v2907 = vpop.f32.mrf.mxu0
        %v2908 = vadd.f32 %v2859, %v2907
        %v2909 = vpop.f32.mrf.mxu0
        %v2910 = vadd.f32 %v2861, %v2909
        %2911 = vmatmul.bf16.gmra.mxu0 %v2199
        %v2912 = vpop.f32.mrf.mxu0
        %v2913 = vadd.f32 %v2864, %v2912
        %v2914 = vpop.f32.mrf.mxu0
        %v2915 = vadd.f32 %v2866, %v2914
        %2916 = vmatmul.bf16.gmra.mxu0 %v2208
        %v2917 = vpop.f32.mrf.mxu0
        %v2918 = vadd.f32 %v2869, %v2917
        %v2919 = vpop.f32.mrf.mxu0
        %v2920 = vadd.f32 %v2871, %v2919
        %2921 = vmatmul.bf16.gmra.mxu0 %v2217
        %v2922 = vpop.f32.mrf.mxu0
        %v2923 = vadd.f32 %v2874, %v2922
        %v2924 = vpop.f32.mrf.mxu0
        %v2925 = vadd.f32 %v2876, %v2924
        %2926 = vmatmul.bf16.gmra.mxu0 %v2226
        %v2927 = vpop.f32.mrf.mxu0
        %v2928 = vadd.f32 %v2879, %v2927
        %v2929 = vpop.f32.mrf.mxu0
        %v2930 = vadd.f32 %v2881, %v2929
        %2931 = vdwg.mxu0
        %2932 = vmatpush.bf16.msra.mxu0 %v2631
        %2933 = vmatpush.bf16.msra.mxu0 %v2630
        %2934 = vmatpush.bf16.msra.mxu0 %v2629
        %2935 = vmatpush.bf16.msra.mxu0 %v2628
        %2936 = vmatpush.bf16.msra.mxu0 %v2627
        %2937 = vmatpush.bf16.msra.mxu0 %v2626
        %2938 = vmatpush.bf16.msra.mxu0 %v2625
        %2939 = vmatpush.bf16.msra.mxu0 %v2624
        %2940 = vmatmul.bf16.gmra.mxu0 %v2164
        %v2941 = vpop.f32.mrf.mxu0
        %v2942 = vadd.f32 %v2893, %v2941
        %v2943 = vpop.f32.mrf.mxu0
        %v2944 = vadd.f32 %v2895, %v2943
        %2945 = vmatmul.bf16.gmra.mxu0 %v2173
        %v2946 = vpop.f32.mrf.mxu0
        %v2947 = vadd.f32 %v2898, %v2946
        %v2948 = vpop.f32.mrf.mxu0
        %v2949 = vadd.f32 %v2900, %v2948
        %2950 = vmatmul.bf16.gmra.mxu0 %v2182
        %v2951 = vpop.f32.mrf.mxu0
        %v2952 = vadd.f32 %v2903, %v2951
        %v2953 = vpop.f32.mrf.mxu0
        %v2954 = vadd.f32 %v2905, %v2953
        %2955 = vmatmul.bf16.gmra.mxu0 %v2191
        %v2956 = vpop.f32.mrf.mxu0
        %v2957 = vadd.f32 %v2908, %v2956
        %v2958 = vpop.f32.mrf.mxu0
        %v2959 = vadd.f32 %v2910, %v2958
        %2960 = vmatmul.bf16.gmra.mxu0 %v2200
        %v2961 = vpop.f32.mrf.mxu0
        %v2962 = vadd.f32 %v2913, %v2961
        %v2963 = vpop.f32.mrf.mxu0
        %v2964 = vadd.f32 %v2915, %v2963
        %2965 = vmatmul.bf16.gmra.mxu0 %v2209
        %v2966 = vpop.f32.mrf.mxu0
        %v2967 = vadd.f32 %v2918, %v2966
        %v2968 = vpop.f32.mrf.mxu0
        %v2969 = vadd.f32 %v2920, %v2968
        %2970 = vmatmul.bf16.gmra.mxu0 %v2218
        %v2971 = vpop.f32.mrf.mxu0
        %v2972 = vadd.f32 %v2923, %v2971
        %v2973 = vpop.f32.mrf.mxu0
        %v2974 = vadd.f32 %v2925, %v2973
        %2975 = vmatmul.bf16.gmra.mxu0 %v2227
        %v2976 = vpop.f32.mrf.mxu0
        %v2977 = vadd.f32 %v2928, %v2976
        %v2978 = vpop.f32.mrf.mxu0
        %v2979 = vadd.f32 %v2930, %v2978
        %2980 = vdwg.mxu0
        %2981 = vmatpush.bf16.msra.mxu0 %v2639
        %2982 = vmatpush.bf16.msra.mxu0 %v2638
        %2983 = vmatpush.bf16.msra.mxu0 %v2637
        %2984 = vmatpush.bf16.msra.mxu0 %v2636
        %2985 = vmatpush.bf16.msra.mxu0 %v2635
        %2986 = vmatpush.bf16.msra.mxu0 %v2634
        %2987 = vmatpush.bf16.msra.mxu0 %v2633
        %2988 = vmatpush.bf16.msra.mxu0 %v2632
        %2989 = vmatmul.bf16.gmra.mxu0 %v2165
        %v2990 = vpop.f32.mrf.mxu0
        %v2991 = vadd.f32 %v2942, %v2990
        %v2992 = vpop.f32.mrf.mxu0
        %v2993 = vadd.f32 %v2944, %v2992
        %2994 = vmatmul.bf16.gmra.mxu0 %v2174
        %v2995 = vpop.f32.mrf.mxu0
        %v2996 = vadd.f32 %v2947, %v2995
        %v2997 = vpop.f32.mrf.mxu0
        %v2998 = vadd.f32 %v2949, %v2997
        %2999 = vmatmul.bf16.gmra.mxu0 %v2183
        %v3000 = vpop.f32.mrf.mxu0
        %v3001 = vadd.f32 %v2952, %v3000
        %v3002 = vpop.f32.mrf.mxu0
        %v3003 = vadd.f32 %v2954, %v3002
        %3004 = vmatmul.bf16.gmra.mxu0 %v2192
        %v3005 = vpop.f32.mrf.mxu0
        %v3006 = vadd.f32 %v2957, %v3005
        %v3007 = vpop.f32.mrf.mxu0
        %v3008 = vadd.f32 %v2959, %v3007
        %3009 = vmatmul.bf16.gmra.mxu0 %v2201
        %v3010 = vpop.f32.mrf.mxu0
        %v3011 = vadd.f32 %v2962, %v3010
        %v3012 = vpop.f32.mrf.mxu0
        %v3013 = vadd.f32 %v2964, %v3012
        %3014 = vmatmul.bf16.gmra.mxu0 %v2210
        %v3015 = vpop.f32.mrf.mxu0
        %v3016 = vadd.f32 %v2967, %v3015
        %v3017 = vpop.f32.mrf.mxu0
        %v3018 = vadd.f32 %v2969, %v3017
        %3019 = vmatmul.bf16.gmra.mxu0 %v2219
        %v3020 = vpop.f32.mrf.mxu0
        %v3021 = vadd.f32 %v2972, %v3020
        %v3022 = vpop.f32.mrf.mxu0
        %v3023 = vadd.f32 %v2974, %v3022
        %3024 = vmatmul.bf16.gmra.mxu0 %v2228
        %v3025 = vpop.f32.mrf.mxu0
        %v3026 = vadd.f32 %v2977, %v3025
        %v3027 = vpop.f32.mrf.mxu0
        %v3028 = vadd.f32 %v2979, %v3027
        %3029 = vdwg.mxu0
        %3030 = vmatpush.bf16.msra.mxu0 %v2647
        %3031 = vmatpush.bf16.msra.mxu0 %v2646
        %3032 = vmatpush.bf16.msra.mxu0 %v2645
        %3033 = vmatpush.bf16.msra.mxu0 %v2644
        %3034 = vmatpush.bf16.msra.mxu0 %v2643
        %3035 = vmatpush.bf16.msra.mxu0 %v2642
        %3036 = vmatpush.bf16.msra.mxu0 %v2641
        %3037 = vmatpush.bf16.msra.mxu0 %v2640
        %3038 = vmatmul.bf16.gmra.mxu0 %v2166
        %v3039 = vpop.f32.mrf.mxu0
        %v3040 = vadd.f32 %v2991, %v3039
        %v3041 = vpop.f32.mrf.mxu0
        %v3042 = vadd.f32 %v2993, %v3041
        %3043 = vmatmul.bf16.gmra.mxu0 %v2175
        %v3044 = vpop.f32.mrf.mxu0
        %v3045 = vadd.f32 %v2996, %v3044
        %v3046 = vpop.f32.mrf.mxu0
        %v3047 = vadd.f32 %v2998, %v3046
        %3048 = vmatmul.bf16.gmra.mxu0 %v2184
        %v3049 = vpop.f32.mrf.mxu0
        %v3050 = vadd.f32 %v3001, %v3049
        %v3051 = vpop.f32.mrf.mxu0
        %v3052 = vadd.f32 %v3003, %v3051
        %3053 = vmatmul.bf16.gmra.mxu0 %v2193
        %v3054 = vpop.f32.mrf.mxu0
        %v3055 = vadd.f32 %v3006, %v3054
        %v3056 = vpop.f32.mrf.mxu0
        %v3057 = vadd.f32 %v3008, %v3056
        %3058 = vmatmul.bf16.gmra.mxu0 %v2202
        %v3059 = vpop.f32.mrf.mxu0
        %v3060 = vadd.f32 %v3011, %v3059
        %v3061 = vpop.f32.mrf.mxu0
        %v3062 = vadd.f32 %v3013, %v3061
        %3063 = vmatmul.bf16.gmra.mxu0 %v2211
        %v3064 = vpop.f32.mrf.mxu0
        %v3065 = vadd.f32 %v3016, %v3064
        %v3066 = vpop.f32.mrf.mxu0
        %v3067 = vadd.f32 %v3018, %v3066
        %3068 = vmatmul.bf16.gmra.mxu0 %v2220
        %v3069 = vpop.f32.mrf.mxu0
        %v3070 = vadd.f32 %v3021, %v3069
        %v3071 = vpop.f32.mrf.mxu0
        %v3072 = vadd.f32 %v3023, %v3071
        %3073 = vmatmul.bf16.gmra.mxu0 %v2229
        %v3074 = vpop.f32.mrf.mxu0
        %v3075 = vadd.f32 %v3026, %v3074
        %v3076 = vpop.f32.mrf.mxu0
        %v3077 = vadd.f32 %v3028, %v3076
        %3078 = vdwg.mxu0
        %3079 = vmatpush.bf16.msra.mxu0 %v2655
        %3080 = vmatpush.bf16.msra.mxu0 %v2654
        %3081 = vmatpush.bf16.msra.mxu0 %v2653
        %3082 = vmatpush.bf16.msra.mxu0 %v2652
        %3083 = vmatpush.bf16.msra.mxu0 %v2651
        %3084 = vmatpush.bf16.msra.mxu0 %v2650
        %3085 = vmatpush.bf16.msra.mxu0 %v2649
        %3086 = vmatpush.bf16.msra.mxu0 %v2648
        %3087 = vmatmul.bf16.gmra.mxu0 %v2167
        %v3088 = vpop.f32.mrf.mxu0
        %v3089 = vadd.f32 %v3040, %v3088
        %v3090 = vpop.f32.mrf.mxu0
        %v3091 = vadd.f32 %v3042, %v3090
        %3092 = vmatmul.bf16.gmra.mxu0 %v2176
        %v3093 = vpop.f32.mrf.mxu0
        %v3094 = vadd.f32 %v3045, %v3093
        %v3095 = vpop.f32.mrf.mxu0
        %v3096 = vadd.f32 %v3047, %v3095
        %3097 = vmatmul.bf16.gmra.mxu0 %v2185
        %v3098 = vpop.f32.mrf.mxu0
        %v3099 = vadd.f32 %v3050, %v3098
        %v3100 = vpop.f32.mrf.mxu0
        %v3101 = vadd.f32 %v3052, %v3100
        %3102 = vmatmul.bf16.gmra.mxu0 %v2194
        %v3103 = vpop.f32.mrf.mxu0
        %v3104 = vadd.f32 %v3055, %v3103
        %v3105 = vpop.f32.mrf.mxu0
        %v3106 = vadd.f32 %v3057, %v3105
        %3107 = vmatmul.bf16.gmra.mxu0 %v2203
        %v3108 = vpop.f32.mrf.mxu0
        %v3109 = vadd.f32 %v3060, %v3108
        %v3110 = vpop.f32.mrf.mxu0
        %v3111 = vadd.f32 %v3062, %v3110
        %3112 = vmatmul.bf16.gmra.mxu0 %v2212
        %v3113 = vpop.f32.mrf.mxu0
        %v3114 = vadd.f32 %v3065, %v3113
        %v3115 = vpop.f32.mrf.mxu0
        %v3116 = vadd.f32 %v3067, %v3115
        %3117 = vmatmul.bf16.gmra.mxu0 %v2221
        %v3118 = vpop.f32.mrf.mxu0
        %v3119 = vadd.f32 %v3070, %v3118
        %v3120 = vpop.f32.mrf.mxu0
        %v3121 = vadd.f32 %v3072, %v3120
        %3122 = vmatmul.bf16.gmra.mxu0 %v2230
        %v3123 = vpop.f32.mrf.mxu0
        %v3124 = vadd.f32 %v3075, %v3123
        %v3125 = vpop.f32.mrf.mxu0
        %v3126 = vadd.f32 %v3077, %v3125
        %3127 = vdwg.mxu0
        %3128 = vmatpush.bf16.msra.mxu0 %v2663
        %3129 = vmatpush.bf16.msra.mxu0 %v2662
        %3130 = vmatpush.bf16.msra.mxu0 %v2661
        %3131 = vmatpush.bf16.msra.mxu0 %v2660
        %3132 = vmatpush.bf16.msra.mxu0 %v2659
        %3133 = vmatpush.bf16.msra.mxu0 %v2658
        %3134 = vmatpush.bf16.msra.mxu0 %v2657
        %3135 = vmatpush.bf16.msra.mxu0 %v2656
        %3136 = vmatmul.bf16.gmra.mxu0 %v2168
        %v3137 = vpop.f32.mrf.mxu0
        %v3138 = vadd.f32 %v3089, %v3137
        %v3139 = vpop.f32.mrf.mxu0
        %v3140 = vadd.f32 %v3091, %v3139
        %3141 = vmatmul.bf16.gmra.mxu0 %v2177
        %v3142 = vpop.f32.mrf.mxu0
        %v3143 = vadd.f32 %v3094, %v3142
        %v3144 = vpop.f32.mrf.mxu0
        %v3145 = vadd.f32 %v3096, %v3144
        %3146 = vmatmul.bf16.gmra.mxu0 %v2186
        %v3147 = vpop.f32.mrf.mxu0
        %v3148 = vadd.f32 %v3099, %v3147
        %v3149 = vpop.f32.mrf.mxu0
        %v3150 = vadd.f32 %v3101, %v3149
        %3151 = vmatmul.bf16.gmra.mxu0 %v2195
        %v3152 = vpop.f32.mrf.mxu0
        %v3153 = vadd.f32 %v3104, %v3152
        %v3154 = vpop.f32.mrf.mxu0
        %v3155 = vadd.f32 %v3106, %v3154
        %3156 = vmatmul.bf16.gmra.mxu0 %v2204
        %v3157 = vpop.f32.mrf.mxu0
        %v3158 = vadd.f32 %v3109, %v3157
        %v3159 = vpop.f32.mrf.mxu0
        %v3160 = vadd.f32 %v3111, %v3159
        %3161 = vmatmul.bf16.gmra.mxu0 %v2213
        %v3162 = vpop.f32.mrf.mxu0
        %v3163 = vadd.f32 %v3114, %v3162
        %v3164 = vpop.f32.mrf.mxu0
        %v3165 = vadd.f32 %v3116, %v3164
        %3166 = vmatmul.bf16.gmra.mxu0 %v2222
        %v3167 = vpop.f32.mrf.mxu0
        %v3168 = vadd.f32 %v3119, %v3167
        %v3169 = vpop.f32.mrf.mxu0
        %v3170 = vadd.f32 %v3121, %v3169
        %3171 = vmatmul.bf16.gmra.mxu0 %v2231
        %v3172 = vpop.f32.mrf.mxu0
        %v3173 = vadd.f32 %v3124, %v3172
        %v3174 = vpop.f32.mrf.mxu0
        %v3175 = vadd.f32 %v3126, %v3174
        %3176 = vdwg.mxu0
        %v3177 = vmax.f32 %v3138, 0.0
        %v3178 = vmax.f32 %v3140, 0.0
        %v3179 = vmax.f32 %v3143, 0.0
        %v3180 = vmax.f32 %v3145, 0.0
        %v3181 = vmax.f32 %v3148, 0.0
        %v3182 = vmax.f32 %v3150, 0.0
        %v3183 = vmax.f32 %v3153, 0.0
        %v3184 = vmax.f32 %v3155, 0.0
        %v3185 = vmax.f32 %v3158, 0.0
        %v3186 = vmax.f32 %v3160, 0.0
        %v3187 = vmax.f32 %v3163, 0.0
        %v3188 = vmax.f32 %v3165, 0.0
        %v3189 = vmax.f32 %v3168, 0.0
        %v3190 = vmax.f32 %v3170, 0.0
        %v3191 = vmax.f32 %v3173, 0.0
        %v3192 = vmax.f32 %v3175, 0.0
        %v3193 = vpack.c.bf16 %v3178, %v3177
        %v3194 = vpack.c.bf16 %v3180, %v3179
        %v3195 = vpack.c.bf16 %v3182, %v3181
        %v3196 = vpack.c.bf16 %v3184, %v3183
        %v3197 = vpack.c.bf16 %v3186, %v3185
        %v3198 = vpack.c.bf16 %v3188, %v3187
        %v3199 = vpack.c.bf16 %v3190, %v3189
        %v3200 = vpack.c.bf16 %v3192, %v3191
        %v3201 = vld [vmem:[#allocation11] sm:$0xf]
        %v3202 = vld [vmem:[#allocation11 + $0x4] sm:$0xf]
        %v3203 = vld [vmem:[#allocation11 + $0x8] sm:$0xf]
        %v3204 = vld [vmem:[#allocation11 + $0xc] sm:$0xf]
        %v3205 = vld [vmem:[#allocation11 + $0x10] sm:$0xf]
        %v3206 = vld [vmem:[#allocation11 + $0x14] sm:$0xf]
        %v3207 = vld [vmem:[#allocation11 + $0x18] sm:$0xf]
        %v3208 = vld [vmem:[#allocation11 + $0x1c] sm:$0xf]
        %v3209 = vld [vmem:[#allocation11 + $0x20] sm:$0xf]
        %v3210 = vld [vmem:[#allocation11 + $0x24] sm:$0xf]
        %v3211 = vld [vmem:[#allocation11 + $0x28] sm:$0xf]
        %v3212 = vld [vmem:[#allocation11 + $0x2c] sm:$0xf]
        %v3213 = vld [vmem:[#allocation11 + $0x30] sm:$0xf]
        %v3214 = vld [vmem:[#allocation11 + $0x34] sm:$0xf]
        %v3215 = vld [vmem:[#allocation11 + $0x38] sm:$0xf]
        %v3216 = vld [vmem:[#allocation11 + $0x3c] sm:$0xf]
        %v3217 = vld [vmem:[%s8] sm:$0x1]
        %v3219 = vperm.slane %v3217, 0
        %v3237 = vunpack.c.l.b16 %v3201
        %v3238 = vunpack.c.l.b16 %v3202
        %v3239 = vunpack.c.l.b16 %v3203
        %v3240 = vunpack.c.l.b16 %v3204
        %v3241 = vunpack.c.l.b16 %v3205
        %v3242 = vunpack.c.l.b16 %v3206
        %v3243 = vunpack.c.l.b16 %v3207
        %v3244 = vunpack.c.l.b16 %v3208
        %v3245 = vunpack.c.l.b16 %v3209
        %v3246 = vunpack.c.l.b16 %v3210
        %v3247 = vunpack.c.l.b16 %v3211
        %v3248 = vunpack.c.l.b16 %v3212
        %v3249 = vunpack.c.l.b16 %v3213
        %v3250 = vunpack.c.l.b16 %v3214
        %v3251 = vunpack.c.l.b16 %v3215
        %v3252 = vunpack.c.l.b16 %v3216
        %v3253 = vpack.c.b16 %v3238, %v3237
        %v3254 = vpack.c.b16 %v3240, %v3239
        %v3255 = vpack.c.b16 %v3242, %v3241
        %v3256 = vpack.c.b16 %v3244, %v3243
        %v3257 = vpack.c.b16 %v3246, %v3245
        %v3258 = vpack.c.b16 %v3248, %v3247
        %v3259 = vpack.c.b16 %v3250, %v3249
        %v3260 = vpack.c.b16 %v3252, %v3251
        %3269 = vmatpush.bf16.msra.mxu0 %v3260
        %3270 = vmatpush.bf16.msra.mxu0 %v3259
        %3271 = vmatpush.bf16.msra.mxu0 %v3258
        %3272 = vmatpush.bf16.msra.mxu0 %v3257
        %3273 = vmatpush.bf16.msra.mxu0 %v3256
        %3274 = vmatpush.bf16.msra.mxu0 %v3255
        %3275 = vmatpush.bf16.msra.mxu0 %v3254
        %3276 = vmatpush.bf16.msra.mxu0 %v3253
        %3277 = vmatmul.bf16.gmra.mxu0 %v3193
        %v3278 = vpop.f32.mrf.mxu0
        %v3279 = vadd.f32 %v3219, %v3278
        %v3280 = vpop.f32.mrf.mxu0
        %v3281 = vadd.f32 %v3219, %v3280
        %3282 = vmatmul.bf16.gmra.mxu0 %v3194
        %v3283 = vpop.f32.mrf.mxu0
        %v3284 = vadd.f32 %v3219, %v3283
        %v3285 = vpop.f32.mrf.mxu0
        %v3286 = vadd.f32 %v3219, %v3285
        %3287 = vmatmul.bf16.gmra.mxu0 %v3195
        %v3288 = vpop.f32.mrf.mxu0
        %v3289 = vadd.f32 %v3219, %v3288
        %v3290 = vpop.f32.mrf.mxu0
        %v3291 = vadd.f32 %v3219, %v3290
        %3292 = vmatmul.bf16.gmra.mxu0 %v3196
        %v3293 = vpop.f32.mrf.mxu0
        %v3294 = vadd.f32 %v3219, %v3293
        %v3295 = vpop.f32.mrf.mxu0
        %v3296 = vadd.f32 %v3219, %v3295
        %3297 = vmatmul.bf16.gmra.mxu0 %v3197
        %v3298 = vpop.f32.mrf.mxu0
        %v3299 = vadd.f32 %v3219, %v3298
        %v3300 = vpop.f32.mrf.mxu0
        %v3301 = vadd.f32 %v3219, %v3300
        %3302 = vmatmul.bf16.gmra.mxu0 %v3198
        %v3303 = vpop.f32.mrf.mxu0
        %v3304 = vadd.f32 %v3219, %v3303
        %v3305 = vpop.f32.mrf.mxu0
        %v3306 = vadd.f32 %v3219, %v3305
        %3307 = vmatmul.bf16.gmra.mxu0 %v3199
        %v3308 = vpop.f32.mrf.mxu0
        %v3309 = vadd.f32 %v3219, %v3308
        %v3310 = vpop.f32.mrf.mxu0
        %v3311 = vadd.f32 %v3219, %v3310
        %3312 = vmatmul.bf16.gmra.mxu0 %v3200
        %v3313 = vpop.f32.mrf.mxu0
        %v3314 = vadd.f32 %v3219, %v3313
        %v3315 = vpop.f32.mrf.mxu0
        %v3316 = vadd.f32 %v3219, %v3315
        %3317 = vdwg.mxu0
        %s3318 = scalar_lea.vmem %s412, %s477 [#allocation3]
        %v3319 = vld [vmem:[%s3318] sm:$0xff]
        %v3320 = vld [vmem:[%s3318 + $0x8] sm:$0xff]
        %v3321 = vld [vmem:[%s3318 + $0x10] sm:$0xff]
        %v3322 = vld [vmem:[%s3318 + $0x18] sm:$0xff]
        %v3323 = vld [vmem:[%s3318 + $0x20] sm:$0xff]
        %v3324 = vld [vmem:[%s3318 + $0x28] sm:$0xff]
        %v3325 = vld [vmem:[%s3318 + $0x30] sm:$0xff]
        %v3326 = vld [vmem:[%s3318 + $0x38] sm:$0xff]
        %v3327 = vld [vmem:[%s3318 + $0x40] sm:$0xff]
        %v3328 = vld [vmem:[%s3318 + $0x48] sm:$0xff]
        %v3329 = vld [vmem:[%s3318 + $0x50] sm:$0xff]
        %v3330 = vld [vmem:[%s3318 + $0x58] sm:$0xff]
        %v3331 = vld [vmem:[%s3318 + $0x60] sm:$0xff]
        %v3332 = vld [vmem:[%s3318 + $0x68] sm:$0xff]
        %v3333 = vld [vmem:[%s3318 + $0x70] sm:$0xff]
        %v3334 = vld [vmem:[%s3318 + $0x78] sm:$0xff]
        %v3335 = vpack.c.bf16 %v3320, %v3319
        %v3336 = vpack.c.bf16 %v3322, %v3321
        %v3337 = vpack.c.bf16 %v3324, %v3323
        %v3338 = vpack.c.bf16 %v3326, %v3325
        %v3339 = vpack.c.bf16 %v3328, %v3327
        %v3340 = vpack.c.bf16 %v3330, %v3329
        %v3341 = vpack.c.bf16 %v3332, %v3331
        %v3342 = vpack.c.bf16 %v3334, %v3333
        %v3343 = vld [vmem:[#allocation12] sm:$0xf]
        %v3344 = vld [vmem:[#allocation12 + $0x4] sm:$0xf]
        %v3345 = vld [vmem:[#allocation12 + $0x8] sm:$0xf]
        %v3346 = vld [vmem:[#allocation12 + $0xc] sm:$0xf]
        %v3347 = vld [vmem:[#allocation12 + $0x10] sm:$0xf]
        %v3348 = vld [vmem:[#allocation12 + $0x14] sm:$0xf]
        %v3349 = vld [vmem:[#allocation12 + $0x18] sm:$0xf]
        %v3350 = vld [vmem:[#allocation12 + $0x1c] sm:$0xf]
        %v3351 = vld [vmem:[#allocation12 + $0x20] sm:$0xf]
        %v3352 = vld [vmem:[#allocation12 + $0x24] sm:$0xf]
        %v3353 = vld [vmem:[#allocation12 + $0x28] sm:$0xf]
        %v3354 = vld [vmem:[#allocation12 + $0x2c] sm:$0xf]
        %v3355 = vld [vmem:[#allocation12 + $0x30] sm:$0xf]
        %v3356 = vld [vmem:[#allocation12 + $0x34] sm:$0xf]
        %v3357 = vld [vmem:[#allocation12 + $0x38] sm:$0xf]
        %v3358 = vld [vmem:[#allocation12 + $0x3c] sm:$0xf]
        %v3375 = vunpack.c.l.b16 %v3343
        %v3376 = vunpack.c.l.b16 %v3344
        %v3377 = vunpack.c.l.b16 %v3345
        %v3378 = vunpack.c.l.b16 %v3346
        %v3379 = vunpack.c.l.b16 %v3347
        %v3380 = vunpack.c.l.b16 %v3348
        %v3381 = vunpack.c.l.b16 %v3349
        %v3382 = vunpack.c.l.b16 %v3350
        %v3383 = vunpack.c.l.b16 %v3351
        %v3384 = vunpack.c.l.b16 %v3352
        %v3385 = vunpack.c.l.b16 %v3353
        %v3386 = vunpack.c.l.b16 %v3354
        %v3387 = vunpack.c.l.b16 %v3355
        %v3388 = vunpack.c.l.b16 %v3356
        %v3389 = vunpack.c.l.b16 %v3357
        %v3390 = vunpack.c.l.b16 %v3358
        %v3391 = vpack.c.b16 %v3376, %v3375
        %v3392 = vpack.c.b16 %v3378, %v3377
        %v3393 = vpack.c.b16 %v3380, %v3379
        %v3394 = vpack.c.b16 %v3382, %v3381
        %v3395 = vpack.c.b16 %v3384, %v3383
        %v3396 = vpack.c.b16 %v3386, %v3385
        %v3397 = vpack.c.b16 %v3388, %v3387
        %v3398 = vpack.c.b16 %v3390, %v3389
        %3407 = vmatpush.bf16.msra.mxu0 %v3398
        %3408 = vmatpush.bf16.msra.mxu0 %v3397
        %3409 = vmatpush.bf16.msra.mxu0 %v3396
        %3410 = vmatpush.bf16.msra.mxu0 %v3395
        %3411 = vmatpush.bf16.msra.mxu0 %v3394
        %3412 = vmatpush.bf16.msra.mxu0 %v3393
        %3413 = vmatpush.bf16.msra.mxu0 %v3392
        %3414 = vmatpush.bf16.msra.mxu0 %v3391
        %3415 = vmatmul.bf16.gmra.mxu0 %v3335
        %v3416 = vpop.f32.mrf.mxu0
        %v3417 = vadd.f32 0.0, %v3416
        %v3418 = vpop.f32.mrf.mxu0
        %v3419 = vadd.f32 0.0, %v3418
        %3420 = vmatmul.bf16.gmra.mxu0 %v3336
        %v3421 = vpop.f32.mrf.mxu0
        %v3422 = vadd.f32 0.0, %v3421
        %v3423 = vpop.f32.mrf.mxu0
        %v3424 = vadd.f32 0.0, %v3423
        %3425 = vmatmul.bf16.gmra.mxu0 %v3337
        %v3426 = vpop.f32.mrf.mxu0
        %v3427 = vadd.f32 0.0, %v3426
        %v3428 = vpop.f32.mrf.mxu0
        %v3429 = vadd.f32 0.0, %v3428
        %3430 = vmatmul.bf16.gmra.mxu0 %v3338
        %v3431 = vpop.f32.mrf.mxu0
        %v3432 = vadd.f32 0.0, %v3431
        %v3433 = vpop.f32.mrf.mxu0
        %v3434 = vadd.f32 0.0, %v3433
        %3435 = vmatmul.bf16.gmra.mxu0 %v3339
        %v3436 = vpop.f32.mrf.mxu0
        %v3437 = vadd.f32 0.0, %v3436
        %v3438 = vpop.f32.mrf.mxu0
        %v3439 = vadd.f32 0.0, %v3438
        %3440 = vmatmul.bf16.gmra.mxu0 %v3340
        %v3441 = vpop.f32.mrf.mxu0
        %v3442 = vadd.f32 0.0, %v3441
        %v3443 = vpop.f32.mrf.mxu0
        %v3444 = vadd.f32 0.0, %v3443
        %3445 = vmatmul.bf16.gmra.mxu0 %v3341
        %v3446 = vpop.f32.mrf.mxu0
        %v3447 = vadd.f32 0.0, %v3446
        %v3448 = vpop.f32.mrf.mxu0
        %v3449 = vadd.f32 0.0, %v3448
        %3450 = vmatmul.bf16.gmra.mxu0 %v3342
        %v3451 = vpop.f32.mrf.mxu0
        %v3452 = vadd.f32 0.0, %v3451
        %v3453 = vpop.f32.mrf.mxu0
        %v3454 = vadd.f32 0.0, %v3453
        %3455 = vdwg.mxu0
        %v3456 = vadd.f32 %v3279, %v3417
        %v3457 = vadd.f32 %v3281, %v3419
        %v3458 = vadd.f32 %v3284, %v3422
        %v3459 = vadd.f32 %v3286, %v3424
        %v3460 = vadd.f32 %v3289, %v3427
        %v3461 = vadd.f32 %v3291, %v3429
        %v3462 = vadd.f32 %v3294, %v3432
        %v3463 = vadd.f32 %v3296, %v3434
        %v3464 = vadd.f32 %v3299, %v3437
        %v3465 = vadd.f32 %v3301, %v3439
        %v3466 = vadd.f32 %v3304, %v3442
        %v3467 = vadd.f32 %v3306, %v3444
        %v3468 = vadd.f32 %v3309, %v3447
        %v3469 = vadd.f32 %v3311, %v3449
        %v3470 = vadd.f32 %v3314, %v3452
        %v3471 = vadd.f32 %v3316, %v3454
        %3472 = vst [vmem:[%s474] sm:$0xff] %v3456
        %3473 = vst [vmem:[%s474 + $0x8] sm:$0xff] %v3457
        %3474 = vst [vmem:[%s474 + $0x10] sm:$0xff] %v3458
        %3475 = vst [vmem:[%s474 + $0x18] sm:$0xff] %v3459
        %3476 = vst [vmem:[%s474 + $0x20] sm:$0xff] %v3460
        %3477 = vst [vmem:[%s474 + $0x28] sm:$0xff] %v3461
        %3478 = vst [vmem:[%s474 + $0x30] sm:$0xff] %v3462
        %3479 = vst [vmem:[%s474 + $0x38] sm:$0xff] %v3463
        %3480 = vst [vmem:[%s474 + $0x40] sm:$0xff] %v3464
        %3481 = vst [vmem:[%s474 + $0x48] sm:$0xff] %v3465
        %3482 = vst [vmem:[%s474 + $0x50] sm:$0xff] %v3466
        %3483 = vst [vmem:[%s474 + $0x58] sm:$0xff] %v3467
        %3484 = vst [vmem:[%s474 + $0x60] sm:$0xff] %v3468
        %3485 = vst [vmem:[%s474 + $0x68] sm:$0xff] %v3469
        %3486 = vst [vmem:[%s474 + $0x70] sm:$0xff] %v3470
        %3487 = vst [vmem:[%s474 + $0x78] sm:$0xff] %v3471
        %s3488 = sand.u32 %s267, 1
        %s3489 = scalar_lea.sflag [#allocation5], %s3488
        %s3490 = sand.u32 %s267, 1
        %s3491 = smul.addr %s3490, 128
        %s3492 = scalar_lea.vmem [#allocation14], %s3491
        // Predicated region
        $region85: #{tpu_custom_call.1} parent=59 // pred_check
          %p3493 = pneg %p277
        $region86: #{tpu_custom_call.1} parent=59 // pred_check_branch
          %3495 = sbr.rel (%p3493) target = $region88
        $region87: #{tpu_custom_call.1} parent=59 // pred_region
          %s3496 = smul.u32 16, %s35
          %3498 = vsyncadd %s3489, 0
          %s3499 = smul.addr %s34, 32
          %s3500 = sadd.s32 %s3496, %s3499
          %s3501 = smul.addr %s3500, 8
          %s3502 = scalar_lea.hbm %s10, %s3501
          %s3503 = sshll.u32 %s3492, 4
          %s3504 = int_to_ptr.vmem [resolvable:$true] %s3503
          %s3505 = sshll.u32 %s3502, 4
          %s3506 = int_to_ptr.hbm [resolvable:$true] %s3505
          %3511 = dma.vmem_to_hbm [thread:$0]  %s3504, 2048, %s3506, %s3489, 128, 128, 8
        $region88: #{tpu_custom_call.1} parent=59 // pred_fallthru
          _
      $region60: #{tpu_custom_call.1} parent=5 // pred_fallthru
        _
      %p3512 = scmp.le.s32.totalorder 2, %s25
      // Predicated region
      $region89: #{tpu_custom_call.1} parent=5 // pred_check
        %p3513 = pneg %p3512
      $region90: #{tpu_custom_call.1} parent=5 // pred_check_branch
        %3515 = sbr.rel (%p3513) target = $region92
      $region91: #{tpu_custom_call.1} parent=5 // pred_region
        %s3516 = ssub.s32 %s25, 2
        // Predicated region
        $region93: #{tpu_custom_call.1} parent=91 // pred_check
          %p3517 = pneg %p283
        $region94: #{tpu_custom_call.1} parent=91 // pred_check_branch
          %3519 = sbr.rel (%p3517) target = $region96
        $region95: #{tpu_custom_call.1} parent=91 // pred_region
          %s3520 = sand.u32 %s268, 1
          %s3521 = scalar_lea.sflag [#allocation5], %s3520
          %s3522 = sand.u32 %s268, 1
          %s3523 = smul.addr %s3522, 128
          %s3524 = scalar_lea.vmem [#allocation14], %s3523
          %3526 = dma.done %s3521, 2048
        $region96: #{tpu_custom_call.1} parent=91 // pred_fallthru
          _
      $region92: #{tpu_custom_call.1} parent=5 // pred_fallthru
        _
    $region6: #{tpu_custom_call.1} parent=1 // loop_footer
      %s29 = sadd.s32 1, %s25
    $region7: #{tpu_custom_call.1} parent=1 // loop_footer_branch
      %24 = sbr.rel target = $region3
    $region8: #{tpu_custom_call.1} parent=1 // loop_exit
      _
    %3527 = vsyncpa [#allocation4], 1
    %s3528 = scalar_lea.sflag [#allocation4], 1
    %3529 = vsyncpa %s3528, 1
    %3530 = vsyncpa [#allocation7], 1
    %3531 = vsyncpa [#allocation10], 1
    %3532 = vsyncpa [#allocation13], 1
    %3533 = vsyncpa [#allocation5], 1
    %s3534 = scalar_lea.sflag [#allocation5], 1
    %3535 = vsyncpa %s3534, 1

</llo_original>
